<compile_context>
chip_gen: v6e
topology: v6e:2x2x1
jax: 0.10.0
libtpu: 0.0.40
codegen_flags: <defaults>
</compile_context>

<pallas_src>
import functools

import numpy as np
import jax
import jax.numpy as jnp
from jax.experimental import pallas as pl
from jax.experimental.pallas import tpu as pltpu

_VMEM = pl.BlockSpec(memory_space=pltpu.MemorySpace.VMEM)


def _group_width(n):
    """Lane-group width used for the packed head outputs (multiple of 8)."""
    return max(8, ((n + 7) // 8) * 8)


# ----------------------------------------------------------------------------
# The single fused forward kernel
# ----------------------------------------------------------------------------
def _fused_forward_kernel(x_ref, inner_ref,
                          m1_ref, b1_ref, m2_ref, b2_ref, m3_ref, b3_ref,
                          mfc_ref, bfc_ref,
                          wl1i_ref, wl1v_ref, bl1_ref,
                          wl2_ref, bl2_ref, wl3_ref, bl3_ref,
                          out_ref, *, n_actions, group):
    g = group
    n = n_actions
    relu = lambda t: jnp.maximum(t, 0.0)

    def mm(a_f32, w_ref, b_ref=None):
        # bf16 operands into the MXU, f32 accumulation; bias added once to the
        # f32 accumulator. Elementwise math stays f32 (no bf16 VPU on v5e).
        acc = jnp.dot(a_f32.astype(jnp.bfloat16), w_ref[...],
                      preferred_element_type=jnp.float32)
        if b_ref is not None:
            acc = acc + b_ref[...]
        return acc

    # ---- vision tower: convs as dense (Toeplitz) matmuls, batched over 2B ---
    # M1 consumes the NCHW-flattened input directly (row order baked in).
    h = relu(mm(x_ref[...], m1_ref, b1_ref))       # (2B, 7*7*16)
    h = relu(mm(h, m2_ref, b2_ref))                # (2B, 3*3*32)
    h = relu(mm(h, m3_ref, b3_ref))                # (2B, 32)
    latent = relu(mm(h, mfc_ref, bfc_ref))         # (2B, latent_dim)

    # ---- five heads fused: q1 | q2 | v | v_target | actor -------------------
    # obs = concat([inner, latent], axis=1) folded into two matmuls.
    h1 = relu(mm(inner_ref[...], wl1i_ref) + mm(latent, wl1v_ref, bl1_ref))
    h2 = relu(mm(h1, wl2_ref, bl2_ref))            # block-diagonal per-head L2
    raw = mm(h2, wl3_ref, bl3_ref)                 # (2B, >=7g) aligned groups

    # Group layout of `raw` (each group g lanes, g multiple of 8):
    #   [q1A | q1V* | q2A | q2V* | vV* | vtV* | logits]   (* = lane-replicated)
    # A-groups / logit pads carry zero weights+bias (logit pads: -1e30 bias).
    inv_n = 1.0 / n
    q1a = raw[:, 0:g]
    q1v = raw[:, g:2 * g]
    q2a = raw[:, 2 * g:3 * g]
    q2v = raw[:, 3 * g:4 * g]
    vv = raw[:, 4 * g:5 * g]
    vtv = raw[:, 5 * g:6 * g]
    logits = raw[:, 6 * g:7 * g]

    # Dueling aggregation: Q = V + A - mean(A). Pad lanes of A are exactly 0,
    # so an aligned g-lane sum equals the n-lane sum.
    q1 = q1v + q1a - jnp.sum(q1a, axis=1, keepdims=True) * inv_n
    q2 = q2v + q2a - jnp.sum(q2a, axis=1, keepdims=True) * inv_n

    # Softmax policy (max-subtracted). Pad logits = -1e30 -> exp underflows to
    # 0 and they drop out of max/sum. Divide goes through the EUP reciprocal.
    m = jnp.max(logits, axis=1, keepdims=True)
    e = jnp.exp(logits - m)
    s = jnp.sum(e, axis=1, keepdims=True)
    pi = e * pl.reciprocal(s, approx=True)
    log_pi = (logits - m) - jnp.log(s)

    # Lane-dense output slab written with direct sliced stores (no lane concat)
    out_ref[...] = jnp.zeros_like(out_ref)
    out_ref[:, 0:g] = q1
    out_ref[:, g:2 * g] = q2
    out_ref[:, 2 * g:3 * g] = vv
    out_ref[:, 3 * g:4 * g] = vtv
    out_ref[:, 4 * g:5 * g] = pi
    out_ref[:, 5 * g:6 * g] = log_pi


# ----------------------------------------------------------------------------
# Forward wrapper (glue only: batch concat, free NCHW flatten, output slicing)
# ----------------------------------------------------------------------------
def forward(params, inner_state, outer_state, next_inner_state,
            next_outer_state, *, n_actions):
    B = inner_state.shape[0]
    n = n_actions
    g = _group_width(n)
    out_w = max(128, ((6 * g + 127) // 128) * 128)

    # No NCHW->NHWC transpose: M1's rows are built in NCHW order, and the
    # reshape of a contiguous NCHW tensor is free.
    outer = jnp.concatenate([outer_state, next_outer_state], axis=0)  # (2B,C,H,W)
    x = outer.reshape(2 * B, -1)                                      # NCHW flat
    inner = jnp.concatenate([inner_state, next_inner_state], axis=0)  # (2B,s_dim)

    # Advisory cost estimate: latency/DMA-bound kernel; lets XLA overlap the
    # surrounding glue ops with the weight DMA.
    weight_keys = ("M1", "M2", "M3", "Mfc", "WL1_inner", "WL1_vision",
                   "WL2", "WL3")
    kn = sum(int(np.prod(params[k].shape)) for k in weight_keys)
    bytes_accessed = sum(int(np.prod(v.shape)) * v.dtype.itemsize
                         for k, v in params.items() if k != "log_alpha")
    bytes_accessed += int(x.size) * 4 + int(inner.size) * 4 + 2 * B * out_w * 4
    cost = pl.CostEstimate(flops=2 * (2 * B) * kn,
                           transcendentals=2 * B * 2 * g,
                           bytes_accessed=int(bytes_accessed))

    out = pl.pallas_call(
        functools.partial(_fused_forward_kernel, n_actions=n, group=g),
        out_shape=jax.ShapeDtypeStruct((2 * B, out_w), jnp.float32),
        in_specs=[_VMEM] * 17,
        out_specs=_VMEM,
        cost_estimate=cost,
    )(x, inner,
      params["M1"], params["b1"], params["M2"], params["b2"],
      params["M3"], params["b3"], params["Mfc"], params["bfc"],
      params["WL1_inner"], params["WL1_vision"], params["bL1"],
      params["WL2"], params["bL2"], params["WL3"], params["bL3"])

    q1 = out[:B, 0:n]
    q2 = out[:B, g:g + n]
    v = out[:B, 2 * g:2 * g + 1]
    next_v = out[B:, 3 * g:3 * g + 1]          # v_target applied to next_obs
    pi = out[:B, 4 * g:4 * g + n]
    log_pi = out[:B, 5 * g:5 * g + n]
    log_alpha = params["log_alpha"].reshape(-1, 1)
    return q1, q2, v, next_v, pi, log_pi, log_alpha


# ----------------------------------------------------------------------------
# Deterministic parameter construction + weight packing (done once on host)
# ----------------------------------------------------------------------------
def _uniform(key, shape, fan_in):
    lim = 1.0 / np.sqrt(fan_in)
    return jax.random.uniform(key, shape, jnp.float32, -lim, lim)


def _init_linear(key, fan_in, fan_out):
    kw, kb = jax.random.split(key)
    w = np.asarray(_uniform(kw, (fan_in, fan_out), fan_in))
    b = np.asarray(_uniform(kb, (1, fan_out), fan_in))
    return w, b


def _init_conv(key, k, cin, cout):
    kw, kb = jax.random.split(key)
    fan_in = k * k * cin
    w = np.asarray(_uniform(kw, (k, k, cin, cout), fan_in))
    b = np.asarray(_uniform(kb, (1, cout), fan_in))
    return w, b


def _conv_as_matrix(w, b, H, W, stride, input_order="nhwc"):
    """Expand conv weight (kh,kw,Cin,Cout) into a dense Toeplitz matrix acting
    on a flattened input (NHWC- or NCHW-ordered rows), producing an
    NHWC-flattened output, plus the spatially tiled bias (1, Ho*Wo*Cout)."""
    kh, kw, cin, cout = w.shape
    Ho = (H - kh) // stride + 1
    Wo = (W - kw) // stride + 1
    if input_order == "nhwc":
        M = np.zeros((H, W, cin, Ho, Wo, cout), np.float32)
        for oi in range(Ho):
            for oj in range(Wo):
                M[oi * stride:oi * stride + kh,
                  oj * stride:oj * stride + kw, :, oi, oj, :] += w
    else:  # "nchw": rows ordered (Cin, H, W) -> consumes NCHW-flat input
        M = np.zeros((cin, H, W, Ho, Wo, cout), np.float32)
        w_chw = np.transpose(w, (2, 0, 1, 3))       # (cin, kh, kw, cout)
        for oi in range(Ho):
            for oj in range(Wo):
                M[:, oi * stride:oi * stride + kh,
                  oj * stride:oj * stride + kw, oi, oj, :] += w_chw
    M = M.reshape(H * W * cin, Ho * Wo * cout)
    bt = np.tile(b.reshape(1, cout), (1, Ho * Wo))
    return M, bt


def make_params(s_dim, n_actions, in_channels=3, latent_dim=32, hidden=64,
                H=16, W=16):
    keys = iter(jax.random.split(jax.random.PRNGKey(42), 64))
    obs_dim = s_dim + latent_dim
    n = n_actions
    g = _group_width(n)

    # ---- vision_Net (hyperparameters guessed; see TODO at top) ----
    w1, b1 = _init_conv(next(keys), 3, in_channels, 16)     # k3 / s2
    w2, b2 = _init_conv(next(keys), 3, 16, 32)              # k3 / s2
    w3, b3 = _init_conv(next(keys), 3, 32, 32)              # k3 / s1

    H1, W1 = (H - 3) // 2 + 1, (W - 3) // 2 + 1
    H2, W2 = (H1 - 3) // 2 + 1, (W1 - 3) // 2 + 1
    H3, W3 = (H2 - 3) + 1, (W2 - 3) + 1
    flat3 = H3 * W3 * 32

    M1, b1t = _conv_as_matrix(w1, b1, H, W, 2, input_order="nchw")
    M2, b2t = _conv_as_matrix(w2, b2, H1, W1, 2)
    M3, b3t = _conv_as_matrix(w3, b3, H2, W2, 1)
    fcw, fcb = _init_linear(next(keys), flat3, latent_dim)

    # ---- heads: q1 (dueling), q2 (dueling), v, v_target (copy), actor ----
    def dueling(k):
        k1, k2, kv, ka = jax.random.split(k, 4)
        return dict(l1=_init_linear(k1, obs_dim, hidden),
                    l2=_init_linear(k2, hidden, hidden),
                    lV=_init_linear(kv, hidden, 1),
                    lA=_init_linear(ka, hidden, n))

    def mlp3(k, out_dim):
        k1, k2, k3 = jax.random.split(k, 3)
        return dict(l1=_init_linear(k1, obs_dim, hidden),
                    l2=_init_linear(k2, hidden, hidden),
                    l3=_init_linear(k3, hidden, out_dim))

    q1p = dueling(next(keys))
    q2p = dueling(next(keys))
    vp = mlp3(next(keys), 1)
    vtp = {k: (w.copy(), b.copy()) for k, (w, b) in vp.items()}  # updateNet(..,1.0)
    ap = mlp3(next(keys), n)
    heads = [q1p, q2p, vp, vtp, ap]

    # L1: one wide (obs_dim, 5*hidden) matmul, rows split [inner | latent].
    WL1 = np.concatenate([h["l1"][0] for h in heads], axis=1)
    bL1 = np.concatenate([h["l1"][1] for h in heads], axis=1)
    WL1_inner, WL1_vision = WL1[:s_dim], WL1[s_dim:]

    # L2: block-diagonal (5*hidden, 5*hidden)
    WL2 = np.zeros((5 * hidden, 5 * hidden), np.float32)
    bL2 = np.zeros((1, 5 * hidden), np.float32)
    for i, h in enumerate(heads):
        WL2[i * hidden:(i + 1) * hidden, i * hidden:(i + 1) * hidden] = h["l2"][0]
        bL2[:, i * hidden:(i + 1) * hidden] = h["l2"][1]

    # L3: 8-lane-aligned column groups (width g each, padded to >=128 lanes):
    #   [q1A | q1V* | q2A | q2V* | vV* | vtV* | logits]  (* = lane-replicated)
    raw_w = max(128, ((7 * g + 127) // 128) * 128)
    WL3 = np.zeros((5 * hidden, raw_w), np.float32)
    bL3 = np.zeros((1, raw_w), np.float32)
    r0, r1, r2, r3, r4 = (slice(i * hidden, (i + 1) * hidden) for i in range(5))
    # q1 head
    WL3[r0, 0:n] = q1p["lA"][0];               bL3[:, 0:n] = q1p["lA"][1]
    WL3[r0, g:2 * g] = np.tile(q1p["lV"][0], (1, g))
    bL3[:, g:2 * g] = np.tile(q1p["lV"][1], (1, g))
    # q2 head
    WL3[r1, 2 * g:2 * g + n] = q2p["lA"][0];   bL3[:, 2 * g:2 * g + n] = q2p["lA"][1]
    WL3[r1, 3 * g:4 * g] = np.tile(q2p["lV"][0], (1, g))
    bL3[:, 3 * g:4 * g] = np.tile(q2p["lV"][1], (1, g))
    # v / v_target heads (lane-replicated scalar)
    WL3[r2, 4 * g:5 * g] = np.tile(vp["l3"][0], (1, g))
    bL3[:, 4 * g:5 * g] = np.tile(vp["l3"][1], (1, g))
    WL3[r3, 5 * g:6 * g] = np.tile(vtp["l3"][0], (1, g))
    bL3[:, 5 * g:6 * g] = np.tile(vtp["l3"][1], (1, g))
    # actor logits; pad lanes carry -1e30 bias so the softmax ignores them
    WL3[r4, 6 * g:6 * g + n] = ap["l3"][0];    bL3[:, 6 * g:6 * g + n] = ap["l3"][1]
    bL3[:, 6 * g + n:7 * g] = -1e30

    bf16 = lambda a: jnp.asarray(a, jnp.bfloat16)   # weight matrices -> bf16
    f32 = lambda a: jnp.asarray(a, jnp.float32)     # biases stay f32
    return dict(
        M1=bf16(M1), b1=f32(b1t),
        M2=bf16(M2), b2=f32(b2t),
        M3=bf16(M3), b3=f32(b3t),
        Mfc=bf16(fcw), bfc=f32(fcb),
        WL1_inner=bf16(WL1_inner), WL1_vision=bf16(WL1_vision), bL1=f32(bL1),
        WL2=bf16(WL2), bL2=f32(bL2), WL3=bf16(WL3), bL3=f32(bL3),
        log_alpha=jnp.zeros((1,), jnp.float32),     # nn.init.constant_(0.0)
    )


# ----------------------------------------------------------------------------
if __name__ == "__main__":
    B = 2
    s_dim = 8          # inner_state dim
    n_actions = 4
    latent_dim = 32
    C, Hh, Ww = 3, 16, 16

    params = make_params(s_dim, n_actions, in_channels=C,
                         latent_dim=latent_dim, H=Hh, W=Ww)

    k0, k1, k2, k3 = jax.random.split(jax.random.PRNGKey(0), 4)
    inner_state = jax.random.normal(k0, (B, s_dim), jnp.float32)
    outer_state = jax.random.normal(k1, (B, C, Hh, Ww), jnp.float32)
    next_inner_state = jax.random.normal(k2, (B, s_dim), jnp.float32)
    next_outer_state = jax.random.normal(k3, (B, C, Hh, Ww), jnp.float32)

    fwd = jax.jit(functools.partial(forward, n_actions=n_actions))
    outs = fwd(params, inner_state, outer_state,
               next_inner_state, next_outer_state)
    outs = jax.block_until_ready(outs)

    q1, q2, v, next_v, pi, log_pi, log_alpha = outs
    assert q1.shape == (B, n_actions) and q2.shape == (B, n_actions)
    assert v.shape == (B, 1) and next_v.shape == (B, 1)
    assert pi.shape == (B, n_actions) and log_pi.shape == (B, n_actions)
    assert log_alpha.shape == (1, 1)
    assert bool(jnp.all(jnp.isfinite(q1))) and bool(jnp.all(jnp.isfinite(q2)))
    assert bool(jnp.all(jnp.isfinite(pi))) and bool(jnp.all(pi >= 0))
    assert bool(jnp.all(jnp.abs(jnp.sum(pi, axis=1) - 1.0) < 1e-2))
    print("KERNEL_OK")
</pallas_src>

<mosaic_0001>
module attributes {stable_mosaic.version = 11 : i64} {
  func.func @_fused_forward_kernel(%arg0: memref<4x768xf32, #tpu.memory_space<vmem>>, %arg1: memref<4x8xf32, #tpu.memory_space<vmem>>, %arg2: memref<768x784xbf16, #tpu.memory_space<vmem>>, %arg3: memref<1x784xf32, #tpu.memory_space<vmem>>, %arg4: memref<784x288xbf16, #tpu.memory_space<vmem>>, %arg5: memref<1x288xf32, #tpu.memory_space<vmem>>, %arg6: memref<288x32xbf16, #tpu.memory_space<vmem>>, %arg7: memref<1x32xf32, #tpu.memory_space<vmem>>, %arg8: memref<32x32xbf16, #tpu.memory_space<vmem>>, %arg9: memref<1x32xf32, #tpu.memory_space<vmem>>, %arg10: memref<8x320xbf16, #tpu.memory_space<vmem>>, %arg11: memref<32x320xbf16, #tpu.memory_space<vmem>>, %arg12: memref<1x320xf32, #tpu.memory_space<vmem>>, %arg13: memref<320x320xbf16, #tpu.memory_space<vmem>>, %arg14: memref<1x320xf32, #tpu.memory_space<vmem>>, %arg15: memref<320x128xbf16, #tpu.memory_space<vmem>>, %arg16: memref<1x128xf32, #tpu.memory_space<vmem>>, %arg17: memref<4x128xf32, #tpu.memory_space<vmem>>) attributes {dimension_semantics = [], scalar_prefetch = 0 : i64, scratch_operands = 0 : i64, tpu.core_type = #tpu.core_type<tc>} {
    %c0 = arith.constant 0 : index
    %c0_0 = arith.constant 0 : index
    %0 = vector.load %arg0[%c0, %c0_0] : memref<4x768xf32, #tpu.memory_space<vmem>>, vector<4x768xf32>
    %1 = arith.truncf %0 : vector<4x768xf32> to vector<4x768xbf16>
    %c0_1 = arith.constant 0 : index
    %c0_2 = arith.constant 0 : index
    %2 = vector.load %arg2[%c0_1, %c0_2] : memref<768x784xbf16, #tpu.memory_space<vmem>>, vector<768x784xbf16>
    %cst = arith.constant dense<0.000000e+00> : vector<4x784xf32>
    %3 = tpu.matmul %1, %2, %cst {dimension_numbers = #tpu.dot_dimension_numbers<[1], [0], [0], [1], [0, 0, 1, 1], [], []>} : vector<4x768xbf16>, vector<768x784xbf16>, vector<4x784xf32> -> vector<4x784xf32>
    %c0_3 = arith.constant 0 : index
    %c0_4 = arith.constant 0 : index
    %4 = vector.load %arg3[%c0_3, %c0_4] : memref<1x784xf32, #tpu.memory_space<vmem>>, vector<1x784xf32>
    %5 = vector.broadcast %4 : vector<1x784xf32> to vector<4x784xf32>
    %6 = arith.addf %3, %5 : vector<4x784xf32>
    %cst_5 = arith.constant 0.000000e+00 : f32
    %7 = vector.broadcast %cst_5 : f32 to vector<4x784xf32>
    %8 = arith.maximumf %6, %7 : vector<4x784xf32>
    %9 = arith.truncf %8 : vector<4x784xf32> to vector<4x784xbf16>
    %c0_6 = arith.constant 0 : index
    %c0_7 = arith.constant 0 : index
    %10 = vector.load %arg4[%c0_6, %c0_7] : memref<784x288xbf16, #tpu.memory_space<vmem>>, vector<784x288xbf16>
    %cst_8 = arith.constant dense<0.000000e+00> : vector<4x288xf32>
    %11 = tpu.matmul %9, %10, %cst_8 {dimension_numbers = #tpu.dot_dimension_numbers<[1], [0], [0], [1], [0, 0, 1, 1], [], []>} : vector<4x784xbf16>, vector<784x288xbf16>, vector<4x288xf32> -> vector<4x288xf32>
    %c0_9 = arith.constant 0 : index
    %c0_10 = arith.constant 0 : index
    %12 = vector.load %arg5[%c0_9, %c0_10] : memref<1x288xf32, #tpu.memory_space<vmem>>, vector<1x288xf32>
    %13 = vector.broadcast %12 : vector<1x288xf32> to vector<4x288xf32>
    %14 = arith.addf %11, %13 : vector<4x288xf32>
    %cst_11 = arith.constant 0.000000e+00 : f32
    %15 = vector.broadcast %cst_11 : f32 to vector<4x288xf32>
    %16 = arith.maximumf %14, %15 : vector<4x288xf32>
    %17 = arith.truncf %16 : vector<4x288xf32> to vector<4x288xbf16>
    %c0_12 = arith.constant 0 : index
    %c0_13 = arith.constant 0 : index
    %18 = vector.load %arg6[%c0_12, %c0_13] : memref<288x32xbf16, #tpu.memory_space<vmem>>, vector<288x32xbf16>
    %cst_14 = arith.constant dense<0.000000e+00> : vector<4x32xf32>
    %19 = tpu.matmul %17, %18, %cst_14 {dimension_numbers = #tpu.dot_dimension_numbers<[1], [0], [0], [1], [0, 0, 1, 1], [], []>} : vector<4x288xbf16>, vector<288x32xbf16>, vector<4x32xf32> -> vector<4x32xf32>
    %c0_15 = arith.constant 0 : index
    %c0_16 = arith.constant 0 : index
    %20 = vector.load %arg7[%c0_15, %c0_16] : memref<1x32xf32, #tpu.memory_space<vmem>>, vector<1x32xf32>
    %21 = vector.broadcast %20 : vector<1x32xf32> to vector<4x32xf32>
    %22 = arith.addf %19, %21 : vector<4x32xf32>
    %cst_17 = arith.constant 0.000000e+00 : f32
    %23 = vector.broadcast %cst_17 : f32 to vector<4x32xf32>
    %24 = arith.maximumf %22, %23 : vector<4x32xf32>
    %25 = arith.truncf %24 : vector<4x32xf32> to vector<4x32xbf16>
    %c0_18 = arith.constant 0 : index
    %c0_19 = arith.constant 0 : index
    %26 = vector.load %arg8[%c0_18, %c0_19] : memref<32x32xbf16, #tpu.memory_space<vmem>>, vector<32x32xbf16>
    %cst_20 = arith.constant dense<0.000000e+00> : vector<4x32xf32>
    %27 = tpu.matmul %25, %26, %cst_20 {dimension_numbers = #tpu.dot_dimension_numbers<[1], [0], [0], [1], [0, 0, 1, 1], [], []>} : vector<4x32xbf16>, vector<32x32xbf16>, vector<4x32xf32> -> vector<4x32xf32>
    %c0_21 = arith.constant 0 : index
    %c0_22 = arith.constant 0 : index
    %28 = vector.load %arg9[%c0_21, %c0_22] : memref<1x32xf32, #tpu.memory_space<vmem>>, vector<1x32xf32>
    %29 = vector.broadcast %28 : vector<1x32xf32> to vector<4x32xf32>
    %30 = arith.addf %27, %29 : vector<4x32xf32>
    %cst_23 = arith.constant 0.000000e+00 : f32
    %31 = vector.broadcast %cst_23 : f32 to vector<4x32xf32>
    %32 = arith.maximumf %30, %31 : vector<4x32xf32>
    %c0_24 = arith.constant 0 : index
    %c0_25 = arith.constant 0 : index
    %33 = vector.load %arg1[%c0_24, %c0_25] : memref<4x8xf32, #tpu.memory_space<vmem>>, vector<4x8xf32>
    %34 = arith.truncf %33 : vector<4x8xf32> to vector<4x8xbf16>
    %c0_26 = arith.constant 0 : index
    %c0_27 = arith.constant 0 : index
    %35 = vector.load %arg10[%c0_26, %c0_27] : memref<8x320xbf16, #tpu.memory_space<vmem>>, vector<8x320xbf16>
    %cst_28 = arith.constant dense<0.000000e+00> : vector<4x320xf32>
    %36 = tpu.matmul %34, %35, %cst_28 {dimension_numbers = #tpu.dot_dimension_numbers<[1], [0], [0], [1], [0, 0, 1, 1], [], []>} : vector<4x8xbf16>, vector<8x320xbf16>, vector<4x320xf32> -> vector<4x320xf32>
    %37 = arith.truncf %32 : vector<4x32xf32> to vector<4x32xbf16>
    %c0_29 = arith.constant 0 : index
    %c0_30 = arith.constant 0 : index
    %38 = vector.load %arg11[%c0_29, %c0_30] : memref<32x320xbf16, #tpu.memory_space<vmem>>, vector<32x320xbf16>
    %cst_31 = arith.constant dense<0.000000e+00> : vector<4x320xf32>
    %39 = tpu.matmul %37, %38, %cst_31 {dimension_numbers = #tpu.dot_dimension_numbers<[1], [0], [0], [1], [0, 0, 1, 1], [], []>} : vector<4x32xbf16>, vector<32x320xbf16>, vector<4x320xf32> -> vector<4x320xf32>
    %c0_32 = arith.constant 0 : index
    %c0_33 = arith.constant 0 : index
    %40 = vector.load %arg12[%c0_32, %c0_33] : memref<1x320xf32, #tpu.memory_space<vmem>>, vector<1x320xf32>
    %41 = vector.broadcast %40 : vector<1x320xf32> to vector<4x320xf32>
    %42 = arith.addf %39, %41 : vector<4x320xf32>
    %43 = arith.addf %36, %42 : vector<4x320xf32>
    %cst_34 = arith.constant 0.000000e+00 : f32
    %44 = vector.broadcast %cst_34 : f32 to vector<4x320xf32>
    %45 = arith.maximumf %43, %44 : vector<4x320xf32>
    %46 = arith.truncf %45 : vector<4x320xf32> to vector<4x320xbf16>
    %c0_35 = arith.constant 0 : index
    %c0_36 = arith.constant 0 : index
    %47 = vector.load %arg13[%c0_35, %c0_36] : memref<320x320xbf16, #tpu.memory_space<vmem>>, vector<320x320xbf16>
    %cst_37 = arith.constant dense<0.000000e+00> : vector<4x320xf32>
    %48 = tpu.matmul %46, %47, %cst_37 {dimension_numbers = #tpu.dot_dimension_numbers<[1], [0], [0], [1], [0, 0, 1, 1], [], []>} : vector<4x320xbf16>, vector<320x320xbf16>, vector<4x320xf32> -> vector<4x320xf32>
    %c0_38 = arith.constant 0 : index
    %c0_39 = arith.constant 0 : index
    %49 = vector.load %arg14[%c0_38, %c0_39] : memref<1x320xf32, #tpu.memory_space<vmem>>, vector<1x320xf32>
    %50 = vector.broadcast %49 : vector<1x320xf32> to vector<4x320xf32>
    %51 = arith.addf %48, %50 : vector<4x320xf32>
    %cst_40 = arith.constant 0.000000e+00 : f32
    %52 = vector.broadcast %cst_40 : f32 to vector<4x320xf32>
    %53 = arith.maximumf %51, %52 : vector<4x320xf32>
    %54 = arith.truncf %53 : vector<4x320xf32> to vector<4x320xbf16>
    %c0_41 = arith.constant 0 : index
    %c0_42 = arith.constant 0 : index
    %55 = vector.load %arg15[%c0_41, %c0_42] : memref<320x128xbf16, #tpu.memory_space<vmem>>, vector<320x128xbf16>
    %cst_43 = arith.constant dense<0.000000e+00> : vector<4x128xf32>
    %56 = tpu.matmul %54, %55, %cst_43 {dimension_numbers = #tpu.dot_dimension_numbers<[1], [0], [0], [1], [0, 0, 1, 1], [], []>} : vector<4x320xbf16>, vector<320x128xbf16>, vector<4x128xf32> -> vector<4x128xf32>
    %c0_44 = arith.constant 0 : index
    %c0_45 = arith.constant 0 : index
    %57 = vector.load %arg16[%c0_44, %c0_45] : memref<1x128xf32, #tpu.memory_space<vmem>>, vector<1x128xf32>
    %58 = vector.broadcast %57 : vector<1x128xf32> to vector<4x128xf32>
    %59 = arith.addf %56, %58 : vector<4x128xf32>
    %60 = vector.extract_strided_slice %59 {offsets = [0, 0], sizes = [4, 8], strides = [1, 1]} : vector<4x128xf32> to vector<4x8xf32>
    %61 = vector.extract_strided_slice %59 {offsets = [0, 8], sizes = [4, 8], strides = [1, 1]} : vector<4x128xf32> to vector<4x8xf32>
    %62 = vector.extract_strided_slice %59 {offsets = [0, 16], sizes = [4, 8], strides = [1, 1]} : vector<4x128xf32> to vector<4x8xf32>
    %63 = vector.extract_strided_slice %59 {offsets = [0, 24], sizes = [4, 8], strides = [1, 1]} : vector<4x128xf32> to vector<4x8xf32>
    %64 = vector.extract_strided_slice %59 {offsets = [0, 32], sizes = [4, 8], strides = [1, 1]} : vector<4x128xf32> to vector<4x8xf32>
    %65 = vector.extract_strided_slice %59 {offsets = [0, 40], sizes = [4, 8], strides = [1, 1]} : vector<4x128xf32> to vector<4x8xf32>
    %66 = vector.extract_strided_slice %59 {offsets = [0, 48], sizes = [4, 8], strides = [1, 1]} : vector<4x128xf32> to vector<4x8xf32>
    %67 = arith.addf %61, %60 : vector<4x8xf32>
    %cst_46 = arith.constant dense<0.000000e+00> : vector<4xf32>
    %68 = vector.multi_reduction <add>, %60, %cst_46 [1] : vector<4x8xf32> to vector<4xf32>
    %69 = vector.shape_cast %68 : vector<4xf32> to vector<4x1xf32>
    %cst_47 = arith.constant 2.500000e-01 : f32
    %70 = vector.broadcast %cst_47 : f32 to vector<4x1xf32>
    %71 = arith.mulf %69, %70 : vector<4x1xf32>
    %72 = vector.broadcast %71 : vector<4x1xf32> to vector<4x8xf32>
    %73 = arith.subf %67, %72 : vector<4x8xf32>
    %74 = arith.addf %63, %62 : vector<4x8xf32>
    %cst_48 = arith.constant dense<0.000000e+00> : vector<4xf32>
    %75 = vector.multi_reduction <add>, %62, %cst_48 [1] : vector<4x8xf32> to vector<4xf32>
    %76 = vector.shape_cast %75 : vector<4xf32> to vector<4x1xf32>
    %cst_49 = arith.constant 2.500000e-01 : f32
    %77 = vector.broadcast %cst_49 : f32 to vector<4x1xf32>
    %78 = arith.mulf %76, %77 : vector<4x1xf32>
    %79 = vector.broadcast %78 : vector<4x1xf32> to vector<4x8xf32>
    %80 = arith.subf %74, %79 : vector<4x8xf32>
    %cst_50 = arith.constant dense<0xFF800000> : vector<4xf32>
    %81 = vector.multi_reduction <maximumf>, %66, %cst_50 [1] : vector<4x8xf32> to vector<4xf32>
    %82 = vector.shape_cast %81 : vector<4xf32> to vector<4x1xf32>
    %83 = vector.broadcast %82 : vector<4x1xf32> to vector<4x8xf32>
    %84 = arith.subf %66, %83 : vector<4x8xf32>
    %85 = math.exp %84 : vector<4x8xf32>
    %cst_51 = arith.constant dense<0.000000e+00> : vector<4xf32>
    %86 = vector.multi_reduction <add>, %85, %cst_51 [1] : vector<4x8xf32> to vector<4xf32>
    %87 = vector.shape_cast %86 : vector<4xf32> to vector<4x1xf32>
    %88 = tpu.reciprocal %87 {approx = true} : vector<4x1xf32> -> vector<4x1xf32>
    %89 = vector.broadcast %88 : vector<4x1xf32> to vector<4x8xf32>
    %90 = arith.mulf %85, %89 : vector<4x8xf32>
    %91 = vector.broadcast %82 : vector<4x1xf32> to vector<4x8xf32>
    %92 = arith.subf %66, %91 : vector<4x8xf32>
    %93 = math.log %87 : vector<4x1xf32>
    %94 = vector.broadcast %93 : vector<4x1xf32> to vector<4x8xf32>
    %95 = arith.subf %92, %94 : vector<4x8xf32>
    %cst_52 = arith.constant 0.000000e+00 : f32
    %96 = vector.broadcast %cst_52 : f32 to vector<4x128xf32>
    %c0_53 = arith.constant 0 : index
    %c0_54 = arith.constant 0 : index
    %97 = vector.load %arg17[%c0_53, %c0_54] : memref<4x128xf32, #tpu.memory_space<vmem>>, vector<4x128xf32>
    tpu.vector_store %arg17[%c0_53, %c0_54], %96 {strides = array<i32>} : memref<4x128xf32, #tpu.memory_space<vmem>>, vector<4x128xf32>,
    %c0_55 = arith.constant 0 : index
    %c0_56 = arith.constant 0 : index
    %98 = vector.load %arg17[%c0_55, %c0_56] : memref<4x128xf32, #tpu.memory_space<vmem>>, vector<4x8xf32>
    tpu.vector_store %arg17[%c0_55, %c0_56], %73 {strides = array<i32>} : memref<4x128xf32, #tpu.memory_space<vmem>>, vector<4x8xf32>,
    %c0_57 = arith.constant 0 : index
    %c8 = arith.constant 8 : index
    %99 = vector.load %arg17[%c0_57, %c8] : memref<4x128xf32, #tpu.memory_space<vmem>>, vector<4x8xf32>
    tpu.vector_store %arg17[%c0_57, %c8], %80 {strides = array<i32>} : memref<4x128xf32, #tpu.memory_space<vmem>>, vector<4x8xf32>,
    %c0_58 = arith.constant 0 : index
    %c16 = arith.constant 16 : index
    %100 = vector.load %arg17[%c0_58, %c16] : memref<4x128xf32, #tpu.memory_space<vmem>>, vector<4x8xf32>
    tpu.vector_store %arg17[%c0_58, %c16], %64 {strides = array<i32>} : memref<4x128xf32, #tpu.memory_space<vmem>>, vector<4x8xf32>,
    %c0_59 = arith.constant 0 : index
    %c24 = arith.constant 24 : index
    %101 = vector.load %arg17[%c0_59, %c24] : memref<4x128xf32, #tpu.memory_space<vmem>>, vector<4x8xf32>
    tpu.vector_store %arg17[%c0_59, %c24], %65 {strides = array<i32>} : memref<4x128xf32, #tpu.memory_space<vmem>>, vector<4x8xf32>,
    %c0_60 = arith.constant 0 : index
    %c32 = arith.constant 32 : index
    %102 = vector.load %arg17[%c0_60, %c32] : memref<4x128xf32, #tpu.memory_space<vmem>>, vector<4x8xf32>
    tpu.vector_store %arg17[%c0_60, %c32], %90 {strides = array<i32>} : memref<4x128xf32, #tpu.memory_space<vmem>>, vector<4x8xf32>,
    %c0_61 = arith.constant 0 : index
    %c40 = arith.constant 40 : index
    %103 = vector.load %arg17[%c0_61, %c40] : memref<4x128xf32, #tpu.memory_space<vmem>>, vector<4x8xf32>
    tpu.vector_store %arg17[%c0_61, %c40], %95 {strides = array<i32>} : memref<4x128xf32, #tpu.memory_space<vmem>>, vector<4x8xf32>,
    return
  }
}

</mosaic_0001>

<llo_original>
// kernel: forward.1
$region0: #{forward.1}
  #allocation0 [shape = 'u32[]', space=smem, size = 0x4, offset = 0x4, fixed_abs, tag = 'smem constant byte address 0x4 - core index']
  #allocation1 [shape = 'u32[144,128]{1,0:T(1,128)}', space=vmem, size = 0x12000, scoped, tag = 'internal scratch']
  %s0 = inlined_call_operand.vmem [shape: f32[4,768], index: 0, kind: input, shape index: {}]
  %s1 = inlined_call_operand.vmem [shape: f32[4,8], index: 1, kind: input, shape index: {}]
  %s2 = inlined_call_operand.vmem [shape: bf16[768,784], index: 2, kind: input, shape index: {}]
  %s3 = inlined_call_operand.vmem [shape: f32[1,784], index: 3, kind: input, shape index: {}]
  %s4 = inlined_call_operand.vmem [shape: bf16[784,288], index: 4, kind: input, shape index: {}]
  %s5 = inlined_call_operand.vmem [shape: f32[1,288], index: 5, kind: input, shape index: {}]
  %s6 = inlined_call_operand.vmem [shape: bf16[288,32], index: 6, kind: input, shape index: {}]
  %s7 = inlined_call_operand.vmem [shape: f32[1,32], index: 7, kind: input, shape index: {}]
  %s8 = inlined_call_operand.vmem [shape: bf16[32,32], index: 8, kind: input, shape index: {}]
  %s9 = inlined_call_operand.vmem [shape: f32[1,32], index: 9, kind: input, shape index: {}]
  %s10 = inlined_call_operand.vmem [shape: bf16[8,320], index: 10, kind: input, shape index: {}]
  %s11 = inlined_call_operand.vmem [shape: bf16[32,320], index: 11, kind: input, shape index: {}]
  %s12 = inlined_call_operand.vmem [shape: f32[1,320], index: 12, kind: input, shape index: {}]
  %s13 = inlined_call_operand.vmem [shape: bf16[320,320], index: 13, kind: input, shape index: {}]
  %s14 = inlined_call_operand.vmem [shape: f32[1,320], index: 14, kind: input, shape index: {}]
  %s15 = inlined_call_operand.vmem [shape: bf16[320,128], index: 15, kind: input, shape index: {}]
  %s16 = inlined_call_operand.vmem [shape: f32[1,128], index: 16, kind: input, shape index: {}]
  %s17 = inlined_call_operand.vmem [shape: f32[4,128], index: 17, kind: output, shape index: {}]
  %s18 = sld [smem:[#allocation0]]
  $region78: #{forward.1} parent=0
    _
  %s20 = ssub.s32 1, %s18
  %s21 = scalar_select 0, %s20, %s18
  // Predicated region
  $region2: #{forward.1} parent=0 // pred_check
    _
  $region3: #{forward.1} parent=0 // pred_check_branch
    %23 = sbr.rel (0) target = $region5
  $region4: #{forward.1} parent=0 // pred_region
    _
  $region5: #{forward.1} parent=0 // pred_fallthru
    _
  // Predicated region
  $region6: #{forward.1} parent=0 // pred_check
    _
  $region7: #{forward.1} parent=0 // pred_check_branch
    %25 = sbr.rel (0) target = $region9
  $region8: #{forward.1} parent=0 // pred_region
    _
  $region9: #{forward.1} parent=0 // pred_fallthru
    _
  // Predicated region
  $region10: #{forward.1} parent=0 // pred_check
    _
  $region11: #{forward.1} parent=0 // pred_check_branch
    %27 = sbr.rel (0) target = $region13
  $region12: #{forward.1} parent=0 // pred_region
    _
  $region13: #{forward.1} parent=0 // pred_fallthru
    _
  // Predicated region
  $region14: #{forward.1} parent=0 // pred_check
    _
  $region15: #{forward.1} parent=0 // pred_check_branch
    %29 = sbr.rel (0) target = $region17
  $region16: #{forward.1} parent=0 // pred_region
    _
  $region17: #{forward.1} parent=0 // pred_fallthru
    _
  // Predicated region
  $region18: #{forward.1} parent=0 // pred_check
    _
  $region19: #{forward.1} parent=0 // pred_check_branch
    %31 = sbr.rel (0) target = $region21
  $region20: #{forward.1} parent=0 // pred_region
    _
  $region21: #{forward.1} parent=0 // pred_fallthru
    _
  // Predicated region
  $region22: #{forward.1} parent=0 // pred_check
    _
  $region23: #{forward.1} parent=0 // pred_check_branch
    %33 = sbr.rel (0) target = $region25
  $region24: #{forward.1} parent=0 // pred_region
    _
  $region25: #{forward.1} parent=0 // pred_fallthru
    _
  // Predicated region
  $region26: #{forward.1} parent=0 // pred_check
    _
  $region27: #{forward.1} parent=0 // pred_check_branch
    %35 = sbr.rel (0) target = $region29
  $region28: #{forward.1} parent=0 // pred_region
    _
  $region29: #{forward.1} parent=0 // pred_fallthru
    _
  // Predicated region
  $region30: #{forward.1} parent=0 // pred_check
    _
  $region31: #{forward.1} parent=0 // pred_check_branch
    %37 = sbr.rel (0) target = $region33
  $region32: #{forward.1} parent=0 // pred_region
    _
  $region33: #{forward.1} parent=0 // pred_fallthru
    _
  // Predicated region
  $region34: #{forward.1} parent=0 // pred_check
    _
  $region35: #{forward.1} parent=0 // pred_check_branch
    %39 = sbr.rel (0) target = $region37
  $region36: #{forward.1} parent=0 // pred_region
    _
  $region37: #{forward.1} parent=0 // pred_fallthru
    _
  // Predicated region
  $region38: #{forward.1} parent=0 // pred_check
    _
  $region39: #{forward.1} parent=0 // pred_check_branch
    %41 = sbr.rel (0) target = $region41
  $region40: #{forward.1} parent=0 // pred_region
    _
  $region41: #{forward.1} parent=0 // pred_fallthru
    _
  // Predicated region
  $region42: #{forward.1} parent=0 // pred_check
    _
  $region43: #{forward.1} parent=0 // pred_check_branch
    %43 = sbr.rel (0) target = $region45
  $region44: #{forward.1} parent=0 // pred_region
    _
  $region45: #{forward.1} parent=0 // pred_fallthru
    _
  // Predicated region
  $region46: #{forward.1} parent=0 // pred_check
    _
  $region47: #{forward.1} parent=0 // pred_check_branch
    %45 = sbr.rel (0) target = $region49
  $region48: #{forward.1} parent=0 // pred_region
    _
  $region49: #{forward.1} parent=0 // pred_fallthru
    _
  // Predicated region
  $region50: #{forward.1} parent=0 // pred_check
    _
  $region51: #{forward.1} parent=0 // pred_check_branch
    %47 = sbr.rel (0) target = $region53
  $region52: #{forward.1} parent=0 // pred_region
    _
  $region53: #{forward.1} parent=0 // pred_fallthru
    _
  // Predicated region
  $region54: #{forward.1} parent=0 // pred_check
    _
  $region55: #{forward.1} parent=0 // pred_check_branch
    %49 = sbr.rel (0) target = $region57
  $region56: #{forward.1} parent=0 // pred_region
    _
  $region57: #{forward.1} parent=0 // pred_fallthru
    _
  // Predicated region
  $region58: #{forward.1} parent=0 // pred_check
    _
  $region59: #{forward.1} parent=0 // pred_check_branch
    %51 = sbr.rel (0) target = $region61
  $region60: #{forward.1} parent=0 // pred_region
    _
  $region61: #{forward.1} parent=0 // pred_fallthru
    _
  // Predicated region
  $region62: #{forward.1} parent=0 // pred_check
    _
  $region63: #{forward.1} parent=0 // pred_check_branch
    %53 = sbr.rel (0) target = $region65
  $region64: #{forward.1} parent=0 // pred_region
    _
  $region65: #{forward.1} parent=0 // pred_fallthru
    _
  // Predicated region
  $region66: #{forward.1} parent=0 // pred_check
    _
  $region67: #{forward.1} parent=0 // pred_check_branch
    %55 = sbr.rel (0) target = $region69
  $region68: #{forward.1} parent=0 // pred_region
    _
  $region69: #{forward.1} parent=0 // pred_fallthru
    _
  %v57 = vld [vmem:[%s0] sm:$0xff]
  %v58 = vld [vmem:[%s0 + $0x8] sm:$0xff]
  %v59 = vld [vmem:[%s0 + $0x10] sm:$0xff]
  %v63 = vcombine.high %v57, %v57
  %v64 = vcombine.high %v58, %v58
  %v65 = vcombine.high %v59, %v59
  %v69 = vpack.c.bf16 %v57, %v57
  %v70 = vpack.c.bf16 %v63, %v63
  %v71 = vpack.c.bf16 %v58, %v58
  %v72 = vpack.c.bf16 %v64, %v64
  %v73 = vpack.c.bf16 %v59, %v59
  %v74 = vpack.c.bf16 %v65, %v65
  %v75 = vld [vmem:[%s2] sm:$0xff]
  %v76 = vld [vmem:[%s2 + $0x8] sm:$0xff]
  %v77 = vld [vmem:[%s2 + $0x10] sm:$0xff]
  %v78 = vld [vmem:[%s2 + $0x18] sm:$0xf]
  %v79 = vld [vmem:[%s2 + $0x1c] sm:$0xff]
  %v80 = vld [vmem:[%s2 + $0x24] sm:$0xff]
  %v81 = vld [vmem:[%s2 + $0x2c] sm:$0xff]
  %v82 = vld [vmem:[%s2 + $0x34] sm:$0xf]
  %v83 = vld [vmem:[%s2 + $0x38] sm:$0xff]
  %v84 = vld [vmem:[%s2 + $0x40] sm:$0xff]
  %v85 = vld [vmem:[%s2 + $0x48] sm:$0xff]
  %v86 = vld [vmem:[%s2 + $0x50] sm:$0xf]
  %v87 = vld [vmem:[%s2 + $0x54] sm:$0xff]
  %v88 = vld [vmem:[%s2 + $0x5c] sm:$0xff]
  %v89 = vld [vmem:[%s2 + $0x64] sm:$0xff]
  %v90 = vld [vmem:[%s2 + $0x6c] sm:$0xf]
  %v91 = vld [vmem:[%s2 + $0x70] sm:$0xff]
  %v92 = vld [vmem:[%s2 + $0x78] sm:$0xff]
  %v93 = vld [vmem:[%s2 + $0x80] sm:$0xff]
  %v94 = vld [vmem:[%s2 + $0x88] sm:$0xf]
  %v95 = vld [vmem:[%s2 + $0x8c] sm:$0xff]
  %v96 = vld [vmem:[%s2 + $0x94] sm:$0xff]
  %v97 = vld [vmem:[%s2 + $0x9c] sm:$0xff]
  %v98 = vld [vmem:[%s2 + $0xa4] sm:$0xf]
  %v99 = vld [vmem:[%s2 + $0xa8] sm:$0xff]
  %v100 = vld [vmem:[%s2 + $0xb0] sm:$0xff]
  %v101 = vld [vmem:[%s2 + $0xb8] sm:$0xff]
  %v102 = vld [vmem:[%s2 + $0xc0] sm:$0xf]
  %v103 = vld [vmem:[%s2 + $0xc4] sm:$0xff]
  %v104 = vld [vmem:[%s2 + $0xcc] sm:$0xff]
  %v105 = vld [vmem:[%s2 + $0xd4] sm:$0xff]
  %v106 = vld [vmem:[%s2 + $0xdc] sm:$0xf]
  %v107 = vld [vmem:[%s2 + $0xe0] sm:$0xff]
  %v108 = vld [vmem:[%s2 + $0xe8] sm:$0xff]
  %v109 = vld [vmem:[%s2 + $0xf0] sm:$0xff]
  %v110 = vld [vmem:[%s2 + $0xf8] sm:$0xf]
  %v111 = vld [vmem:[%s2 + $0xfc] sm:$0xff]
  %v112 = vld [vmem:[%s2 + $0x104] sm:$0xff]
  %v113 = vld [vmem:[%s2 + $0x10c] sm:$0xff]
  %v114 = vld [vmem:[%s2 + $0x114] sm:$0xf]
  %v115 = vld [vmem:[%s2 + $0x118] sm:$0xff]
  %v116 = vld [vmem:[%s2 + $0x120] sm:$0xff]
  %v117 = vld [vmem:[%s2 + $0x128] sm:$0xff]
  %v118 = vld [vmem:[%s2 + $0x130] sm:$0xf]
  %v119 = vld [vmem:[%s2 + $0x134] sm:$0xff]
  %v120 = vld [vmem:[%s2 + $0x13c] sm:$0xff]
  %v121 = vld [vmem:[%s2 + $0x144] sm:$0xff]
  %v122 = vld [vmem:[%s2 + $0x14c] sm:$0xf]
  %v123 = vld [vmem:[%s2 + $0x150] sm:$0xff]
  %v124 = vld [vmem:[%s2 + $0x158] sm:$0xff]
  %v125 = vld [vmem:[%s2 + $0x160] sm:$0xff]
  %v126 = vld [vmem:[%s2 + $0x168] sm:$0xf]
  %v127 = vld [vmem:[%s2 + $0x16c] sm:$0xff]
  %v128 = vld [vmem:[%s2 + $0x174] sm:$0xff]
  %v129 = vld [vmem:[%s2 + $0x17c] sm:$0xff]
  %v130 = vld [vmem:[%s2 + $0x184] sm:$0xf]
  %v131 = vld [vmem:[%s2 + $0x188] sm:$0xff]
  %v132 = vld [vmem:[%s2 + $0x190] sm:$0xff]
  %v133 = vld [vmem:[%s2 + $0x198] sm:$0xff]
  %v134 = vld [vmem:[%s2 + $0x1a0] sm:$0xf]
  %v135 = vld [vmem:[%s2 + $0x1a4] sm:$0xff]
  %v136 = vld [vmem:[%s2 + $0x1ac] sm:$0xff]
  %v137 = vld [vmem:[%s2 + $0x1b4] sm:$0xff]
  %v138 = vld [vmem:[%s2 + $0x1bc] sm:$0xf]
  %v139 = vld [vmem:[%s2 + $0x1c0] sm:$0xff]
  %v140 = vld [vmem:[%s2 + $0x1c8] sm:$0xff]
  %v141 = vld [vmem:[%s2 + $0x1d0] sm:$0xff]
  %v142 = vld [vmem:[%s2 + $0x1d8] sm:$0xf]
  %v143 = vld [vmem:[%s2 + $0x1dc] sm:$0xff]
  %v144 = vld [vmem:[%s2 + $0x1e4] sm:$0xff]
  %v145 = vld [vmem:[%s2 + $0x1ec] sm:$0xff]
  %v146 = vld [vmem:[%s2 + $0x1f4] sm:$0xf]
  %v147 = vld [vmem:[%s2 + $0x1f8] sm:$0xff]
  %v148 = vld [vmem:[%s2 + $0x200] sm:$0xff]
  %v149 = vld [vmem:[%s2 + $0x208] sm:$0xff]
  %v150 = vld [vmem:[%s2 + $0x210] sm:$0xf]
  %v151 = vld [vmem:[%s2 + $0x214] sm:$0xff]
  %v152 = vld [vmem:[%s2 + $0x21c] sm:$0xff]
  %v153 = vld [vmem:[%s2 + $0x224] sm:$0xff]
  %v154 = vld [vmem:[%s2 + $0x22c] sm:$0xf]
  %v155 = vld [vmem:[%s2 + $0x230] sm:$0xff]
  %v156 = vld [vmem:[%s2 + $0x238] sm:$0xff]
  %v157 = vld [vmem:[%s2 + $0x240] sm:$0xff]
  %v158 = vld [vmem:[%s2 + $0x248] sm:$0xf]
  %v159 = vld [vmem:[%s2 + $0x24c] sm:$0xff]
  %v160 = vld [vmem:[%s2 + $0x254] sm:$0xff]
  %v161 = vld [vmem:[%s2 + $0x25c] sm:$0xff]
  %v162 = vld [vmem:[%s2 + $0x264] sm:$0xf]
  %v163 = vld [vmem:[%s2 + $0x268] sm:$0xff]
  %v164 = vld [vmem:[%s2 + $0x270] sm:$0xff]
  %v165 = vld [vmem:[%s2 + $0x278] sm:$0xff]
  %v166 = vld [vmem:[%s2 + $0x280] sm:$0xf]
  %v167 = vld [vmem:[%s2 + $0x284] sm:$0xff]
  %v168 = vld [vmem:[%s2 + $0x28c] sm:$0xff]
  %v169 = vld [vmem:[%s2 + $0x294] sm:$0xff]
  %v170 = vld [vmem:[%s2 + $0x29c] sm:$0xf]
  %v171 = vld [vmem:[%s2 + $0x2a0] sm:$0xff]
  %v172 = vld [vmem:[%s2 + $0x2a8] sm:$0xff]
  %v173 = vld [vmem:[%s2 + $0x2b0] sm:$0xff]
  %v174 = vld [vmem:[%s2 + $0x2b8] sm:$0xf]
  %v175 = vld [vmem:[%s2 + $0x2bc] sm:$0xff]
  %v176 = vld [vmem:[%s2 + $0x2c4] sm:$0xff]
  %v177 = vld [vmem:[%s2 + $0x2cc] sm:$0xff]
  %v178 = vld [vmem:[%s2 + $0x2d4] sm:$0xf]
  %v179 = vld [vmem:[%s2 + $0x2d8] sm:$0xff]
  %v180 = vld [vmem:[%s2 + $0x2e0] sm:$0xff]
  %v181 = vld [vmem:[%s2 + $0x2e8] sm:$0xff]
  %v182 = vld [vmem:[%s2 + $0x2f0] sm:$0xf]
  %v183 = vld [vmem:[%s2 + $0x2f4] sm:$0xff]
  %v184 = vld [vmem:[%s2 + $0x2fc] sm:$0xff]
  %v185 = vld [vmem:[%s2 + $0x304] sm:$0xff]
  %v186 = vld [vmem:[%s2 + $0x30c] sm:$0xf]
  %v187 = vld [vmem:[%s2 + $0x310] sm:$0xff]
  %v188 = vld [vmem:[%s2 + $0x318] sm:$0xff]
  %v189 = vld [vmem:[%s2 + $0x320] sm:$0xff]
  %v190 = vld [vmem:[%s2 + $0x328] sm:$0xf]
  %v191 = vld [vmem:[%s2 + $0x32c] sm:$0xff]
  %v192 = vld [vmem:[%s2 + $0x334] sm:$0xff]
  %v193 = vld [vmem:[%s2 + $0x33c] sm:$0xff]
  %v194 = vld [vmem:[%s2 + $0x344] sm:$0xf]
  %v195 = vld [vmem:[%s2 + $0x348] sm:$0xff]
  %v196 = vld [vmem:[%s2 + $0x350] sm:$0xff]
  %v197 = vld [vmem:[%s2 + $0x358] sm:$0xff]
  %v198 = vld [vmem:[%s2 + $0x360] sm:$0xf]
  %v199 = vld [vmem:[%s2 + $0x364] sm:$0xff]
  %v200 = vld [vmem:[%s2 + $0x36c] sm:$0xff]
  %v201 = vld [vmem:[%s2 + $0x374] sm:$0xff]
  %v202 = vld [vmem:[%s2 + $0x37c] sm:$0xf]
  %v203 = vld [vmem:[%s2 + $0x380] sm:$0xff]
  %v204 = vld [vmem:[%s2 + $0x388] sm:$0xff]
  %v205 = vld [vmem:[%s2 + $0x390] sm:$0xff]
  %v206 = vld [vmem:[%s2 + $0x398] sm:$0xf]
  %v207 = vld [vmem:[%s2 + $0x39c] sm:$0xff]
  %v208 = vld [vmem:[%s2 + $0x3a4] sm:$0xff]
  %v209 = vld [vmem:[%s2 + $0x3ac] sm:$0xff]
  %v210 = vld [vmem:[%s2 + $0x3b4] sm:$0xf]
  %v211 = vld [vmem:[%s2 + $0x3b8] sm:$0xff]
  %v212 = vld [vmem:[%s2 + $0x3c0] sm:$0xff]
  %v213 = vld [vmem:[%s2 + $0x3c8] sm:$0xff]
  %v214 = vld [vmem:[%s2 + $0x3d0] sm:$0xf]
  %v215 = vld [vmem:[%s2 + $0x3d4] sm:$0xff]
  %v216 = vld [vmem:[%s2 + $0x3dc] sm:$0xff]
  %v217 = vld [vmem:[%s2 + $0x3e4] sm:$0xff]
  %v218 = vld [vmem:[%s2 + $0x3ec] sm:$0xf]
  %v219 = vld [vmem:[%s2 + $0x3f0] sm:$0xff]
  %v220 = vld [vmem:[%s2 + $0x3f8] sm:$0xff]
  %v221 = vld [vmem:[%s2 + $0x400] sm:$0xff]
  %v222 = vld [vmem:[%s2 + $0x408] sm:$0xf]
  %v223 = vld [vmem:[%s2 + $0x40c] sm:$0xff]
  %v224 = vld [vmem:[%s2 + $0x414] sm:$0xff]
  %v225 = vld [vmem:[%s2 + $0x41c] sm:$0xff]
  %v226 = vld [vmem:[%s2 + $0x424] sm:$0xf]
  %v227 = vld [vmem:[%s2 + $0x428] sm:$0xff]
  %v228 = vld [vmem:[%s2 + $0x430] sm:$0xff]
  %v229 = vld [vmem:[%s2 + $0x438] sm:$0xff]
  %v230 = vld [vmem:[%s2 + $0x440] sm:$0xf]
  %v231 = vld [vmem:[%s2 + $0x444] sm:$0xff]
  %v232 = vld [vmem:[%s2 + $0x44c] sm:$0xff]
  %v233 = vld [vmem:[%s2 + $0x454] sm:$0xff]
  %v234 = vld [vmem:[%s2 + $0x45c] sm:$0xf]
  %v235 = vld [vmem:[%s2 + $0x460] sm:$0xff]
  %v236 = vld [vmem:[%s2 + $0x468] sm:$0xff]
  %v237 = vld [vmem:[%s2 + $0x470] sm:$0xff]
  %v238 = vld [vmem:[%s2 + $0x478] sm:$0xf]
  %v239 = vld [vmem:[%s2 + $0x47c] sm:$0xff]
  %v240 = vld [vmem:[%s2 + $0x484] sm:$0xff]
  %v241 = vld [vmem:[%s2 + $0x48c] sm:$0xff]
  %v242 = vld [vmem:[%s2 + $0x494] sm:$0xf]
  %v243 = vld [vmem:[%s2 + $0x498] sm:$0xff]
  %v244 = vld [vmem:[%s2 + $0x4a0] sm:$0xff]
  %v245 = vld [vmem:[%s2 + $0x4a8] sm:$0xff]
  %v246 = vld [vmem:[%s2 + $0x4b0] sm:$0xf]
  %v247 = vld [vmem:[%s2 + $0x4b4] sm:$0xff]
  %v248 = vld [vmem:[%s2 + $0x4bc] sm:$0xff]
  %v249 = vld [vmem:[%s2 + $0x4c4] sm:$0xff]
  %v250 = vld [vmem:[%s2 + $0x4cc] sm:$0xf]
  %v251 = vld [vmem:[%s2 + $0x4d0] sm:$0xff]
  %v252 = vld [vmem:[%s2 + $0x4d8] sm:$0xff]
  %v253 = vld [vmem:[%s2 + $0x4e0] sm:$0xff]
  %v254 = vld [vmem:[%s2 + $0x4e8] sm:$0xf]
  %v255 = vld [vmem:[%s2 + $0x4ec] sm:$0xff]
  %v256 = vld [vmem:[%s2 + $0x4f4] sm:$0xff]
  %v257 = vld [vmem:[%s2 + $0x4fc] sm:$0xff]
  %v258 = vld [vmem:[%s2 + $0x504] sm:$0xf]
  %v259 = vld [vmem:[%s2 + $0x508] sm:$0xff]
  %v260 = vld [vmem:[%s2 + $0x510] sm:$0xff]
  %v261 = vld [vmem:[%s2 + $0x518] sm:$0xff]
  %v262 = vld [vmem:[%s2 + $0x520] sm:$0xf]
  %v263 = vld [vmem:[%s2 + $0x524] sm:$0xff]
  %v264 = vld [vmem:[%s2 + $0x52c] sm:$0xff]
  %v265 = vld [vmem:[%s2 + $0x534] sm:$0xff]
  %v266 = vld [vmem:[%s2 + $0x53c] sm:$0xf]
  %v267 = vld [vmem:[%s2 + $0x540] sm:$0xff]
  %v268 = vld [vmem:[%s2 + $0x548] sm:$0xff]
  %v269 = vld [vmem:[%s2 + $0x550] sm:$0xff]
  %v270 = vld [vmem:[%s2 + $0x558] sm:$0xf]
  %v271 = vld [vmem:[%s2 + $0x55c] sm:$0xff]
  %v272 = vld [vmem:[%s2 + $0x564] sm:$0xff]
  %v273 = vld [vmem:[%s2 + $0x56c] sm:$0xff]
  %v274 = vld [vmem:[%s2 + $0x574] sm:$0xf]
  %v275 = vld [vmem:[%s2 + $0x578] sm:$0xff]
  %v276 = vld [vmem:[%s2 + $0x580] sm:$0xff]
  %v277 = vld [vmem:[%s2 + $0x588] sm:$0xff]
  %v278 = vld [vmem:[%s2 + $0x590] sm:$0xf]
  %v279 = vld [vmem:[%s2 + $0x594] sm:$0xff]
  %v280 = vld [vmem:[%s2 + $0x59c] sm:$0xff]
  %v281 = vld [vmem:[%s2 + $0x5a4] sm:$0xff]
  %v282 = vld [vmem:[%s2 + $0x5ac] sm:$0xf]
  %v283 = vld [vmem:[%s2 + $0x5b0] sm:$0xff]
  %v284 = vld [vmem:[%s2 + $0x5b8] sm:$0xff]
  %v285 = vld [vmem:[%s2 + $0x5c0] sm:$0xff]
  %v286 = vld [vmem:[%s2 + $0x5c8] sm:$0xf]
  %v287 = vld [vmem:[%s2 + $0x5cc] sm:$0xff]
  %v288 = vld [vmem:[%s2 + $0x5d4] sm:$0xff]
  %v289 = vld [vmem:[%s2 + $0x5dc] sm:$0xff]
  %v290 = vld [vmem:[%s2 + $0x5e4] sm:$0xf]
  %v291 = vld [vmem:[%s2 + $0x5e8] sm:$0xff]
  %v292 = vld [vmem:[%s2 + $0x5f0] sm:$0xff]
  %v293 = vld [vmem:[%s2 + $0x5f8] sm:$0xff]
  %v294 = vld [vmem:[%s2 + $0x600] sm:$0xf]
  %v295 = vld [vmem:[%s2 + $0x604] sm:$0xff]
  %v296 = vld [vmem:[%s2 + $0x60c] sm:$0xff]
  %v297 = vld [vmem:[%s2 + $0x614] sm:$0xff]
  %v298 = vld [vmem:[%s2 + $0x61c] sm:$0xf]
  %v299 = vld [vmem:[%s2 + $0x620] sm:$0xff]
  %v300 = vld [vmem:[%s2 + $0x628] sm:$0xff]
  %v301 = vld [vmem:[%s2 + $0x630] sm:$0xff]
  %v302 = vld [vmem:[%s2 + $0x638] sm:$0xf]
  %v303 = vld [vmem:[%s2 + $0x63c] sm:$0xff]
  %v304 = vld [vmem:[%s2 + $0x644] sm:$0xff]
  %v305 = vld [vmem:[%s2 + $0x64c] sm:$0xff]
  %v306 = vld [vmem:[%s2 + $0x654] sm:$0xf]
  %v307 = vld [vmem:[%s2 + $0x658] sm:$0xff]
  %v308 = vld [vmem:[%s2 + $0x660] sm:$0xff]
  %v309 = vld [vmem:[%s2 + $0x668] sm:$0xff]
  %v310 = vld [vmem:[%s2 + $0x670] sm:$0xf]
  %v311 = vld [vmem:[%s2 + $0x674] sm:$0xff]
  %v312 = vld [vmem:[%s2 + $0x67c] sm:$0xff]
  %v313 = vld [vmem:[%s2 + $0x684] sm:$0xff]
  %v314 = vld [vmem:[%s2 + $0x68c] sm:$0xf]
  %v315 = vld [vmem:[%s2 + $0x690] sm:$0xff]
  %v316 = vld [vmem:[%s2 + $0x698] sm:$0xff]
  %v317 = vld [vmem:[%s2 + $0x6a0] sm:$0xff]
  %v318 = vld [vmem:[%s2 + $0x6a8] sm:$0xf]
  %v319 = vld [vmem:[%s2 + $0x6ac] sm:$0xff]
  %v320 = vld [vmem:[%s2 + $0x6b4] sm:$0xff]
  %v321 = vld [vmem:[%s2 + $0x6bc] sm:$0xff]
  %v322 = vld [vmem:[%s2 + $0x6c4] sm:$0xf]
  %v323 = vld [vmem:[%s2 + $0x6c8] sm:$0xff]
  %v324 = vld [vmem:[%s2 + $0x6d0] sm:$0xff]
  %v325 = vld [vmem:[%s2 + $0x6d8] sm:$0xff]
  %v326 = vld [vmem:[%s2 + $0x6e0] sm:$0xf]
  %v327 = vld [vmem:[%s2 + $0x6e4] sm:$0xff]
  %v328 = vld [vmem:[%s2 + $0x6ec] sm:$0xff]
  %v329 = vld [vmem:[%s2 + $0x6f4] sm:$0xff]
  %v330 = vld [vmem:[%s2 + $0x6fc] sm:$0xf]
  %v331 = vld [vmem:[%s2 + $0x700] sm:$0xff]
  %v332 = vld [vmem:[%s2 + $0x708] sm:$0xff]
  %v333 = vld [vmem:[%s2 + $0x710] sm:$0xff]
  %v334 = vld [vmem:[%s2 + $0x718] sm:$0xf]
  %v335 = vld [vmem:[%s2 + $0x71c] sm:$0xff]
  %v336 = vld [vmem:[%s2 + $0x724] sm:$0xff]
  %v337 = vld [vmem:[%s2 + $0x72c] sm:$0xff]
  %v338 = vld [vmem:[%s2 + $0x734] sm:$0xf]
  %v339 = vld [vmem:[%s2 + $0x738] sm:$0xff]
  %v340 = vld [vmem:[%s2 + $0x740] sm:$0xff]
  %v341 = vld [vmem:[%s2 + $0x748] sm:$0xff]
  %v342 = vld [vmem:[%s2 + $0x750] sm:$0xf]
  %v343 = vld [vmem:[%s2 + $0x754] sm:$0xff]
  %v344 = vld [vmem:[%s2 + $0x75c] sm:$0xff]
  %v345 = vld [vmem:[%s2 + $0x764] sm:$0xff]
  %v346 = vld [vmem:[%s2 + $0x76c] sm:$0xf]
  %v347 = vld [vmem:[%s2 + $0x770] sm:$0xff]
  %v348 = vld [vmem:[%s2 + $0x778] sm:$0xff]
  %v349 = vld [vmem:[%s2 + $0x780] sm:$0xff]
  %v350 = vld [vmem:[%s2 + $0x788] sm:$0xf]
  %v351 = vld [vmem:[%s2 + $0x78c] sm:$0xff]
  %v352 = vld [vmem:[%s2 + $0x794] sm:$0xff]
  %v353 = vld [vmem:[%s2 + $0x79c] sm:$0xff]
  %v354 = vld [vmem:[%s2 + $0x7a4] sm:$0xf]
  %v355 = vld [vmem:[%s2 + $0x7a8] sm:$0xff]
  %v356 = vld [vmem:[%s2 + $0x7b0] sm:$0xff]
  %v357 = vld [vmem:[%s2 + $0x7b8] sm:$0xff]
  %v358 = vld [vmem:[%s2 + $0x7c0] sm:$0xf]
  %v359 = vld [vmem:[%s2 + $0x7c4] sm:$0xff]
  %v360 = vld [vmem:[%s2 + $0x7cc] sm:$0xff]
  %v361 = vld [vmem:[%s2 + $0x7d4] sm:$0xff]
  %v362 = vld [vmem:[%s2 + $0x7dc] sm:$0xf]
  %v363 = vld [vmem:[%s2 + $0x7e0] sm:$0xff]
  %v364 = vld [vmem:[%s2 + $0x7e8] sm:$0xff]
  %v365 = vld [vmem:[%s2 + $0x7f0] sm:$0xff]
  %v366 = vld [vmem:[%s2 + $0x7f8] sm:$0xf]
  %v367 = vld [vmem:[%s2 + $0x7fc] sm:$0xff]
  %v368 = vld [vmem:[%s2 + $0x804] sm:$0xff]
  %v369 = vld [vmem:[%s2 + $0x80c] sm:$0xff]
  %v370 = vld [vmem:[%s2 + $0x814] sm:$0xf]
  %v371 = vld [vmem:[%s2 + $0x818] sm:$0xff]
  %v372 = vld [vmem:[%s2 + $0x820] sm:$0xff]
  %v373 = vld [vmem:[%s2 + $0x828] sm:$0xff]
  %v374 = vld [vmem:[%s2 + $0x830] sm:$0xf]
  %v375 = vld [vmem:[%s2 + $0x834] sm:$0xff]
  %v376 = vld [vmem:[%s2 + $0x83c] sm:$0xff]
  %v377 = vld [vmem:[%s2 + $0x844] sm:$0xff]
  %v378 = vld [vmem:[%s2 + $0x84c] sm:$0xf]
  %v379 = vld [vmem:[%s2 + $0x850] sm:$0xff]
  %v380 = vld [vmem:[%s2 + $0x858] sm:$0xff]
  %v381 = vld [vmem:[%s2 + $0x860] sm:$0xff]
  %v382 = vld [vmem:[%s2 + $0x868] sm:$0xf]
  %v383 = vld [vmem:[%s2 + $0x86c] sm:$0xff]
  %v384 = vld [vmem:[%s2 + $0x874] sm:$0xff]
  %v385 = vld [vmem:[%s2 + $0x87c] sm:$0xff]
  %v386 = vld [vmem:[%s2 + $0x884] sm:$0xf]
  %v387 = vld [vmem:[%s2 + $0x888] sm:$0xff]
  %v388 = vld [vmem:[%s2 + $0x890] sm:$0xff]
  %v389 = vld [vmem:[%s2 + $0x898] sm:$0xff]
  %v390 = vld [vmem:[%s2 + $0x8a0] sm:$0xf]
  %v391 = vld [vmem:[%s2 + $0x8a4] sm:$0xff]
  %v392 = vld [vmem:[%s2 + $0x8ac] sm:$0xff]
  %v393 = vld [vmem:[%s2 + $0x8b4] sm:$0xff]
  %v394 = vld [vmem:[%s2 + $0x8bc] sm:$0xf]
  %v395 = vld [vmem:[%s2 + $0x8c0] sm:$0xff]
  %v396 = vld [vmem:[%s2 + $0x8c8] sm:$0xff]
  %v397 = vld [vmem:[%s2 + $0x8d0] sm:$0xff]
  %v398 = vld [vmem:[%s2 + $0x8d8] sm:$0xf]
  %v399 = vld [vmem:[%s2 + $0x8dc] sm:$0xff]
  %v400 = vld [vmem:[%s2 + $0x8e4] sm:$0xff]
  %v401 = vld [vmem:[%s2 + $0x8ec] sm:$0xff]
  %v402 = vld [vmem:[%s2 + $0x8f4] sm:$0xf]
  %v403 = vld [vmem:[%s2 + $0x8f8] sm:$0xff]
  %v404 = vld [vmem:[%s2 + $0x900] sm:$0xff]
  %v405 = vld [vmem:[%s2 + $0x908] sm:$0xff]
  %v406 = vld [vmem:[%s2 + $0x910] sm:$0xf]
  %v407 = vld [vmem:[%s2 + $0x914] sm:$0xff]
  %v408 = vld [vmem:[%s2 + $0x91c] sm:$0xff]
  %v409 = vld [vmem:[%s2 + $0x924] sm:$0xff]
  %v410 = vld [vmem:[%s2 + $0x92c] sm:$0xf]
  %v411 = vld [vmem:[%s2 + $0x930] sm:$0xff]
  %v412 = vld [vmem:[%s2 + $0x938] sm:$0xff]
  %v413 = vld [vmem:[%s2 + $0x940] sm:$0xff]
  %v414 = vld [vmem:[%s2 + $0x948] sm:$0xf]
  %v415 = vld [vmem:[%s2 + $0x94c] sm:$0xff]
  %v416 = vld [vmem:[%s2 + $0x954] sm:$0xff]
  %v417 = vld [vmem:[%s2 + $0x95c] sm:$0xff]
  %v418 = vld [vmem:[%s2 + $0x964] sm:$0xf]
  %v419 = vld [vmem:[%s2 + $0x968] sm:$0xff]
  %v420 = vld [vmem:[%s2 + $0x970] sm:$0xff]
  %v421 = vld [vmem:[%s2 + $0x978] sm:$0xff]
  %v422 = vld [vmem:[%s2 + $0x980] sm:$0xf]
  %v423 = vld [vmem:[%s2 + $0x984] sm:$0xff]
  %v424 = vld [vmem:[%s2 + $0x98c] sm:$0xff]
  %v425 = vld [vmem:[%s2 + $0x994] sm:$0xff]
  %v426 = vld [vmem:[%s2 + $0x99c] sm:$0xf]
  %v427 = vld [vmem:[%s2 + $0x9a0] sm:$0xff]
  %v428 = vld [vmem:[%s2 + $0x9a8] sm:$0xff]
  %v429 = vld [vmem:[%s2 + $0x9b0] sm:$0xff]
  %v430 = vld [vmem:[%s2 + $0x9b8] sm:$0xf]
  %v431 = vld [vmem:[%s2 + $0x9bc] sm:$0xff]
  %v432 = vld [vmem:[%s2 + $0x9c4] sm:$0xff]
  %v433 = vld [vmem:[%s2 + $0x9cc] sm:$0xff]
  %v434 = vld [vmem:[%s2 + $0x9d4] sm:$0xf]
  %v435 = vld [vmem:[%s2 + $0x9d8] sm:$0xff]
  %v436 = vld [vmem:[%s2 + $0x9e0] sm:$0xff]
  %v437 = vld [vmem:[%s2 + $0x9e8] sm:$0xff]
  %v438 = vld [vmem:[%s2 + $0x9f0] sm:$0xf]
  %v439 = vld [vmem:[%s2 + $0x9f4] sm:$0xff]
  %v440 = vld [vmem:[%s2 + $0x9fc] sm:$0xff]
  %v441 = vld [vmem:[%s2 + $0xa04] sm:$0xff]
  %v442 = vld [vmem:[%s2 + $0xa0c] sm:$0xf]
  %v443 = vld [vmem:[%s2 + $0xa10] sm:$0xff]
  %v444 = vld [vmem:[%s2 + $0xa18] sm:$0xff]
  %v445 = vld [vmem:[%s2 + $0xa20] sm:$0xff]
  %v446 = vld [vmem:[%s2 + $0xa28] sm:$0xf]
  %v447 = vld [vmem:[%s2 + $0xa2c] sm:$0xff]
  %v448 = vld [vmem:[%s2 + $0xa34] sm:$0xff]
  %v449 = vld [vmem:[%s2 + $0xa3c] sm:$0xff]
  %v450 = vld [vmem:[%s2 + $0xa44] sm:$0xf]
  %v451 = vld [vmem:[%s2 + $0xa48] sm:$0xff]
  %v452 = vld [vmem:[%s2 + $0xa50] sm:$0xff]
  %v453 = vld [vmem:[%s2 + $0xa58] sm:$0xff]
  %v454 = vld [vmem:[%s2 + $0xa60] sm:$0xf]
  %v455 = vld [vmem:[%s2 + $0xa64] sm:$0xff]
  %v456 = vld [vmem:[%s2 + $0xa6c] sm:$0xff]
  %v457 = vld [vmem:[%s2 + $0xa74] sm:$0xff]
  %v458 = vld [vmem:[%s2 + $0xa7c] sm:$0xf]
  %v459 = vld [vmem:[%s3] sm:$0x7f]
  %v461 = vlaneseq
  %v462 = vshrl.u32 %v461, 7
  %v463 = vsub.s32 0, %v462
  %v464 = vrot.slane %v459, %v463
  %v465 = vlaneseq
  %v466 = vshrl.u32 %v465, 7
  %v467 = vsub.s32 1, %v466
  %v468 = vrot.slane %v459, %v467
  %v469 = vlaneseq
  %v470 = vshrl.u32 %v469, 7
  %v471 = vsub.s32 2, %v470
  %v472 = vrot.slane %v459, %v471
  %v473 = vlaneseq
  %v474 = vshrl.u32 %v473, 7
  %v475 = vsub.s32 3, %v474
  %v476 = vrot.slane %v459, %v475
  %v477 = vlaneseq
  %v478 = vshrl.u32 %v477, 7
  %v479 = vsub.s32 4, %v478
  %v480 = vrot.slane %v459, %v479
  %v481 = vlaneseq
  %v482 = vshrl.u32 %v481, 7
  %v483 = vsub.s32 5, %v482
  %v484 = vrot.slane %v459, %v483
  %v485 = vlaneseq
  %v486 = vshrl.u32 %v485, 7
  %v487 = vsub.s32 6, %v486
  %v488 = vrot.slane %v459, %v487
  %v880 = vunpack.c.l.b16 %v75
  %v881 = vunpack.c.h.b16 %v75
  %v882 = vunpack.c.l.b16 %v76
  %v883 = vunpack.c.h.b16 %v76
  %v884 = vunpack.c.l.b16 %v77
  %v885 = vunpack.c.h.b16 %v77
  %v886 = vunpack.c.l.b16 %v78
  %v887 = vunpack.c.l.b16 %v79
  %v888 = vunpack.c.h.b16 %v79
  %v889 = vunpack.c.l.b16 %v80
  %v890 = vunpack.c.h.b16 %v80
  %v891 = vunpack.c.l.b16 %v81
  %v892 = vunpack.c.h.b16 %v81
  %v893 = vunpack.c.l.b16 %v82
  %v894 = vunpack.c.l.b16 %v83
  %v895 = vunpack.c.h.b16 %v83
  %v896 = vunpack.c.l.b16 %v84
  %v897 = vunpack.c.h.b16 %v84
  %v898 = vunpack.c.l.b16 %v85
  %v899 = vunpack.c.h.b16 %v85
  %v900 = vunpack.c.l.b16 %v86
  %v901 = vunpack.c.l.b16 %v87
  %v902 = vunpack.c.h.b16 %v87
  %v903 = vunpack.c.l.b16 %v88
  %v904 = vunpack.c.h.b16 %v88
  %v905 = vunpack.c.l.b16 %v89
  %v906 = vunpack.c.h.b16 %v89
  %v907 = vunpack.c.l.b16 %v90
  %v908 = vunpack.c.l.b16 %v91
  %v909 = vunpack.c.h.b16 %v91
  %v910 = vunpack.c.l.b16 %v92
  %v911 = vunpack.c.h.b16 %v92
  %v912 = vunpack.c.l.b16 %v93
  %v913 = vunpack.c.h.b16 %v93
  %v914 = vunpack.c.l.b16 %v94
  %v915 = vunpack.c.l.b16 %v95
  %v916 = vunpack.c.h.b16 %v95
  %v917 = vunpack.c.l.b16 %v96
  %v918 = vunpack.c.h.b16 %v96
  %v919 = vunpack.c.l.b16 %v97
  %v920 = vunpack.c.h.b16 %v97
  %v921 = vunpack.c.l.b16 %v98
  %v922 = vunpack.c.l.b16 %v99
  %v923 = vunpack.c.h.b16 %v99
  %v924 = vunpack.c.l.b16 %v100
  %v925 = vunpack.c.h.b16 %v100
  %v926 = vunpack.c.l.b16 %v101
  %v927 = vunpack.c.h.b16 %v101
  %v928 = vunpack.c.l.b16 %v102
  %v929 = vunpack.c.l.b16 %v103
  %v930 = vunpack.c.h.b16 %v103
  %v931 = vunpack.c.l.b16 %v104
  %v932 = vunpack.c.h.b16 %v104
  %v933 = vunpack.c.l.b16 %v105
  %v934 = vunpack.c.h.b16 %v105
  %v935 = vunpack.c.l.b16 %v106
  %v936 = vunpack.c.l.b16 %v107
  %v937 = vunpack.c.h.b16 %v107
  %v938 = vunpack.c.l.b16 %v108
  %v939 = vunpack.c.h.b16 %v108
  %v940 = vunpack.c.l.b16 %v109
  %v941 = vunpack.c.h.b16 %v109
  %v942 = vunpack.c.l.b16 %v110
  %v943 = vunpack.c.l.b16 %v111
  %v944 = vunpack.c.h.b16 %v111
  %v945 = vunpack.c.l.b16 %v112
  %v946 = vunpack.c.h.b16 %v112
  %v947 = vunpack.c.l.b16 %v113
  %v948 = vunpack.c.h.b16 %v113
  %v949 = vunpack.c.l.b16 %v114
  %v950 = vunpack.c.l.b16 %v115
  %v951 = vunpack.c.h.b16 %v115
  %v952 = vunpack.c.l.b16 %v116
  %v953 = vunpack.c.h.b16 %v116
  %v954 = vunpack.c.l.b16 %v117
  %v955 = vunpack.c.h.b16 %v117
  %v956 = vunpack.c.l.b16 %v118
  %v957 = vunpack.c.l.b16 %v119
  %v958 = vunpack.c.h.b16 %v119
  %v959 = vunpack.c.l.b16 %v120
  %v960 = vunpack.c.h.b16 %v120
  %v961 = vunpack.c.l.b16 %v121
  %v962 = vunpack.c.h.b16 %v121
  %v963 = vunpack.c.l.b16 %v122
  %v964 = vunpack.c.l.b16 %v123
  %v965 = vunpack.c.h.b16 %v123
  %v966 = vunpack.c.l.b16 %v124
  %v967 = vunpack.c.h.b16 %v124
  %v968 = vunpack.c.l.b16 %v125
  %v969 = vunpack.c.h.b16 %v125
  %v970 = vunpack.c.l.b16 %v126
  %v971 = vunpack.c.l.b16 %v127
  %v972 = vunpack.c.h.b16 %v127
  %v973 = vunpack.c.l.b16 %v128
  %v974 = vunpack.c.h.b16 %v128
  %v975 = vunpack.c.l.b16 %v129
  %v976 = vunpack.c.h.b16 %v129
  %v977 = vunpack.c.l.b16 %v130
  %v978 = vunpack.c.l.b16 %v131
  %v979 = vunpack.c.h.b16 %v131
  %v980 = vunpack.c.l.b16 %v132
  %v981 = vunpack.c.h.b16 %v132
  %v982 = vunpack.c.l.b16 %v133
  %v983 = vunpack.c.h.b16 %v133
  %v984 = vunpack.c.l.b16 %v134
  %v985 = vunpack.c.l.b16 %v135
  %v986 = vunpack.c.h.b16 %v135
  %v987 = vunpack.c.l.b16 %v136
  %v988 = vunpack.c.h.b16 %v136
  %v989 = vunpack.c.l.b16 %v137
  %v990 = vunpack.c.h.b16 %v137
  %v991 = vunpack.c.l.b16 %v138
  %v992 = vunpack.c.l.b16 %v139
  %v993 = vunpack.c.h.b16 %v139
  %v994 = vunpack.c.l.b16 %v140
  %v995 = vunpack.c.h.b16 %v140
  %v996 = vunpack.c.l.b16 %v141
  %v997 = vunpack.c.h.b16 %v141
  %v998 = vunpack.c.l.b16 %v142
  %v999 = vunpack.c.l.b16 %v143
  %v1000 = vunpack.c.h.b16 %v143
  %v1001 = vunpack.c.l.b16 %v144
  %v1002 = vunpack.c.h.b16 %v144
  %v1003 = vunpack.c.l.b16 %v145
  %v1004 = vunpack.c.h.b16 %v145
  %v1005 = vunpack.c.l.b16 %v146
  %v1006 = vunpack.c.l.b16 %v147
  %v1007 = vunpack.c.h.b16 %v147
  %v1008 = vunpack.c.l.b16 %v148
  %v1009 = vunpack.c.h.b16 %v148
  %v1010 = vunpack.c.l.b16 %v149
  %v1011 = vunpack.c.h.b16 %v149
  %v1012 = vunpack.c.l.b16 %v150
  %v1013 = vunpack.c.l.b16 %v151
  %v1014 = vunpack.c.h.b16 %v151
  %v1015 = vunpack.c.l.b16 %v152
  %v1016 = vunpack.c.h.b16 %v152
  %v1017 = vunpack.c.l.b16 %v153
  %v1018 = vunpack.c.h.b16 %v153
  %v1019 = vunpack.c.l.b16 %v154
  %v1020 = vunpack.c.l.b16 %v155
  %v1021 = vunpack.c.h.b16 %v155
  %v1022 = vunpack.c.l.b16 %v156
  %v1023 = vunpack.c.h.b16 %v156
  %v1024 = vunpack.c.l.b16 %v157
  %v1025 = vunpack.c.h.b16 %v157
  %v1026 = vunpack.c.l.b16 %v158
  %v1027 = vunpack.c.l.b16 %v159
  %v1028 = vunpack.c.h.b16 %v159
  %v1029 = vunpack.c.l.b16 %v160
  %v1030 = vunpack.c.h.b16 %v160
  %v1031 = vunpack.c.l.b16 %v161
  %v1032 = vunpack.c.h.b16 %v161
  %v1033 = vunpack.c.l.b16 %v162
  %v1034 = vunpack.c.l.b16 %v163
  %v1035 = vunpack.c.h.b16 %v163
  %v1036 = vunpack.c.l.b16 %v164
  %v1037 = vunpack.c.h.b16 %v164
  %v1038 = vunpack.c.l.b16 %v165
  %v1039 = vunpack.c.h.b16 %v165
  %v1040 = vunpack.c.l.b16 %v166
  %v1041 = vunpack.c.l.b16 %v167
  %v1042 = vunpack.c.h.b16 %v167
  %v1043 = vunpack.c.l.b16 %v168
  %v1044 = vunpack.c.h.b16 %v168
  %v1045 = vunpack.c.l.b16 %v169
  %v1046 = vunpack.c.h.b16 %v169
  %v1047 = vunpack.c.l.b16 %v170
  %v1048 = vunpack.c.l.b16 %v171
  %v1049 = vunpack.c.h.b16 %v171
  %v1050 = vunpack.c.l.b16 %v172
  %v1051 = vunpack.c.h.b16 %v172
  %v1052 = vunpack.c.l.b16 %v173
  %v1053 = vunpack.c.h.b16 %v173
  %v1054 = vunpack.c.l.b16 %v174
  %v1055 = vunpack.c.l.b16 %v175
  %v1056 = vunpack.c.h.b16 %v175
  %v1057 = vunpack.c.l.b16 %v176
  %v1058 = vunpack.c.h.b16 %v176
  %v1059 = vunpack.c.l.b16 %v177
  %v1060 = vunpack.c.h.b16 %v177
  %v1061 = vunpack.c.l.b16 %v178
  %v1062 = vunpack.c.l.b16 %v179
  %v1063 = vunpack.c.h.b16 %v179
  %v1064 = vunpack.c.l.b16 %v180
  %v1065 = vunpack.c.h.b16 %v180
  %v1066 = vunpack.c.l.b16 %v181
  %v1067 = vunpack.c.h.b16 %v181
  %v1068 = vunpack.c.l.b16 %v182
  %v1069 = vunpack.c.l.b16 %v183
  %v1070 = vunpack.c.h.b16 %v183
  %v1071 = vunpack.c.l.b16 %v184
  %v1072 = vunpack.c.h.b16 %v184
  %v1073 = vunpack.c.l.b16 %v185
  %v1074 = vunpack.c.h.b16 %v185
  %v1075 = vunpack.c.l.b16 %v186
  %v1076 = vunpack.c.l.b16 %v187
  %v1077 = vunpack.c.h.b16 %v187
  %v1078 = vunpack.c.l.b16 %v188
  %v1079 = vunpack.c.h.b16 %v188
  %v1080 = vunpack.c.l.b16 %v189
  %v1081 = vunpack.c.h.b16 %v189
  %v1082 = vunpack.c.l.b16 %v190
  %v1083 = vunpack.c.l.b16 %v191
  %v1084 = vunpack.c.h.b16 %v191
  %v1085 = vunpack.c.l.b16 %v192
  %v1086 = vunpack.c.h.b16 %v192
  %v1087 = vunpack.c.l.b16 %v193
  %v1088 = vunpack.c.h.b16 %v193
  %v1089 = vunpack.c.l.b16 %v194
  %v1090 = vunpack.c.l.b16 %v195
  %v1091 = vunpack.c.h.b16 %v195
  %v1092 = vunpack.c.l.b16 %v196
  %v1093 = vunpack.c.h.b16 %v196
  %v1094 = vunpack.c.l.b16 %v197
  %v1095 = vunpack.c.h.b16 %v197
  %v1096 = vunpack.c.l.b16 %v198
  %v1097 = vunpack.c.l.b16 %v199
  %v1098 = vunpack.c.h.b16 %v199
  %v1099 = vunpack.c.l.b16 %v200
  %v1100 = vunpack.c.h.b16 %v200
  %v1101 = vunpack.c.l.b16 %v201
  %v1102 = vunpack.c.h.b16 %v201
  %v1103 = vunpack.c.l.b16 %v202
  %v1104 = vunpack.c.l.b16 %v203
  %v1105 = vunpack.c.h.b16 %v203
  %v1106 = vunpack.c.l.b16 %v204
  %v1107 = vunpack.c.h.b16 %v204
  %v1108 = vunpack.c.l.b16 %v205
  %v1109 = vunpack.c.h.b16 %v205
  %v1110 = vunpack.c.l.b16 %v206
  %v1111 = vunpack.c.l.b16 %v207
  %v1112 = vunpack.c.h.b16 %v207
  %v1113 = vunpack.c.l.b16 %v208
  %v1114 = vunpack.c.h.b16 %v208
  %v1115 = vunpack.c.l.b16 %v209
  %v1116 = vunpack.c.h.b16 %v209
  %v1117 = vunpack.c.l.b16 %v210
  %v1118 = vunpack.c.l.b16 %v211
  %v1119 = vunpack.c.h.b16 %v211
  %v1120 = vunpack.c.l.b16 %v212
  %v1121 = vunpack.c.h.b16 %v212
  %v1122 = vunpack.c.l.b16 %v213
  %v1123 = vunpack.c.h.b16 %v213
  %v1124 = vunpack.c.l.b16 %v214
  %v1125 = vunpack.c.l.b16 %v215
  %v1126 = vunpack.c.h.b16 %v215
  %v1127 = vunpack.c.l.b16 %v216
  %v1128 = vunpack.c.h.b16 %v216
  %v1129 = vunpack.c.l.b16 %v217
  %v1130 = vunpack.c.h.b16 %v217
  %v1131 = vunpack.c.l.b16 %v218
  %v1132 = vunpack.c.l.b16 %v219
  %v1133 = vunpack.c.h.b16 %v219
  %v1134 = vunpack.c.l.b16 %v220
  %v1135 = vunpack.c.h.b16 %v220
  %v1136 = vunpack.c.l.b16 %v221
  %v1137 = vunpack.c.h.b16 %v221
  %v1138 = vunpack.c.l.b16 %v222
  %v1139 = vunpack.c.l.b16 %v223
  %v1140 = vunpack.c.h.b16 %v223
  %v1141 = vunpack.c.l.b16 %v224
  %v1142 = vunpack.c.h.b16 %v224
  %v1143 = vunpack.c.l.b16 %v225
  %v1144 = vunpack.c.h.b16 %v225
  %v1145 = vunpack.c.l.b16 %v226
  %v1146 = vunpack.c.l.b16 %v227
  %v1147 = vunpack.c.h.b16 %v227
  %v1148 = vunpack.c.l.b16 %v228
  %v1149 = vunpack.c.h.b16 %v228
  %v1150 = vunpack.c.l.b16 %v229
  %v1151 = vunpack.c.h.b16 %v229
  %v1152 = vunpack.c.l.b16 %v230
  %v1153 = vunpack.c.l.b16 %v231
  %v1154 = vunpack.c.h.b16 %v231
  %v1155 = vunpack.c.l.b16 %v232
  %v1156 = vunpack.c.h.b16 %v232
  %v1157 = vunpack.c.l.b16 %v233
  %v1158 = vunpack.c.h.b16 %v233
  %v1159 = vunpack.c.l.b16 %v234
  %v1160 = vunpack.c.l.b16 %v235
  %v1161 = vunpack.c.h.b16 %v235
  %v1162 = vunpack.c.l.b16 %v236
  %v1163 = vunpack.c.h.b16 %v236
  %v1164 = vunpack.c.l.b16 %v237
  %v1165 = vunpack.c.h.b16 %v237
  %v1166 = vunpack.c.l.b16 %v238
  %v1167 = vunpack.c.l.b16 %v239
  %v1168 = vunpack.c.h.b16 %v239
  %v1169 = vunpack.c.l.b16 %v240
  %v1170 = vunpack.c.h.b16 %v240
  %v1171 = vunpack.c.l.b16 %v241
  %v1172 = vunpack.c.h.b16 %v241
  %v1173 = vunpack.c.l.b16 %v242
  %v1174 = vunpack.c.l.b16 %v243
  %v1175 = vunpack.c.h.b16 %v243
  %v1176 = vunpack.c.l.b16 %v244
  %v1177 = vunpack.c.h.b16 %v244
  %v1178 = vunpack.c.l.b16 %v245
  %v1179 = vunpack.c.h.b16 %v245
  %v1180 = vunpack.c.l.b16 %v246
  %v1181 = vunpack.c.l.b16 %v247
  %v1182 = vunpack.c.h.b16 %v247
  %v1183 = vunpack.c.l.b16 %v248
  %v1184 = vunpack.c.h.b16 %v248
  %v1185 = vunpack.c.l.b16 %v249
  %v1186 = vunpack.c.h.b16 %v249
  %v1187 = vunpack.c.l.b16 %v250
  %v1188 = vunpack.c.l.b16 %v251
  %v1189 = vunpack.c.h.b16 %v251
  %v1190 = vunpack.c.l.b16 %v252
  %v1191 = vunpack.c.h.b16 %v252
  %v1192 = vunpack.c.l.b16 %v253
  %v1193 = vunpack.c.h.b16 %v253
  %v1194 = vunpack.c.l.b16 %v254
  %v1195 = vunpack.c.l.b16 %v255
  %v1196 = vunpack.c.h.b16 %v255
  %v1197 = vunpack.c.l.b16 %v256
  %v1198 = vunpack.c.h.b16 %v256
  %v1199 = vunpack.c.l.b16 %v257
  %v1200 = vunpack.c.h.b16 %v257
  %v1201 = vunpack.c.l.b16 %v258
  %v1202 = vunpack.c.l.b16 %v259
  %v1203 = vunpack.c.h.b16 %v259
  %v1204 = vunpack.c.l.b16 %v260
  %v1205 = vunpack.c.h.b16 %v260
  %v1206 = vunpack.c.l.b16 %v261
  %v1207 = vunpack.c.h.b16 %v261
  %v1208 = vunpack.c.l.b16 %v262
  %v1209 = vunpack.c.l.b16 %v263
  %v1210 = vunpack.c.h.b16 %v263
  %v1211 = vunpack.c.l.b16 %v264
  %v1212 = vunpack.c.h.b16 %v264
  %v1213 = vunpack.c.l.b16 %v265
  %v1214 = vunpack.c.h.b16 %v265
  %v1215 = vunpack.c.l.b16 %v266
  %v1216 = vunpack.c.l.b16 %v267
  %v1217 = vunpack.c.h.b16 %v267
  %v1218 = vunpack.c.l.b16 %v268
  %v1219 = vunpack.c.h.b16 %v268
  %v1220 = vunpack.c.l.b16 %v269
  %v1221 = vunpack.c.h.b16 %v269
  %v1222 = vunpack.c.l.b16 %v270
  %v1223 = vunpack.c.l.b16 %v271
  %v1224 = vunpack.c.h.b16 %v271
  %v1225 = vunpack.c.l.b16 %v272
  %v1226 = vunpack.c.h.b16 %v272
  %v1227 = vunpack.c.l.b16 %v273
  %v1228 = vunpack.c.h.b16 %v273
  %v1229 = vunpack.c.l.b16 %v274
  %v1230 = vunpack.c.l.b16 %v275
  %v1231 = vunpack.c.h.b16 %v275
  %v1232 = vunpack.c.l.b16 %v276
  %v1233 = vunpack.c.h.b16 %v276
  %v1234 = vunpack.c.l.b16 %v277
  %v1235 = vunpack.c.h.b16 %v277
  %v1236 = vunpack.c.l.b16 %v278
  %v1237 = vunpack.c.l.b16 %v279
  %v1238 = vunpack.c.h.b16 %v279
  %v1239 = vunpack.c.l.b16 %v280
  %v1240 = vunpack.c.h.b16 %v280
  %v1241 = vunpack.c.l.b16 %v281
  %v1242 = vunpack.c.h.b16 %v281
  %v1243 = vunpack.c.l.b16 %v282
  %v1244 = vunpack.c.l.b16 %v283
  %v1245 = vunpack.c.h.b16 %v283
  %v1246 = vunpack.c.l.b16 %v284
  %v1247 = vunpack.c.h.b16 %v284
  %v1248 = vunpack.c.l.b16 %v285
  %v1249 = vunpack.c.h.b16 %v285
  %v1250 = vunpack.c.l.b16 %v286
  %v1251 = vunpack.c.l.b16 %v287
  %v1252 = vunpack.c.h.b16 %v287
  %v1253 = vunpack.c.l.b16 %v288
  %v1254 = vunpack.c.h.b16 %v288
  %v1255 = vunpack.c.l.b16 %v289
  %v1256 = vunpack.c.h.b16 %v289
  %v1257 = vunpack.c.l.b16 %v290
  %v1258 = vunpack.c.l.b16 %v291
  %v1259 = vunpack.c.h.b16 %v291
  %v1260 = vunpack.c.l.b16 %v292
  %v1261 = vunpack.c.h.b16 %v292
  %v1262 = vunpack.c.l.b16 %v293
  %v1263 = vunpack.c.h.b16 %v293
  %v1264 = vunpack.c.l.b16 %v294
  %v1265 = vunpack.c.l.b16 %v295
  %v1266 = vunpack.c.h.b16 %v295
  %v1267 = vunpack.c.l.b16 %v296
  %v1268 = vunpack.c.h.b16 %v296
  %v1269 = vunpack.c.l.b16 %v297
  %v1270 = vunpack.c.h.b16 %v297
  %v1271 = vunpack.c.l.b16 %v298
  %v1272 = vunpack.c.l.b16 %v299
  %v1273 = vunpack.c.h.b16 %v299
  %v1274 = vunpack.c.l.b16 %v300
  %v1275 = vunpack.c.h.b16 %v300
  %v1276 = vunpack.c.l.b16 %v301
  %v1277 = vunpack.c.h.b16 %v301
  %v1278 = vunpack.c.l.b16 %v302
  %v1279 = vunpack.c.l.b16 %v303
  %v1280 = vunpack.c.h.b16 %v303
  %v1281 = vunpack.c.l.b16 %v304
  %v1282 = vunpack.c.h.b16 %v304
  %v1283 = vunpack.c.l.b16 %v305
  %v1284 = vunpack.c.h.b16 %v305
  %v1285 = vunpack.c.l.b16 %v306
  %v1286 = vunpack.c.l.b16 %v307
  %v1287 = vunpack.c.h.b16 %v307
  %v1288 = vunpack.c.l.b16 %v308
  %v1289 = vunpack.c.h.b16 %v308
  %v1290 = vunpack.c.l.b16 %v309
  %v1291 = vunpack.c.h.b16 %v309
  %v1292 = vunpack.c.l.b16 %v310
  %v1293 = vunpack.c.l.b16 %v311
  %v1294 = vunpack.c.h.b16 %v311
  %v1295 = vunpack.c.l.b16 %v312
  %v1296 = vunpack.c.h.b16 %v312
  %v1297 = vunpack.c.l.b16 %v313
  %v1298 = vunpack.c.h.b16 %v313
  %v1299 = vunpack.c.l.b16 %v314
  %v1300 = vunpack.c.l.b16 %v315
  %v1301 = vunpack.c.h.b16 %v315
  %v1302 = vunpack.c.l.b16 %v316
  %v1303 = vunpack.c.h.b16 %v316
  %v1304 = vunpack.c.l.b16 %v317
  %v1305 = vunpack.c.h.b16 %v317
  %v1306 = vunpack.c.l.b16 %v318
  %v1307 = vunpack.c.l.b16 %v319
  %v1308 = vunpack.c.h.b16 %v319
  %v1309 = vunpack.c.l.b16 %v320
  %v1310 = vunpack.c.h.b16 %v320
  %v1311 = vunpack.c.l.b16 %v321
  %v1312 = vunpack.c.h.b16 %v321
  %v1313 = vunpack.c.l.b16 %v322
  %v1314 = vunpack.c.l.b16 %v323
  %v1315 = vunpack.c.h.b16 %v323
  %v1316 = vunpack.c.l.b16 %v324
  %v1317 = vunpack.c.h.b16 %v324
  %v1318 = vunpack.c.l.b16 %v325
  %v1319 = vunpack.c.h.b16 %v325
  %v1320 = vunpack.c.l.b16 %v326
  %v1321 = vunpack.c.l.b16 %v327
  %v1322 = vunpack.c.h.b16 %v327
  %v1323 = vunpack.c.l.b16 %v328
  %v1324 = vunpack.c.h.b16 %v328
  %v1325 = vunpack.c.l.b16 %v329
  %v1326 = vunpack.c.h.b16 %v329
  %v1327 = vunpack.c.l.b16 %v330
  %v1328 = vunpack.c.l.b16 %v331
  %v1329 = vunpack.c.h.b16 %v331
  %v1330 = vunpack.c.l.b16 %v332
  %v1331 = vunpack.c.h.b16 %v332
  %v1332 = vunpack.c.l.b16 %v333
  %v1333 = vunpack.c.h.b16 %v333
  %v1334 = vunpack.c.l.b16 %v334
  %v1335 = vunpack.c.l.b16 %v335
  %v1336 = vunpack.c.h.b16 %v335
  %v1337 = vunpack.c.l.b16 %v336
  %v1338 = vunpack.c.h.b16 %v336
  %v1339 = vunpack.c.l.b16 %v337
  %v1340 = vunpack.c.h.b16 %v337
  %v1341 = vunpack.c.l.b16 %v338
  %v1342 = vunpack.c.l.b16 %v339
  %v1343 = vunpack.c.h.b16 %v339
  %v1344 = vunpack.c.l.b16 %v340
  %v1345 = vunpack.c.h.b16 %v340
  %v1346 = vunpack.c.l.b16 %v341
  %v1347 = vunpack.c.h.b16 %v341
  %v1348 = vunpack.c.l.b16 %v342
  %v1349 = vunpack.c.l.b16 %v343
  %v1350 = vunpack.c.h.b16 %v343
  %v1351 = vunpack.c.l.b16 %v344
  %v1352 = vunpack.c.h.b16 %v344
  %v1353 = vunpack.c.l.b16 %v345
  %v1354 = vunpack.c.h.b16 %v345
  %v1355 = vunpack.c.l.b16 %v346
  %v1356 = vunpack.c.l.b16 %v347
  %v1357 = vunpack.c.h.b16 %v347
  %v1358 = vunpack.c.l.b16 %v348
  %v1359 = vunpack.c.h.b16 %v348
  %v1360 = vunpack.c.l.b16 %v349
  %v1361 = vunpack.c.h.b16 %v349
  %v1362 = vunpack.c.l.b16 %v350
  %v1363 = vunpack.c.l.b16 %v351
  %v1364 = vunpack.c.h.b16 %v351
  %v1365 = vunpack.c.l.b16 %v352
  %v1366 = vunpack.c.h.b16 %v352
  %v1367 = vunpack.c.l.b16 %v353
  %v1368 = vunpack.c.h.b16 %v353
  %v1369 = vunpack.c.l.b16 %v354
  %v1370 = vunpack.c.l.b16 %v355
  %v1371 = vunpack.c.h.b16 %v355
  %v1372 = vunpack.c.l.b16 %v356
  %v1373 = vunpack.c.h.b16 %v356
  %v1374 = vunpack.c.l.b16 %v357
  %v1375 = vunpack.c.h.b16 %v357
  %v1376 = vunpack.c.l.b16 %v358
  %v1377 = vunpack.c.l.b16 %v359
  %v1378 = vunpack.c.h.b16 %v359
  %v1379 = vunpack.c.l.b16 %v360
  %v1380 = vunpack.c.h.b16 %v360
  %v1381 = vunpack.c.l.b16 %v361
  %v1382 = vunpack.c.h.b16 %v361
  %v1383 = vunpack.c.l.b16 %v362
  %v1384 = vunpack.c.l.b16 %v363
  %v1385 = vunpack.c.h.b16 %v363
  %v1386 = vunpack.c.l.b16 %v364
  %v1387 = vunpack.c.h.b16 %v364
  %v1388 = vunpack.c.l.b16 %v365
  %v1389 = vunpack.c.h.b16 %v365
  %v1390 = vunpack.c.l.b16 %v366
  %v1391 = vunpack.c.l.b16 %v367
  %v1392 = vunpack.c.h.b16 %v367
  %v1393 = vunpack.c.l.b16 %v368
  %v1394 = vunpack.c.h.b16 %v368
  %v1395 = vunpack.c.l.b16 %v369
  %v1396 = vunpack.c.h.b16 %v369
  %v1397 = vunpack.c.l.b16 %v370
  %v1398 = vunpack.c.l.b16 %v371
  %v1399 = vunpack.c.h.b16 %v371
  %v1400 = vunpack.c.l.b16 %v372
  %v1401 = vunpack.c.h.b16 %v372
  %v1402 = vunpack.c.l.b16 %v373
  %v1403 = vunpack.c.h.b16 %v373
  %v1404 = vunpack.c.l.b16 %v374
  %v1405 = vunpack.c.l.b16 %v375
  %v1406 = vunpack.c.h.b16 %v375
  %v1407 = vunpack.c.l.b16 %v376
  %v1408 = vunpack.c.h.b16 %v376
  %v1409 = vunpack.c.l.b16 %v377
  %v1410 = vunpack.c.h.b16 %v377
  %v1411 = vunpack.c.l.b16 %v378
  %v1412 = vunpack.c.l.b16 %v379
  %v1413 = vunpack.c.h.b16 %v379
  %v1414 = vunpack.c.l.b16 %v380
  %v1415 = vunpack.c.h.b16 %v380
  %v1416 = vunpack.c.l.b16 %v381
  %v1417 = vunpack.c.h.b16 %v381
  %v1418 = vunpack.c.l.b16 %v382
  %v1419 = vunpack.c.l.b16 %v383
  %v1420 = vunpack.c.h.b16 %v383
  %v1421 = vunpack.c.l.b16 %v384
  %v1422 = vunpack.c.h.b16 %v384
  %v1423 = vunpack.c.l.b16 %v385
  %v1424 = vunpack.c.h.b16 %v385
  %v1425 = vunpack.c.l.b16 %v386
  %v1426 = vunpack.c.l.b16 %v387
  %v1427 = vunpack.c.h.b16 %v387
  %v1428 = vunpack.c.l.b16 %v388
  %v1429 = vunpack.c.h.b16 %v388
  %v1430 = vunpack.c.l.b16 %v389
  %v1431 = vunpack.c.h.b16 %v389
  %v1432 = vunpack.c.l.b16 %v390
  %v1433 = vunpack.c.l.b16 %v391
  %v1434 = vunpack.c.h.b16 %v391
  %v1435 = vunpack.c.l.b16 %v392
  %v1436 = vunpack.c.h.b16 %v392
  %v1437 = vunpack.c.l.b16 %v393
  %v1438 = vunpack.c.h.b16 %v393
  %v1439 = vunpack.c.l.b16 %v394
  %v1440 = vunpack.c.l.b16 %v395
  %v1441 = vunpack.c.h.b16 %v395
  %v1442 = vunpack.c.l.b16 %v396
  %v1443 = vunpack.c.h.b16 %v396
  %v1444 = vunpack.c.l.b16 %v397
  %v1445 = vunpack.c.h.b16 %v397
  %v1446 = vunpack.c.l.b16 %v398
  %v1447 = vunpack.c.l.b16 %v399
  %v1448 = vunpack.c.h.b16 %v399
  %v1449 = vunpack.c.l.b16 %v400
  %v1450 = vunpack.c.h.b16 %v400
  %v1451 = vunpack.c.l.b16 %v401
  %v1452 = vunpack.c.h.b16 %v401
  %v1453 = vunpack.c.l.b16 %v402
  %v1454 = vunpack.c.l.b16 %v403
  %v1455 = vunpack.c.h.b16 %v403
  %v1456 = vunpack.c.l.b16 %v404
  %v1457 = vunpack.c.h.b16 %v404
  %v1458 = vunpack.c.l.b16 %v405
  %v1459 = vunpack.c.h.b16 %v405
  %v1460 = vunpack.c.l.b16 %v406
  %v1461 = vunpack.c.l.b16 %v407
  %v1462 = vunpack.c.h.b16 %v407
  %v1463 = vunpack.c.l.b16 %v408
  %v1464 = vunpack.c.h.b16 %v408
  %v1465 = vunpack.c.l.b16 %v409
  %v1466 = vunpack.c.h.b16 %v409
  %v1467 = vunpack.c.l.b16 %v410
  %v1468 = vunpack.c.l.b16 %v411
  %v1469 = vunpack.c.h.b16 %v411
  %v1470 = vunpack.c.l.b16 %v412
  %v1471 = vunpack.c.h.b16 %v412
  %v1472 = vunpack.c.l.b16 %v413
  %v1473 = vunpack.c.h.b16 %v413
  %v1474 = vunpack.c.l.b16 %v414
  %v1475 = vunpack.c.l.b16 %v415
  %v1476 = vunpack.c.h.b16 %v415
  %v1477 = vunpack.c.l.b16 %v416
  %v1478 = vunpack.c.h.b16 %v416
  %v1479 = vunpack.c.l.b16 %v417
  %v1480 = vunpack.c.h.b16 %v417
  %v1481 = vunpack.c.l.b16 %v418
  %v1482 = vunpack.c.l.b16 %v419
  %v1483 = vunpack.c.h.b16 %v419
  %v1484 = vunpack.c.l.b16 %v420
  %v1485 = vunpack.c.h.b16 %v420
  %v1486 = vunpack.c.l.b16 %v421
  %v1487 = vunpack.c.h.b16 %v421
  %v1488 = vunpack.c.l.b16 %v422
  %v1489 = vunpack.c.l.b16 %v423
  %v1490 = vunpack.c.h.b16 %v423
  %v1491 = vunpack.c.l.b16 %v424
  %v1492 = vunpack.c.h.b16 %v424
  %v1493 = vunpack.c.l.b16 %v425
  %v1494 = vunpack.c.h.b16 %v425
  %v1495 = vunpack.c.l.b16 %v426
  %v1496 = vunpack.c.l.b16 %v427
  %v1497 = vunpack.c.h.b16 %v427
  %v1498 = vunpack.c.l.b16 %v428
  %v1499 = vunpack.c.h.b16 %v428
  %v1500 = vunpack.c.l.b16 %v429
  %v1501 = vunpack.c.h.b16 %v429
  %v1502 = vunpack.c.l.b16 %v430
  %v1503 = vunpack.c.l.b16 %v431
  %v1504 = vunpack.c.h.b16 %v431
  %v1505 = vunpack.c.l.b16 %v432
  %v1506 = vunpack.c.h.b16 %v432
  %v1507 = vunpack.c.l.b16 %v433
  %v1508 = vunpack.c.h.b16 %v433
  %v1509 = vunpack.c.l.b16 %v434
  %v1510 = vunpack.c.l.b16 %v435
  %v1511 = vunpack.c.h.b16 %v435
  %v1512 = vunpack.c.l.b16 %v436
  %v1513 = vunpack.c.h.b16 %v436
  %v1514 = vunpack.c.l.b16 %v437
  %v1515 = vunpack.c.h.b16 %v437
  %v1516 = vunpack.c.l.b16 %v438
  %v1517 = vunpack.c.l.b16 %v439
  %v1518 = vunpack.c.h.b16 %v439
  %v1519 = vunpack.c.l.b16 %v440
  %v1520 = vunpack.c.h.b16 %v440
  %v1521 = vunpack.c.l.b16 %v441
  %v1522 = vunpack.c.h.b16 %v441
  %v1523 = vunpack.c.l.b16 %v442
  %v1524 = vunpack.c.l.b16 %v443
  %v1525 = vunpack.c.h.b16 %v443
  %v1526 = vunpack.c.l.b16 %v444
  %v1527 = vunpack.c.h.b16 %v444
  %v1528 = vunpack.c.l.b16 %v445
  %v1529 = vunpack.c.h.b16 %v445
  %v1530 = vunpack.c.l.b16 %v446
  %v1531 = vunpack.c.l.b16 %v447
  %v1532 = vunpack.c.h.b16 %v447
  %v1533 = vunpack.c.l.b16 %v448
  %v1534 = vunpack.c.h.b16 %v448
  %v1535 = vunpack.c.l.b16 %v449
  %v1536 = vunpack.c.h.b16 %v449
  %v1537 = vunpack.c.l.b16 %v450
  %v1538 = vunpack.c.l.b16 %v451
  %v1539 = vunpack.c.h.b16 %v451
  %v1540 = vunpack.c.l.b16 %v452
  %v1541 = vunpack.c.h.b16 %v452
  %v1542 = vunpack.c.l.b16 %v453
  %v1543 = vunpack.c.h.b16 %v453
  %v1544 = vunpack.c.l.b16 %v454
  %v1545 = vunpack.c.l.b16 %v455
  %v1546 = vunpack.c.h.b16 %v455
  %v1547 = vunpack.c.l.b16 %v456
  %v1548 = vunpack.c.h.b16 %v456
  %v1549 = vunpack.c.l.b16 %v457
  %v1550 = vunpack.c.h.b16 %v457
  %v1551 = vunpack.c.l.b16 %v458
  %v1552 = vpack.c.b16 %v887, %v880
  %v1553 = vpack.c.b16 %v888, %v881
  %v1554 = vpack.c.b16 %v889, %v882
  %v1555 = vpack.c.b16 %v890, %v883
  %v1556 = vpack.c.b16 %v891, %v884
  %v1557 = vpack.c.b16 %v892, %v885
  %v1558 = vpack.c.b16 %v893, %v886
  %v1559 = vpack.c.b16 %v901, %v894
  %v1560 = vpack.c.b16 %v902, %v895
  %v1561 = vpack.c.b16 %v903, %v896
  %v1562 = vpack.c.b16 %v904, %v897
  %v1563 = vpack.c.b16 %v905, %v898
  %v1564 = vpack.c.b16 %v906, %v899
  %v1565 = vpack.c.b16 %v907, %v900
  %v1566 = vpack.c.b16 %v915, %v908
  %v1567 = vpack.c.b16 %v916, %v909
  %v1568 = vpack.c.b16 %v917, %v910
  %v1569 = vpack.c.b16 %v918, %v911
  %v1570 = vpack.c.b16 %v919, %v912
  %v1571 = vpack.c.b16 %v920, %v913
  %v1572 = vpack.c.b16 %v921, %v914
  %v1573 = vpack.c.b16 %v929, %v922
  %v1574 = vpack.c.b16 %v930, %v923
  %v1575 = vpack.c.b16 %v931, %v924
  %v1576 = vpack.c.b16 %v932, %v925
  %v1577 = vpack.c.b16 %v933, %v926
  %v1578 = vpack.c.b16 %v934, %v927
  %v1579 = vpack.c.b16 %v935, %v928
  %v1580 = vpack.c.b16 %v943, %v936
  %v1581 = vpack.c.b16 %v944, %v937
  %v1582 = vpack.c.b16 %v945, %v938
  %v1583 = vpack.c.b16 %v946, %v939
  %v1584 = vpack.c.b16 %v947, %v940
  %v1585 = vpack.c.b16 %v948, %v941
  %v1586 = vpack.c.b16 %v949, %v942
  %v1587 = vpack.c.b16 %v957, %v950
  %v1588 = vpack.c.b16 %v958, %v951
  %v1589 = vpack.c.b16 %v959, %v952
  %v1590 = vpack.c.b16 %v960, %v953
  %v1591 = vpack.c.b16 %v961, %v954
  %v1592 = vpack.c.b16 %v962, %v955
  %v1593 = vpack.c.b16 %v963, %v956
  %v1594 = vpack.c.b16 %v971, %v964
  %v1595 = vpack.c.b16 %v972, %v965
  %v1596 = vpack.c.b16 %v973, %v966
  %v1597 = vpack.c.b16 %v974, %v967
  %v1598 = vpack.c.b16 %v975, %v968
  %v1599 = vpack.c.b16 %v976, %v969
  %v1600 = vpack.c.b16 %v977, %v970
  %v1601 = vpack.c.b16 %v985, %v978
  %v1602 = vpack.c.b16 %v986, %v979
  %v1603 = vpack.c.b16 %v987, %v980
  %v1604 = vpack.c.b16 %v988, %v981
  %v1605 = vpack.c.b16 %v989, %v982
  %v1606 = vpack.c.b16 %v990, %v983
  %v1607 = vpack.c.b16 %v991, %v984
  %v1608 = vpack.c.b16 %v999, %v992
  %v1609 = vpack.c.b16 %v1000, %v993
  %v1610 = vpack.c.b16 %v1001, %v994
  %v1611 = vpack.c.b16 %v1002, %v995
  %v1612 = vpack.c.b16 %v1003, %v996
  %v1613 = vpack.c.b16 %v1004, %v997
  %v1614 = vpack.c.b16 %v1005, %v998
  %v1615 = vpack.c.b16 %v1013, %v1006
  %v1616 = vpack.c.b16 %v1014, %v1007
  %v1617 = vpack.c.b16 %v1015, %v1008
  %v1618 = vpack.c.b16 %v1016, %v1009
  %v1619 = vpack.c.b16 %v1017, %v1010
  %v1620 = vpack.c.b16 %v1018, %v1011
  %v1621 = vpack.c.b16 %v1019, %v1012
  %v1622 = vpack.c.b16 %v1027, %v1020
  %v1623 = vpack.c.b16 %v1028, %v1021
  %v1624 = vpack.c.b16 %v1029, %v1022
  %v1625 = vpack.c.b16 %v1030, %v1023
  %v1626 = vpack.c.b16 %v1031, %v1024
  %v1627 = vpack.c.b16 %v1032, %v1025
  %v1628 = vpack.c.b16 %v1033, %v1026
  %v1629 = vpack.c.b16 %v1041, %v1034
  %v1630 = vpack.c.b16 %v1042, %v1035
  %v1631 = vpack.c.b16 %v1043, %v1036
  %v1632 = vpack.c.b16 %v1044, %v1037
  %v1633 = vpack.c.b16 %v1045, %v1038
  %v1634 = vpack.c.b16 %v1046, %v1039
  %v1635 = vpack.c.b16 %v1047, %v1040
  %v1636 = vpack.c.b16 %v1055, %v1048
  %v1637 = vpack.c.b16 %v1056, %v1049
  %v1638 = vpack.c.b16 %v1057, %v1050
  %v1639 = vpack.c.b16 %v1058, %v1051
  %v1640 = vpack.c.b16 %v1059, %v1052
  %v1641 = vpack.c.b16 %v1060, %v1053
  %v1642 = vpack.c.b16 %v1061, %v1054
  %v1643 = vpack.c.b16 %v1069, %v1062
  %v1644 = vpack.c.b16 %v1070, %v1063
  %v1645 = vpack.c.b16 %v1071, %v1064
  %v1646 = vpack.c.b16 %v1072, %v1065
  %v1647 = vpack.c.b16 %v1073, %v1066
  %v1648 = vpack.c.b16 %v1074, %v1067
  %v1649 = vpack.c.b16 %v1075, %v1068
  %v1650 = vpack.c.b16 %v1083, %v1076
  %v1651 = vpack.c.b16 %v1084, %v1077
  %v1652 = vpack.c.b16 %v1085, %v1078
  %v1653 = vpack.c.b16 %v1086, %v1079
  %v1654 = vpack.c.b16 %v1087, %v1080
  %v1655 = vpack.c.b16 %v1088, %v1081
  %v1656 = vpack.c.b16 %v1089, %v1082
  %v1657 = vpack.c.b16 %v1097, %v1090
  %v1658 = vpack.c.b16 %v1098, %v1091
  %v1659 = vpack.c.b16 %v1099, %v1092
  %v1660 = vpack.c.b16 %v1100, %v1093
  %v1661 = vpack.c.b16 %v1101, %v1094
  %v1662 = vpack.c.b16 %v1102, %v1095
  %v1663 = vpack.c.b16 %v1103, %v1096
  %v1664 = vpack.c.b16 %v1111, %v1104
  %v1665 = vpack.c.b16 %v1112, %v1105
  %v1666 = vpack.c.b16 %v1113, %v1106
  %v1667 = vpack.c.b16 %v1114, %v1107
  %v1668 = vpack.c.b16 %v1115, %v1108
  %v1669 = vpack.c.b16 %v1116, %v1109
  %v1670 = vpack.c.b16 %v1117, %v1110
  %v1671 = vpack.c.b16 %v1125, %v1118
  %v1672 = vpack.c.b16 %v1126, %v1119
  %v1673 = vpack.c.b16 %v1127, %v1120
  %v1674 = vpack.c.b16 %v1128, %v1121
  %v1675 = vpack.c.b16 %v1129, %v1122
  %v1676 = vpack.c.b16 %v1130, %v1123
  %v1677 = vpack.c.b16 %v1131, %v1124
  %v1678 = vpack.c.b16 %v1139, %v1132
  %v1679 = vpack.c.b16 %v1140, %v1133
  %v1680 = vpack.c.b16 %v1141, %v1134
  %v1681 = vpack.c.b16 %v1142, %v1135
  %v1682 = vpack.c.b16 %v1143, %v1136
  %v1683 = vpack.c.b16 %v1144, %v1137
  %v1684 = vpack.c.b16 %v1145, %v1138
  %v1685 = vpack.c.b16 %v1153, %v1146
  %v1686 = vpack.c.b16 %v1154, %v1147
  %v1687 = vpack.c.b16 %v1155, %v1148
  %v1688 = vpack.c.b16 %v1156, %v1149
  %v1689 = vpack.c.b16 %v1157, %v1150
  %v1690 = vpack.c.b16 %v1158, %v1151
  %v1691 = vpack.c.b16 %v1159, %v1152
  %v1692 = vpack.c.b16 %v1167, %v1160
  %v1693 = vpack.c.b16 %v1168, %v1161
  %v1694 = vpack.c.b16 %v1169, %v1162
  %v1695 = vpack.c.b16 %v1170, %v1163
  %v1696 = vpack.c.b16 %v1171, %v1164
  %v1697 = vpack.c.b16 %v1172, %v1165
  %v1698 = vpack.c.b16 %v1173, %v1166
  %v1699 = vpack.c.b16 %v1181, %v1174
  %v1700 = vpack.c.b16 %v1182, %v1175
  %v1701 = vpack.c.b16 %v1183, %v1176
  %v1702 = vpack.c.b16 %v1184, %v1177
  %v1703 = vpack.c.b16 %v1185, %v1178
  %v1704 = vpack.c.b16 %v1186, %v1179
  %v1705 = vpack.c.b16 %v1187, %v1180
  %v1706 = vpack.c.b16 %v1195, %v1188
  %v1707 = vpack.c.b16 %v1196, %v1189
  %v1708 = vpack.c.b16 %v1197, %v1190
  %v1709 = vpack.c.b16 %v1198, %v1191
  %v1710 = vpack.c.b16 %v1199, %v1192
  %v1711 = vpack.c.b16 %v1200, %v1193
  %v1712 = vpack.c.b16 %v1201, %v1194
  %v1713 = vpack.c.b16 %v1209, %v1202
  %v1714 = vpack.c.b16 %v1210, %v1203
  %v1715 = vpack.c.b16 %v1211, %v1204
  %v1716 = vpack.c.b16 %v1212, %v1205
  %v1717 = vpack.c.b16 %v1213, %v1206
  %v1718 = vpack.c.b16 %v1214, %v1207
  %v1719 = vpack.c.b16 %v1215, %v1208
  %v1720 = vpack.c.b16 %v1223, %v1216
  %v1721 = vpack.c.b16 %v1224, %v1217
  %v1722 = vpack.c.b16 %v1225, %v1218
  %v1723 = vpack.c.b16 %v1226, %v1219
  %v1724 = vpack.c.b16 %v1227, %v1220
  %v1725 = vpack.c.b16 %v1228, %v1221
  %v1726 = vpack.c.b16 %v1229, %v1222
  %v1727 = vpack.c.b16 %v1237, %v1230
  %v1728 = vpack.c.b16 %v1238, %v1231
  %v1729 = vpack.c.b16 %v1239, %v1232
  %v1730 = vpack.c.b16 %v1240, %v1233
  %v1731 = vpack.c.b16 %v1241, %v1234
  %v1732 = vpack.c.b16 %v1242, %v1235
  %v1733 = vpack.c.b16 %v1243, %v1236
  %v1734 = vpack.c.b16 %v1251, %v1244
  %v1735 = vpack.c.b16 %v1252, %v1245
  %v1736 = vpack.c.b16 %v1253, %v1246
  %v1737 = vpack.c.b16 %v1254, %v1247
  %v1738 = vpack.c.b16 %v1255, %v1248
  %v1739 = vpack.c.b16 %v1256, %v1249
  %v1740 = vpack.c.b16 %v1257, %v1250
  %v1741 = vpack.c.b16 %v1265, %v1258
  %v1742 = vpack.c.b16 %v1266, %v1259
  %v1743 = vpack.c.b16 %v1267, %v1260
  %v1744 = vpack.c.b16 %v1268, %v1261
  %v1745 = vpack.c.b16 %v1269, %v1262
  %v1746 = vpack.c.b16 %v1270, %v1263
  %v1747 = vpack.c.b16 %v1271, %v1264
  %v1748 = vpack.c.b16 %v1279, %v1272
  %v1749 = vpack.c.b16 %v1280, %v1273
  %v1750 = vpack.c.b16 %v1281, %v1274
  %v1751 = vpack.c.b16 %v1282, %v1275
  %v1752 = vpack.c.b16 %v1283, %v1276
  %v1753 = vpack.c.b16 %v1284, %v1277
  %v1754 = vpack.c.b16 %v1285, %v1278
  %v1755 = vpack.c.b16 %v1293, %v1286
  %v1756 = vpack.c.b16 %v1294, %v1287
  %v1757 = vpack.c.b16 %v1295, %v1288
  %v1758 = vpack.c.b16 %v1296, %v1289
  %v1759 = vpack.c.b16 %v1297, %v1290
  %v1760 = vpack.c.b16 %v1298, %v1291
  %v1761 = vpack.c.b16 %v1299, %v1292
  %v1762 = vpack.c.b16 %v1307, %v1300
  %v1763 = vpack.c.b16 %v1308, %v1301
  %v1764 = vpack.c.b16 %v1309, %v1302
  %v1765 = vpack.c.b16 %v1310, %v1303
  %v1766 = vpack.c.b16 %v1311, %v1304
  %v1767 = vpack.c.b16 %v1312, %v1305
  %v1768 = vpack.c.b16 %v1313, %v1306
  %v1769 = vpack.c.b16 %v1321, %v1314
  %v1770 = vpack.c.b16 %v1322, %v1315
  %v1771 = vpack.c.b16 %v1323, %v1316
  %v1772 = vpack.c.b16 %v1324, %v1317
  %v1773 = vpack.c.b16 %v1325, %v1318
  %v1774 = vpack.c.b16 %v1326, %v1319
  %v1775 = vpack.c.b16 %v1327, %v1320
  %v1776 = vpack.c.b16 %v1335, %v1328
  %v1777 = vpack.c.b16 %v1336, %v1329
  %v1778 = vpack.c.b16 %v1337, %v1330
  %v1779 = vpack.c.b16 %v1338, %v1331
  %v1780 = vpack.c.b16 %v1339, %v1332
  %v1781 = vpack.c.b16 %v1340, %v1333
  %v1782 = vpack.c.b16 %v1341, %v1334
  %v1783 = vpack.c.b16 %v1349, %v1342
  %v1784 = vpack.c.b16 %v1350, %v1343
  %v1785 = vpack.c.b16 %v1351, %v1344
  %v1786 = vpack.c.b16 %v1352, %v1345
  %v1787 = vpack.c.b16 %v1353, %v1346
  %v1788 = vpack.c.b16 %v1354, %v1347
  %v1789 = vpack.c.b16 %v1355, %v1348
  %v1790 = vpack.c.b16 %v1363, %v1356
  %v1791 = vpack.c.b16 %v1364, %v1357
  %v1792 = vpack.c.b16 %v1365, %v1358
  %v1793 = vpack.c.b16 %v1366, %v1359
  %v1794 = vpack.c.b16 %v1367, %v1360
  %v1795 = vpack.c.b16 %v1368, %v1361
  %v1796 = vpack.c.b16 %v1369, %v1362
  %v1797 = vpack.c.b16 %v1377, %v1370
  %v1798 = vpack.c.b16 %v1378, %v1371
  %v1799 = vpack.c.b16 %v1379, %v1372
  %v1800 = vpack.c.b16 %v1380, %v1373
  %v1801 = vpack.c.b16 %v1381, %v1374
  %v1802 = vpack.c.b16 %v1382, %v1375
  %v1803 = vpack.c.b16 %v1383, %v1376
  %v1804 = vpack.c.b16 %v1391, %v1384
  %v1805 = vpack.c.b16 %v1392, %v1385
  %v1806 = vpack.c.b16 %v1393, %v1386
  %v1807 = vpack.c.b16 %v1394, %v1387
  %v1808 = vpack.c.b16 %v1395, %v1388
  %v1809 = vpack.c.b16 %v1396, %v1389
  %v1810 = vpack.c.b16 %v1397, %v1390
  %v1811 = vpack.c.b16 %v1405, %v1398
  %v1812 = vpack.c.b16 %v1406, %v1399
  %v1813 = vpack.c.b16 %v1407, %v1400
  %v1814 = vpack.c.b16 %v1408, %v1401
  %v1815 = vpack.c.b16 %v1409, %v1402
  %v1816 = vpack.c.b16 %v1410, %v1403
  %v1817 = vpack.c.b16 %v1411, %v1404
  %v1818 = vpack.c.b16 %v1419, %v1412
  %v1819 = vpack.c.b16 %v1420, %v1413
  %v1820 = vpack.c.b16 %v1421, %v1414
  %v1821 = vpack.c.b16 %v1422, %v1415
  %v1822 = vpack.c.b16 %v1423, %v1416
  %v1823 = vpack.c.b16 %v1424, %v1417
  %v1824 = vpack.c.b16 %v1425, %v1418
  %v1825 = vpack.c.b16 %v1433, %v1426
  %v1826 = vpack.c.b16 %v1434, %v1427
  %v1827 = vpack.c.b16 %v1435, %v1428
  %v1828 = vpack.c.b16 %v1436, %v1429
  %v1829 = vpack.c.b16 %v1437, %v1430
  %v1830 = vpack.c.b16 %v1438, %v1431
  %v1831 = vpack.c.b16 %v1439, %v1432
  %v1832 = vpack.c.b16 %v1447, %v1440
  %v1833 = vpack.c.b16 %v1448, %v1441
  %v1834 = vpack.c.b16 %v1449, %v1442
  %v1835 = vpack.c.b16 %v1450, %v1443
  %v1836 = vpack.c.b16 %v1451, %v1444
  %v1837 = vpack.c.b16 %v1452, %v1445
  %v1838 = vpack.c.b16 %v1453, %v1446
  %v1839 = vpack.c.b16 %v1461, %v1454
  %v1840 = vpack.c.b16 %v1462, %v1455
  %v1841 = vpack.c.b16 %v1463, %v1456
  %v1842 = vpack.c.b16 %v1464, %v1457
  %v1843 = vpack.c.b16 %v1465, %v1458
  %v1844 = vpack.c.b16 %v1466, %v1459
  %v1845 = vpack.c.b16 %v1467, %v1460
  %v1846 = vpack.c.b16 %v1475, %v1468
  %v1847 = vpack.c.b16 %v1476, %v1469
  %v1848 = vpack.c.b16 %v1477, %v1470
  %v1849 = vpack.c.b16 %v1478, %v1471
  %v1850 = vpack.c.b16 %v1479, %v1472
  %v1851 = vpack.c.b16 %v1480, %v1473
  %v1852 = vpack.c.b16 %v1481, %v1474
  %v1853 = vpack.c.b16 %v1489, %v1482
  %v1854 = vpack.c.b16 %v1490, %v1483
  %v1855 = vpack.c.b16 %v1491, %v1484
  %v1856 = vpack.c.b16 %v1492, %v1485
  %v1857 = vpack.c.b16 %v1493, %v1486
  %v1858 = vpack.c.b16 %v1494, %v1487
  %v1859 = vpack.c.b16 %v1495, %v1488
  %v1860 = vpack.c.b16 %v1503, %v1496
  %v1861 = vpack.c.b16 %v1504, %v1497
  %v1862 = vpack.c.b16 %v1505, %v1498
  %v1863 = vpack.c.b16 %v1506, %v1499
  %v1864 = vpack.c.b16 %v1507, %v1500
  %v1865 = vpack.c.b16 %v1508, %v1501
  %v1866 = vpack.c.b16 %v1509, %v1502
  %v1867 = vpack.c.b16 %v1517, %v1510
  %v1868 = vpack.c.b16 %v1518, %v1511
  %v1869 = vpack.c.b16 %v1519, %v1512
  %v1870 = vpack.c.b16 %v1520, %v1513
  %v1871 = vpack.c.b16 %v1521, %v1514
  %v1872 = vpack.c.b16 %v1522, %v1515
  %v1873 = vpack.c.b16 %v1523, %v1516
  %v1874 = vpack.c.b16 %v1531, %v1524
  %v1875 = vpack.c.b16 %v1532, %v1525
  %v1876 = vpack.c.b16 %v1533, %v1526
  %v1877 = vpack.c.b16 %v1534, %v1527
  %v1878 = vpack.c.b16 %v1535, %v1528
  %v1879 = vpack.c.b16 %v1536, %v1529
  %v1880 = vpack.c.b16 %v1537, %v1530
  %v1881 = vpack.c.b16 %v1545, %v1538
  %v1882 = vpack.c.b16 %v1546, %v1539
  %v1883 = vpack.c.b16 %v1547, %v1540
  %v1884 = vpack.c.b16 %v1548, %v1541
  %v1885 = vpack.c.b16 %v1549, %v1542
  %v1886 = vpack.c.b16 %v1550, %v1543
  %v1887 = vpack.c.b16 %v1551, %v1544
  %2224 = vmatprep.subr.bf16.mxu0 %v1602
  %2225 = vmatpush1.bf16.msra.mxu0 %v1601
  %2226 = vmatprep.subr.bf16.mxu0 %v1595
  %2227 = vmatpush1.bf16.msra.mxu0 %v1594
  %2228 = vmatprep.subr.bf16.mxu0 %v1588
  %2229 = vmatpush1.bf16.msra.mxu0 %v1587
  %2230 = vmatprep.subr.bf16.mxu0 %v1581
  %2231 = vmatpush1.bf16.msra.mxu0 %v1580
  %2232 = vmatprep.subr.bf16.mxu0 %v1574
  %2233 = vmatpush1.bf16.msra.mxu0 %v1573
  %2234 = vmatprep.subr.bf16.mxu0 %v1567
  %2235 = vmatpush1.bf16.msra.mxu0 %v1566
  %2236 = vmatprep.subr.bf16.mxu0 %v1560
  %2237 = vmatpush1.bf16.msra.mxu0 %v1559
  %2238 = vmatprep.subr.bf16.mxu0 %v1553
  %2239 = vmatpush1.bf16.msra.mxu0 %v1552
  %2240 = vmatprep.subr.bf16.mxu0 %v1658
  %2241 = vmatpush2.bf16.msra.mxu0 %v1657
  %2242 = vmatprep.subr.bf16.mxu0 %v1651
  %2243 = vmatpush2.bf16.msra.mxu0 %v1650
  %2244 = vmatprep.subr.bf16.mxu0 %v1644
  %2245 = vmatpush2.bf16.msra.mxu0 %v1643
  %2246 = vmatprep.subr.bf16.mxu0 %v1637
  %2247 = vmatpush2.bf16.msra.mxu0 %v1636
  %2248 = vmatprep.subr.bf16.mxu0 %v1630
  %2249 = vmatpush2.bf16.msra.mxu0 %v1629
  %2250 = vmatprep.subr.bf16.mxu0 %v1623
  %2251 = vmatpush2.bf16.msra.mxu0 %v1622
  %2252 = vmatprep.subr.bf16.mxu0 %v1616
  %2253 = vmatpush2.bf16.msra.mxu0 %v1615
  %2254 = vmatprep.subr.bf16.mxu0 %v1609
  %2255 = vmatpush2.bf16.msra.mxu0 %v1608
  %2256 = vmatprep.mubr.bf16.mxu0 %v70
  %2257 = vmatmul.mubr.bf16.gmra.mxu0 %v69
  %v2258 = vpop.f32.mrf.mxu0
  %v2259 = vadd.f32 %v464, %v2258
  %v2260 = vpop.f32.mrf.mxu0
  %v2261 = vadd.f32 %v468, %v2260
  %v2262 = vpop.f32.mrf.mxu0
  %v2263 = vpop.f32.mrf.mxu0
  %2264 = vdwg.mxu0
  %2265 = vmatprep.subr.bf16.mxu0 %v1714
  %2266 = vmatpush1.bf16.msra.mxu0 %v1713
  %2267 = vmatprep.subr.bf16.mxu0 %v1707
  %2268 = vmatpush1.bf16.msra.mxu0 %v1706
  %2269 = vmatprep.subr.bf16.mxu0 %v1700
  %2270 = vmatpush1.bf16.msra.mxu0 %v1699
  %2271 = vmatprep.subr.bf16.mxu0 %v1693
  %2272 = vmatpush1.bf16.msra.mxu0 %v1692
  %2273 = vmatprep.subr.bf16.mxu0 %v1686
  %2274 = vmatpush1.bf16.msra.mxu0 %v1685
  %2275 = vmatprep.subr.bf16.mxu0 %v1679
  %2276 = vmatpush1.bf16.msra.mxu0 %v1678
  %2277 = vmatprep.subr.bf16.mxu0 %v1672
  %2278 = vmatpush1.bf16.msra.mxu0 %v1671
  %2279 = vmatprep.subr.bf16.mxu0 %v1665
  %2280 = vmatpush1.bf16.msra.mxu0 %v1664
  %2281 = vmatprep.subr.bf16.mxu0 %v1770
  %2282 = vmatpush2.bf16.msra.mxu0 %v1769
  %2283 = vmatprep.subr.bf16.mxu0 %v1763
  %2284 = vmatpush2.bf16.msra.mxu0 %v1762
  %2285 = vmatprep.subr.bf16.mxu0 %v1756
  %2286 = vmatpush2.bf16.msra.mxu0 %v1755
  %2287 = vmatprep.subr.bf16.mxu0 %v1749
  %2288 = vmatpush2.bf16.msra.mxu0 %v1748
  %2289 = vmatprep.subr.bf16.mxu0 %v1742
  %2290 = vmatpush2.bf16.msra.mxu0 %v1741
  %2291 = vmatprep.subr.bf16.mxu0 %v1735
  %2292 = vmatpush2.bf16.msra.mxu0 %v1734
  %2293 = vmatprep.subr.bf16.mxu0 %v1728
  %2294 = vmatpush2.bf16.msra.mxu0 %v1727
  %2295 = vmatprep.subr.bf16.mxu0 %v1721
  %2296 = vmatpush2.bf16.msra.mxu0 %v1720
  %2297 = vmatprep.mubr.bf16.mxu0 %v72
  %2298 = vmatmul.mubr.bf16.gmra.mxu0 %v71
  %v2299 = vpop.f32.mrf.mxu0
  %v2300 = vadd.f32 %v2259, %v2299
  %v2301 = vpop.f32.mrf.mxu0
  %v2302 = vadd.f32 %v2261, %v2301
  %v2303 = vpop.f32.mrf.mxu0
  %v2304 = vpop.f32.mrf.mxu0
  %2305 = vdwg.mxu0
  %2306 = vmatprep.subr.bf16.mxu0 %v1826
  %2307 = vmatpush1.bf16.msra.mxu0 %v1825
  %2308 = vmatprep.subr.bf16.mxu0 %v1819
  %2309 = vmatpush1.bf16.msra.mxu0 %v1818
  %2310 = vmatprep.subr.bf16.mxu0 %v1812
  %2311 = vmatpush1.bf16.msra.mxu0 %v1811
  %2312 = vmatprep.subr.bf16.mxu0 %v1805
  %2313 = vmatpush1.bf16.msra.mxu0 %v1804
  %2314 = vmatprep.subr.bf16.mxu0 %v1798
  %2315 = vmatpush1.bf16.msra.mxu0 %v1797
  %2316 = vmatprep.subr.bf16.mxu0 %v1791
  %2317 = vmatpush1.bf16.msra.mxu0 %v1790
  %2318 = vmatprep.subr.bf16.mxu0 %v1784
  %2319 = vmatpush1.bf16.msra.mxu0 %v1783
  %2320 = vmatprep.subr.bf16.mxu0 %v1777
  %2321 = vmatpush1.bf16.msra.mxu0 %v1776
  %2322 = vmatprep.subr.bf16.mxu0 %v1882
  %2323 = vmatpush2.bf16.msra.mxu0 %v1881
  %2324 = vmatprep.subr.bf16.mxu0 %v1875
  %2325 = vmatpush2.bf16.msra.mxu0 %v1874
  %2326 = vmatprep.subr.bf16.mxu0 %v1868
  %2327 = vmatpush2.bf16.msra.mxu0 %v1867
  %2328 = vmatprep.subr.bf16.mxu0 %v1861
  %2329 = vmatpush2.bf16.msra.mxu0 %v1860
  %2330 = vmatprep.subr.bf16.mxu0 %v1854
  %2331 = vmatpush2.bf16.msra.mxu0 %v1853
  %2332 = vmatprep.subr.bf16.mxu0 %v1847
  %2333 = vmatpush2.bf16.msra.mxu0 %v1846
  %2334 = vmatprep.subr.bf16.mxu0 %v1840
  %2335 = vmatpush2.bf16.msra.mxu0 %v1839
  %2336 = vmatprep.subr.bf16.mxu0 %v1833
  %2337 = vmatpush2.bf16.msra.mxu0 %v1832
  %2338 = vmatprep.mubr.bf16.mxu0 %v74
  %2339 = vmatmul.mubr.bf16.gmra.mxu0 %v73
  %v2340 = vpop.f32.mrf.mxu0
  %v2341 = vadd.f32 %v2300, %v2340
  %v2342 = vpop.f32.mrf.mxu0
  %v2343 = vadd.f32 %v2302, %v2342
  %v2344 = vpop.f32.mrf.mxu0
  %v2345 = vpop.f32.mrf.mxu0
  %2346 = vdwg.mxu0
  %2347 = vmatprep.subr.bf16.mxu0 %v1604
  %2348 = vmatpush1.bf16.msra.mxu0 %v1603
  %2349 = vmatprep.subr.bf16.mxu0 %v1597
  %2350 = vmatpush1.bf16.msra.mxu0 %v1596
  %2351 = vmatprep.subr.bf16.mxu0 %v1590
  %2352 = vmatpush1.bf16.msra.mxu0 %v1589
  %2353 = vmatprep.subr.bf16.mxu0 %v1583
  %2354 = vmatpush1.bf16.msra.mxu0 %v1582
  %2355 = vmatprep.subr.bf16.mxu0 %v1576
  %2356 = vmatpush1.bf16.msra.mxu0 %v1575
  %2357 = vmatprep.subr.bf16.mxu0 %v1569
  %2358 = vmatpush1.bf16.msra.mxu0 %v1568
  %2359 = vmatprep.subr.bf16.mxu0 %v1562
  %2360 = vmatpush1.bf16.msra.mxu0 %v1561
  %2361 = vmatprep.subr.bf16.mxu0 %v1555
  %2362 = vmatpush1.bf16.msra.mxu0 %v1554
  %2363 = vmatprep.subr.bf16.mxu0 %v1660
  %2364 = vmatpush2.bf16.msra.mxu0 %v1659
  %2365 = vmatprep.subr.bf16.mxu0 %v1653
  %2366 = vmatpush2.bf16.msra.mxu0 %v1652
  %2367 = vmatprep.subr.bf16.mxu0 %v1646
  %2368 = vmatpush2.bf16.msra.mxu0 %v1645
  %2369 = vmatprep.subr.bf16.mxu0 %v1639
  %2370 = vmatpush2.bf16.msra.mxu0 %v1638
  %2371 = vmatprep.subr.bf16.mxu0 %v1632
  %2372 = vmatpush2.bf16.msra.mxu0 %v1631
  %2373 = vmatprep.subr.bf16.mxu0 %v1625
  %2374 = vmatpush2.bf16.msra.mxu0 %v1624
  %2375 = vmatprep.subr.bf16.mxu0 %v1618
  %2376 = vmatpush2.bf16.msra.mxu0 %v1617
  %2377 = vmatprep.subr.bf16.mxu0 %v1611
  %2378 = vmatpush2.bf16.msra.mxu0 %v1610
  %2379 = vmatprep.mubr.bf16.mxu0 %v70
  %2380 = vmatmul.mubr.bf16.gmra.mxu0 %v69
  %v2381 = vpop.f32.mrf.mxu0
  %v2382 = vadd.f32 %v472, %v2381
  %v2383 = vpop.f32.mrf.mxu0
  %v2384 = vadd.f32 %v476, %v2383
  %v2385 = vpop.f32.mrf.mxu0
  %v2386 = vpop.f32.mrf.mxu0
  %2387 = vdwg.mxu0
  %2388 = vmatprep.subr.bf16.mxu0 %v1716
  %2389 = vmatpush1.bf16.msra.mxu0 %v1715
  %2390 = vmatprep.subr.bf16.mxu0 %v1709
  %2391 = vmatpush1.bf16.msra.mxu0 %v1708
  %2392 = vmatprep.subr.bf16.mxu0 %v1702
  %2393 = vmatpush1.bf16.msra.mxu0 %v1701
  %2394 = vmatprep.subr.bf16.mxu0 %v1695
  %2395 = vmatpush1.bf16.msra.mxu0 %v1694
  %2396 = vmatprep.subr.bf16.mxu0 %v1688
  %2397 = vmatpush1.bf16.msra.mxu0 %v1687
  %2398 = vmatprep.subr.bf16.mxu0 %v1681
  %2399 = vmatpush1.bf16.msra.mxu0 %v1680
  %2400 = vmatprep.subr.bf16.mxu0 %v1674
  %2401 = vmatpush1.bf16.msra.mxu0 %v1673
  %2402 = vmatprep.subr.bf16.mxu0 %v1667
  %2403 = vmatpush1.bf16.msra.mxu0 %v1666
  %2404 = vmatprep.subr.bf16.mxu0 %v1772
  %2405 = vmatpush2.bf16.msra.mxu0 %v1771
  %2406 = vmatprep.subr.bf16.mxu0 %v1765
  %2407 = vmatpush2.bf16.msra.mxu0 %v1764
  %2408 = vmatprep.subr.bf16.mxu0 %v1758
  %2409 = vmatpush2.bf16.msra.mxu0 %v1757
  %2410 = vmatprep.subr.bf16.mxu0 %v1751
  %2411 = vmatpush2.bf16.msra.mxu0 %v1750
  %2412 = vmatprep.subr.bf16.mxu0 %v1744
  %2413 = vmatpush2.bf16.msra.mxu0 %v1743
  %2414 = vmatprep.subr.bf16.mxu0 %v1737
  %2415 = vmatpush2.bf16.msra.mxu0 %v1736
  %2416 = vmatprep.subr.bf16.mxu0 %v1730
  %2417 = vmatpush2.bf16.msra.mxu0 %v1729
  %2418 = vmatprep.subr.bf16.mxu0 %v1723
  %2419 = vmatpush2.bf16.msra.mxu0 %v1722
  %2420 = vmatprep.mubr.bf16.mxu0 %v72
  %2421 = vmatmul.mubr.bf16.gmra.mxu0 %v71
  %v2422 = vpop.f32.mrf.mxu0
  %v2423 = vadd.f32 %v2382, %v2422
  %v2424 = vpop.f32.mrf.mxu0
  %v2425 = vadd.f32 %v2384, %v2424
  %v2426 = vpop.f32.mrf.mxu0
  %v2427 = vpop.f32.mrf.mxu0
  %2428 = vdwg.mxu0
  %2429 = vmatprep.subr.bf16.mxu0 %v1828
  %2430 = vmatpush1.bf16.msra.mxu0 %v1827
  %2431 = vmatprep.subr.bf16.mxu0 %v1821
  %2432 = vmatpush1.bf16.msra.mxu0 %v1820
  %2433 = vmatprep.subr.bf16.mxu0 %v1814
  %2434 = vmatpush1.bf16.msra.mxu0 %v1813
  %2435 = vmatprep.subr.bf16.mxu0 %v1807
  %2436 = vmatpush1.bf16.msra.mxu0 %v1806
  %2437 = vmatprep.subr.bf16.mxu0 %v1800
  %2438 = vmatpush1.bf16.msra.mxu0 %v1799
  %2439 = vmatprep.subr.bf16.mxu0 %v1793
  %2440 = vmatpush1.bf16.msra.mxu0 %v1792
  %2441 = vmatprep.subr.bf16.mxu0 %v1786
  %2442 = vmatpush1.bf16.msra.mxu0 %v1785
  %2443 = vmatprep.subr.bf16.mxu0 %v1779
  %2444 = vmatpush1.bf16.msra.mxu0 %v1778
  %2445 = vmatprep.subr.bf16.mxu0 %v1884
  %2446 = vmatpush2.bf16.msra.mxu0 %v1883
  %2447 = vmatprep.subr.bf16.mxu0 %v1877
  %2448 = vmatpush2.bf16.msra.mxu0 %v1876
  %2449 = vmatprep.subr.bf16.mxu0 %v1870
  %2450 = vmatpush2.bf16.msra.mxu0 %v1869
  %2451 = vmatprep.subr.bf16.mxu0 %v1863
  %2452 = vmatpush2.bf16.msra.mxu0 %v1862
  %2453 = vmatprep.subr.bf16.mxu0 %v1856
  %2454 = vmatpush2.bf16.msra.mxu0 %v1855
  %2455 = vmatprep.subr.bf16.mxu0 %v1849
  %2456 = vmatpush2.bf16.msra.mxu0 %v1848
  %2457 = vmatprep.subr.bf16.mxu0 %v1842
  %2458 = vmatpush2.bf16.msra.mxu0 %v1841
  %2459 = vmatprep.subr.bf16.mxu0 %v1835
  %2460 = vmatpush2.bf16.msra.mxu0 %v1834
  %2461 = vmatprep.mubr.bf16.mxu0 %v74
  %2462 = vmatmul.mubr.bf16.gmra.mxu0 %v73
  %v2463 = vpop.f32.mrf.mxu0
  %v2464 = vadd.f32 %v2423, %v2463
  %v2465 = vpop.f32.mrf.mxu0
  %v2466 = vadd.f32 %v2425, %v2465
  %v2467 = vpop.f32.mrf.mxu0
  %v2468 = vpop.f32.mrf.mxu0
  %2469 = vdwg.mxu0
  %2470 = vmatprep.subr.bf16.mxu0 %v1606
  %2471 = vmatpush1.bf16.msra.mxu0 %v1605
  %2472 = vmatprep.subr.bf16.mxu0 %v1599
  %2473 = vmatpush1.bf16.msra.mxu0 %v1598
  %2474 = vmatprep.subr.bf16.mxu0 %v1592
  %2475 = vmatpush1.bf16.msra.mxu0 %v1591
  %2476 = vmatprep.subr.bf16.mxu0 %v1585
  %2477 = vmatpush1.bf16.msra.mxu0 %v1584
  %2478 = vmatprep.subr.bf16.mxu0 %v1578
  %2479 = vmatpush1.bf16.msra.mxu0 %v1577
  %2480 = vmatprep.subr.bf16.mxu0 %v1571
  %2481 = vmatpush1.bf16.msra.mxu0 %v1570
  %2482 = vmatprep.subr.bf16.mxu0 %v1564
  %2483 = vmatpush1.bf16.msra.mxu0 %v1563
  %2484 = vmatprep.subr.bf16.mxu0 %v1557
  %2485 = vmatpush1.bf16.msra.mxu0 %v1556
  %2486 = vmatprep.subr.bf16.mxu0 %v1662
  %2487 = vmatpush2.bf16.msra.mxu0 %v1661
  %2488 = vmatprep.subr.bf16.mxu0 %v1655
  %2489 = vmatpush2.bf16.msra.mxu0 %v1654
  %2490 = vmatprep.subr.bf16.mxu0 %v1648
  %2491 = vmatpush2.bf16.msra.mxu0 %v1647
  %2492 = vmatprep.subr.bf16.mxu0 %v1641
  %2493 = vmatpush2.bf16.msra.mxu0 %v1640
  %2494 = vmatprep.subr.bf16.mxu0 %v1634
  %2495 = vmatpush2.bf16.msra.mxu0 %v1633
  %2496 = vmatprep.subr.bf16.mxu0 %v1627
  %2497 = vmatpush2.bf16.msra.mxu0 %v1626
  %2498 = vmatprep.subr.bf16.mxu0 %v1620
  %2499 = vmatpush2.bf16.msra.mxu0 %v1619
  %2500 = vmatprep.subr.bf16.mxu0 %v1613
  %2501 = vmatpush2.bf16.msra.mxu0 %v1612
  %2502 = vmatprep.mubr.bf16.mxu0 %v70
  %2503 = vmatmul.mubr.bf16.gmra.mxu0 %v69
  %v2504 = vpop.f32.mrf.mxu0
  %v2505 = vadd.f32 %v480, %v2504
  %v2506 = vpop.f32.mrf.mxu0
  %v2507 = vadd.f32 %v484, %v2506
  %v2508 = vpop.f32.mrf.mxu0
  %v2509 = vpop.f32.mrf.mxu0
  %2510 = vdwg.mxu0
  %2511 = vmatprep.subr.bf16.mxu0 %v1718
  %2512 = vmatpush1.bf16.msra.mxu0 %v1717
  %2513 = vmatprep.subr.bf16.mxu0 %v1711
  %2514 = vmatpush1.bf16.msra.mxu0 %v1710
  %2515 = vmatprep.subr.bf16.mxu0 %v1704
  %2516 = vmatpush1.bf16.msra.mxu0 %v1703
  %2517 = vmatprep.subr.bf16.mxu0 %v1697
  %2518 = vmatpush1.bf16.msra.mxu0 %v1696
  %2519 = vmatprep.subr.bf16.mxu0 %v1690
  %2520 = vmatpush1.bf16.msra.mxu0 %v1689
  %2521 = vmatprep.subr.bf16.mxu0 %v1683
  %2522 = vmatpush1.bf16.msra.mxu0 %v1682
  %2523 = vmatprep.subr.bf16.mxu0 %v1676
  %2524 = vmatpush1.bf16.msra.mxu0 %v1675
  %2525 = vmatprep.subr.bf16.mxu0 %v1669
  %2526 = vmatpush1.bf16.msra.mxu0 %v1668
  %2527 = vmatprep.subr.bf16.mxu0 %v1774
  %2528 = vmatpush2.bf16.msra.mxu0 %v1773
  %2529 = vmatprep.subr.bf16.mxu0 %v1767
  %2530 = vmatpush2.bf16.msra.mxu0 %v1766
  %2531 = vmatprep.subr.bf16.mxu0 %v1760
  %2532 = vmatpush2.bf16.msra.mxu0 %v1759
  %2533 = vmatprep.subr.bf16.mxu0 %v1753
  %2534 = vmatpush2.bf16.msra.mxu0 %v1752
  %2535 = vmatprep.subr.bf16.mxu0 %v1746
  %2536 = vmatpush2.bf16.msra.mxu0 %v1745
  %2537 = vmatprep.subr.bf16.mxu0 %v1739
  %2538 = vmatpush2.bf16.msra.mxu0 %v1738
  %2539 = vmatprep.subr.bf16.mxu0 %v1732
  %2540 = vmatpush2.bf16.msra.mxu0 %v1731
  %2541 = vmatprep.subr.bf16.mxu0 %v1725
  %2542 = vmatpush2.bf16.msra.mxu0 %v1724
  %2543 = vmatprep.mubr.bf16.mxu0 %v72
  %2544 = vmatmul.mubr.bf16.gmra.mxu0 %v71
  %v2545 = vpop.f32.mrf.mxu0
  %v2546 = vadd.f32 %v2505, %v2545
  %v2547 = vpop.f32.mrf.mxu0
  %v2548 = vadd.f32 %v2507, %v2547
  %v2549 = vpop.f32.mrf.mxu0
  %v2550 = vpop.f32.mrf.mxu0
  %2551 = vdwg.mxu0
  %2552 = vmatprep.subr.bf16.mxu0 %v1830
  %2553 = vmatpush1.bf16.msra.mxu0 %v1829
  %2554 = vmatprep.subr.bf16.mxu0 %v1823
  %2555 = vmatpush1.bf16.msra.mxu0 %v1822
  %2556 = vmatprep.subr.bf16.mxu0 %v1816
  %2557 = vmatpush1.bf16.msra.mxu0 %v1815
  %2558 = vmatprep.subr.bf16.mxu0 %v1809
  %2559 = vmatpush1.bf16.msra.mxu0 %v1808
  %2560 = vmatprep.subr.bf16.mxu0 %v1802
  %2561 = vmatpush1.bf16.msra.mxu0 %v1801
  %2562 = vmatprep.subr.bf16.mxu0 %v1795
  %2563 = vmatpush1.bf16.msra.mxu0 %v1794
  %2564 = vmatprep.subr.bf16.mxu0 %v1788
  %2565 = vmatpush1.bf16.msra.mxu0 %v1787
  %2566 = vmatprep.subr.bf16.mxu0 %v1781
  %2567 = vmatpush1.bf16.msra.mxu0 %v1780
  %2568 = vmatprep.subr.bf16.mxu0 %v1886
  %2569 = vmatpush2.bf16.msra.mxu0 %v1885
  %2570 = vmatprep.subr.bf16.mxu0 %v1879
  %2571 = vmatpush2.bf16.msra.mxu0 %v1878
  %2572 = vmatprep.subr.bf16.mxu0 %v1872
  %2573 = vmatpush2.bf16.msra.mxu0 %v1871
  %2574 = vmatprep.subr.bf16.mxu0 %v1865
  %2575 = vmatpush2.bf16.msra.mxu0 %v1864
  %2576 = vmatprep.subr.bf16.mxu0 %v1858
  %2577 = vmatpush2.bf16.msra.mxu0 %v1857
  %2578 = vmatprep.subr.bf16.mxu0 %v1851
  %2579 = vmatpush2.bf16.msra.mxu0 %v1850
  %2580 = vmatprep.subr.bf16.mxu0 %v1844
  %2581 = vmatpush2.bf16.msra.mxu0 %v1843
  %2582 = vmatprep.subr.bf16.mxu0 %v1837
  %2583 = vmatpush2.bf16.msra.mxu0 %v1836
  %2584 = vmatprep.mubr.bf16.mxu0 %v74
  %2585 = vmatmul.mubr.bf16.gmra.mxu0 %v73
  %v2586 = vpop.f32.mrf.mxu0
  %v2587 = vadd.f32 %v2546, %v2586
  %v2588 = vpop.f32.mrf.mxu0
  %v2589 = vadd.f32 %v2548, %v2588
  %v2590 = vpop.f32.mrf.mxu0
  %v2591 = vpop.f32.mrf.mxu0
  %2592 = vdwg.mxu0
  %2593 = vmatprep.subr.bf16.mxu0 0
  %2594 = vmatpush1.bf16.msra.mxu0 %v1607
  %2595 = vmatprep.subr.bf16.mxu0 0
  %2596 = vmatpush1.bf16.msra.mxu0 %v1600
  %2597 = vmatprep.subr.bf16.mxu0 0
  %2598 = vmatpush1.bf16.msra.mxu0 %v1593
  %2599 = vmatprep.subr.bf16.mxu0 0
  %2600 = vmatpush1.bf16.msra.mxu0 %v1586
  %2601 = vmatprep.subr.bf16.mxu0 0
  %2602 = vmatpush1.bf16.msra.mxu0 %v1579
  %2603 = vmatprep.subr.bf16.mxu0 0
  %2604 = vmatpush1.bf16.msra.mxu0 %v1572
  %2605 = vmatprep.subr.bf16.mxu0 0
  %2606 = vmatpush1.bf16.msra.mxu0 %v1565
  %2607 = vmatprep.subr.bf16.mxu0 0
  %2608 = vmatpush1.bf16.msra.mxu0 %v1558
  %2609 = vmatprep.subr.bf16.mxu0 0
  %2610 = vmatpush2.bf16.msra.mxu0 %v1663
  %2611 = vmatprep.subr.bf16.mxu0 0
  %2612 = vmatpush2.bf16.msra.mxu0 %v1656
  %2613 = vmatprep.subr.bf16.mxu0 0
  %2614 = vmatpush2.bf16.msra.mxu0 %v1649
  %2615 = vmatprep.subr.bf16.mxu0 0
  %2616 = vmatpush2.bf16.msra.mxu0 %v1642
  %2617 = vmatprep.subr.bf16.mxu0 0
  %2618 = vmatpush2.bf16.msra.mxu0 %v1635
  %2619 = vmatprep.subr.bf16.mxu0 0
  %2620 = vmatpush2.bf16.msra.mxu0 %v1628
  %2621 = vmatprep.subr.bf16.mxu0 0
  %2622 = vmatpush2.bf16.msra.mxu0 %v1621
  %2623 = vmatprep.subr.bf16.mxu0 0
  %2624 = vmatpush2.bf16.msra.mxu0 %v1614
  %2625 = vmatprep.mubr.bf16.mxu0 %v70
  %2626 = vmatmul.mubr.bf16.gmra.mxu0 %v69
  %v2627 = vpop.f32.mrf.mxu0
  %v2628 = vadd.f32 %v488, %v2627
  %v2629 = vpop.f32.mrf.mxu0
  %v2630 = vpop.f32.mrf.mxu0
  %v2631 = vpop.f32.mrf.mxu0
  %2632 = vdwg.mxu0
  %2633 = vmatprep.subr.bf16.mxu0 0
  %2634 = vmatpush1.bf16.msra.mxu0 %v1719
  %2635 = vmatprep.subr.bf16.mxu0 0
  %2636 = vmatpush1.bf16.msra.mxu0 %v1712
  %2637 = vmatprep.subr.bf16.mxu0 0
  %2638 = vmatpush1.bf16.msra.mxu0 %v1705
  %2639 = vmatprep.subr.bf16.mxu0 0
  %2640 = vmatpush1.bf16.msra.mxu0 %v1698
  %2641 = vmatprep.subr.bf16.mxu0 0
  %2642 = vmatpush1.bf16.msra.mxu0 %v1691
  %2643 = vmatprep.subr.bf16.mxu0 0
  %2644 = vmatpush1.bf16.msra.mxu0 %v1684
  %2645 = vmatprep.subr.bf16.mxu0 0
  %2646 = vmatpush1.bf16.msra.mxu0 %v1677
  %2647 = vmatprep.subr.bf16.mxu0 0
  %2648 = vmatpush1.bf16.msra.mxu0 %v1670
  %2649 = vmatprep.subr.bf16.mxu0 0
  %2650 = vmatpush2.bf16.msra.mxu0 %v1775
  %2651 = vmatprep.subr.bf16.mxu0 0
  %2652 = vmatpush2.bf16.msra.mxu0 %v1768
  %2653 = vmatprep.subr.bf16.mxu0 0
  %2654 = vmatpush2.bf16.msra.mxu0 %v1761
  %2655 = vmatprep.subr.bf16.mxu0 0
  %2656 = vmatpush2.bf16.msra.mxu0 %v1754
  %2657 = vmatprep.subr.bf16.mxu0 0
  %2658 = vmatpush2.bf16.msra.mxu0 %v1747
  %2659 = vmatprep.subr.bf16.mxu0 0
  %2660 = vmatpush2.bf16.msra.mxu0 %v1740
  %2661 = vmatprep.subr.bf16.mxu0 0
  %2662 = vmatpush2.bf16.msra.mxu0 %v1733
  %2663 = vmatprep.subr.bf16.mxu0 0
  %2664 = vmatpush2.bf16.msra.mxu0 %v1726
  %2665 = vmatprep.mubr.bf16.mxu0 %v72
  %2666 = vmatmul.mubr.bf16.gmra.mxu0 %v71
  %v2667 = vpop.f32.mrf.mxu0
  %v2668 = vadd.f32 %v2628, %v2667
  %v2669 = vpop.f32.mrf.mxu0
  %v2670 = vpop.f32.mrf.mxu0
  %v2671 = vpop.f32.mrf.mxu0
  %2672 = vdwg.mxu0
  %2673 = vmatprep.subr.bf16.mxu0 0
  %2674 = vmatpush1.bf16.msra.mxu0 %v1831
  %2675 = vmatprep.subr.bf16.mxu0 0
  %2676 = vmatpush1.bf16.msra.mxu0 %v1824
  %2677 = vmatprep.subr.bf16.mxu0 0
  %2678 = vmatpush1.bf16.msra.mxu0 %v1817
  %2679 = vmatprep.subr.bf16.mxu0 0
  %2680 = vmatpush1.bf16.msra.mxu0 %v1810
  %2681 = vmatprep.subr.bf16.mxu0 0
  %2682 = vmatpush1.bf16.msra.mxu0 %v1803
  %2683 = vmatprep.subr.bf16.mxu0 0
  %2684 = vmatpush1.bf16.msra.mxu0 %v1796
  %2685 = vmatprep.subr.bf16.mxu0 0
  %2686 = vmatpush1.bf16.msra.mxu0 %v1789
  %2687 = vmatprep.subr.bf16.mxu0 0
  %2688 = vmatpush1.bf16.msra.mxu0 %v1782
  %2689 = vmatprep.subr.bf16.mxu0 0
  %2690 = vmatpush2.bf16.msra.mxu0 %v1887
  %2691 = vmatprep.subr.bf16.mxu0 0
  %2692 = vmatpush2.bf16.msra.mxu0 %v1880
  %2693 = vmatprep.subr.bf16.mxu0 0
  %2694 = vmatpush2.bf16.msra.mxu0 %v1873
  %2695 = vmatprep.subr.bf16.mxu0 0
  %2696 = vmatpush2.bf16.msra.mxu0 %v1866
  %2697 = vmatprep.subr.bf16.mxu0 0
  %2698 = vmatpush2.bf16.msra.mxu0 %v1859
  %2699 = vmatprep.subr.bf16.mxu0 0
  %2700 = vmatpush2.bf16.msra.mxu0 %v1852
  %2701 = vmatprep.subr.bf16.mxu0 0
  %2702 = vmatpush2.bf16.msra.mxu0 %v1845
  %2703 = vmatprep.subr.bf16.mxu0 0
  %2704 = vmatpush2.bf16.msra.mxu0 %v1838
  %2705 = vmatprep.mubr.bf16.mxu0 %v74
  %2706 = vmatmul.mubr.bf16.gmra.mxu0 %v73
  %v2707 = vpop.f32.mrf.mxu0
  %v2708 = vadd.f32 %v2668, %v2707
  %v2709 = vpop.f32.mrf.mxu0
  %v2710 = vpop.f32.mrf.mxu0
  %v2711 = vpop.f32.mrf.mxu0
  %2712 = vdwg.mxu0
  %v2713 = vmax.f32 %v2341, 0.0
  %v2714 = vmax.f32 %v2343, 0.0
  %v2715 = vmax.f32 %v2464, 0.0
  %v2716 = vmax.f32 %v2466, 0.0
  %v2717 = vmax.f32 %v2587, 0.0
  %v2718 = vmax.f32 %v2589, 0.0
  %v2719 = vmax.f32 %v2708, 0.0
  %v2720 = vpack.c.bf16 %v2713, %v2713
  %v2721 = vpack.c.bf16 %v2714, %v2714
  %v2722 = vpack.c.bf16 %v2715, %v2715
  %v2723 = vpack.c.bf16 %v2716, %v2716
  %v2724 = vpack.c.bf16 %v2717, %v2717
  %v2725 = vpack.c.bf16 %v2718, %v2718
  %v2726 = vpack.c.bf16 %v2719, %v2719
  %v2727 = vld [vmem:[%s4] sm:$0xff]
  %v2728 = vld [vmem:[%s4 + $0x8] sm:$0xf]
  %v2729 = vld [vmem:[%s4 + $0xc] sm:$0xff]
  %v2730 = vld [vmem:[%s4 + $0x14] sm:$0xf]
  %v2731 = vld [vmem:[%s4 + $0x18] sm:$0xff]
  %v2732 = vld [vmem:[%s4 + $0x20] sm:$0xf]
  %v2733 = vld [vmem:[%s4 + $0x24] sm:$0xff]
  %v2734 = vld [vmem:[%s4 + $0x2c] sm:$0xf]
  %v2735 = vld [vmem:[%s4 + $0x30] sm:$0xff]
  %v2736 = vld [vmem:[%s4 + $0x38] sm:$0xf]
  %v2737 = vld [vmem:[%s4 + $0x3c] sm:$0xff]
  %v2738 = vld [vmem:[%s4 + $0x44] sm:$0xf]
  %v2739 = vld [vmem:[%s4 + $0x48] sm:$0xff]
  %v2740 = vld [vmem:[%s4 + $0x50] sm:$0xf]
  %v2741 = vld [vmem:[%s4 + $0x54] sm:$0xff]
  %v2742 = vld [vmem:[%s4 + $0x5c] sm:$0xf]
  %v2743 = vld [vmem:[%s4 + $0x60] sm:$0xff]
  %v2744 = vld [vmem:[%s4 + $0x68] sm:$0xf]
  %v2745 = vld [vmem:[%s4 + $0x6c] sm:$0xff]
  %v2746 = vld [vmem:[%s4 + $0x74] sm:$0xf]
  %v2747 = vld [vmem:[%s4 + $0x78] sm:$0xff]
  %v2748 = vld [vmem:[%s4 + $0x80] sm:$0xf]
  %v2749 = vld [vmem:[%s4 + $0x84] sm:$0xff]
  %v2750 = vld [vmem:[%s4 + $0x8c] sm:$0xf]
  %v2751 = vld [vmem:[%s4 + $0x90] sm:$0xff]
  %v2752 = vld [vmem:[%s4 + $0x98] sm:$0xf]
  %v2753 = vld [vmem:[%s4 + $0x9c] sm:$0xff]
  %v2754 = vld [vmem:[%s4 + $0xa4] sm:$0xf]
  %v2755 = vld [vmem:[%s4 + $0xa8] sm:$0xff]
  %v2756 = vld [vmem:[%s4 + $0xb0] sm:$0xf]
  %v2757 = vld [vmem:[%s4 + $0xb4] sm:$0xff]
  %v2758 = vld [vmem:[%s4 + $0xbc] sm:$0xf]
  %v2759 = vld [vmem:[%s4 + $0xc0] sm:$0xff]
  %v2760 = vld [vmem:[%s4 + $0xc8] sm:$0xf]
  %v2761 = vld [vmem:[%s4 + $0xcc] sm:$0xff]
  %v2762 = vld [vmem:[%s4 + $0xd4] sm:$0xf]
  %v2763 = vld [vmem:[%s4 + $0xd8] sm:$0xff]
  %v2764 = vld [vmem:[%s4 + $0xe0] sm:$0xf]
  %v2765 = vld [vmem:[%s4 + $0xe4] sm:$0xff]
  %v2766 = vld [vmem:[%s4 + $0xec] sm:$0xf]
  %v2767 = vld [vmem:[%s4 + $0xf0] sm:$0xff]
  %v2768 = vld [vmem:[%s4 + $0xf8] sm:$0xf]
  %v2769 = vld [vmem:[%s4 + $0xfc] sm:$0xff]
  %v2770 = vld [vmem:[%s4 + $0x104] sm:$0xf]
  %v2771 = vld [vmem:[%s4 + $0x108] sm:$0xff]
  %v2772 = vld [vmem:[%s4 + $0x110] sm:$0xf]
  %v2773 = vld [vmem:[%s4 + $0x114] sm:$0xff]
  %v2774 = vld [vmem:[%s4 + $0x11c] sm:$0xf]
  %v2775 = vld [vmem:[%s4 + $0x120] sm:$0xff]
  %v2776 = vld [vmem:[%s4 + $0x128] sm:$0xf]
  %v2777 = vld [vmem:[%s4 + $0x12c] sm:$0xff]
  %v2778 = vld [vmem:[%s4 + $0x134] sm:$0xf]
  %v2779 = vld [vmem:[%s4 + $0x138] sm:$0xff]
  %v2780 = vld [vmem:[%s4 + $0x140] sm:$0xf]
  %v2781 = vld [vmem:[%s4 + $0x144] sm:$0xff]
  %v2782 = vld [vmem:[%s4 + $0x14c] sm:$0xf]
  %v2783 = vld [vmem:[%s4 + $0x150] sm:$0xff]
  %v2784 = vld [vmem:[%s4 + $0x158] sm:$0xf]
  %v2785 = vld [vmem:[%s4 + $0x15c] sm:$0xff]
  %v2786 = vld [vmem:[%s4 + $0x164] sm:$0xf]
  %v2787 = vld [vmem:[%s4 + $0x168] sm:$0xff]
  %v2788 = vld [vmem:[%s4 + $0x170] sm:$0xf]
  %v2789 = vld [vmem:[%s4 + $0x174] sm:$0xff]
  %v2790 = vld [vmem:[%s4 + $0x17c] sm:$0xf]
  %v2791 = vld [vmem:[%s4 + $0x180] sm:$0xff]
  %v2792 = vld [vmem:[%s4 + $0x188] sm:$0xf]
  %v2793 = vld [vmem:[%s4 + $0x18c] sm:$0xff]
  %v2794 = vld [vmem:[%s4 + $0x194] sm:$0xf]
  %v2795 = vld [vmem:[%s4 + $0x198] sm:$0xff]
  %v2796 = vld [vmem:[%s4 + $0x1a0] sm:$0xf]
  %v2797 = vld [vmem:[%s4 + $0x1a4] sm:$0xff]
  %v2798 = vld [vmem:[%s4 + $0x1ac] sm:$0xf]
  %v2799 = vld [vmem:[%s4 + $0x1b0] sm:$0xff]
  %v2800 = vld [vmem:[%s4 + $0x1b8] sm:$0xf]
  %v2801 = vld [vmem:[%s4 + $0x1bc] sm:$0xff]
  %v2802 = vld [vmem:[%s4 + $0x1c4] sm:$0xf]
  %v2803 = vld [vmem:[%s4 + $0x1c8] sm:$0xff]
  %v2804 = vld [vmem:[%s4 + $0x1d0] sm:$0xf]
  %v2805 = vld [vmem:[%s4 + $0x1d4] sm:$0xff]
  %v2806 = vld [vmem:[%s4 + $0x1dc] sm:$0xf]
  %v2807 = vld [vmem:[%s4 + $0x1e0] sm:$0xff]
  %v2808 = vld [vmem:[%s4 + $0x1e8] sm:$0xf]
  %v2809 = vld [vmem:[%s4 + $0x1ec] sm:$0xff]
  %v2810 = vld [vmem:[%s4 + $0x1f4] sm:$0xf]
  %v2811 = vld [vmem:[%s4 + $0x1f8] sm:$0xff]
  %v2812 = vld [vmem:[%s4 + $0x200] sm:$0xf]
  %v2813 = vld [vmem:[%s4 + $0x204] sm:$0xff]
  %v2814 = vld [vmem:[%s4 + $0x20c] sm:$0xf]
  %v2815 = vld [vmem:[%s4 + $0x210] sm:$0xff]
  %v2816 = vld [vmem:[%s4 + $0x218] sm:$0xf]
  %v2817 = vld [vmem:[%s4 + $0x21c] sm:$0xff]
  %v2818 = vld [vmem:[%s4 + $0x224] sm:$0xf]
  %v2819 = vld [vmem:[%s4 + $0x228] sm:$0xff]
  %v2820 = vld [vmem:[%s4 + $0x230] sm:$0xf]
  %v2821 = vld [vmem:[%s4 + $0x234] sm:$0xff]
  %v2822 = vld [vmem:[%s4 + $0x23c] sm:$0xf]
  %v2823 = vld [vmem:[%s4 + $0x240] sm:$0xff]
  %v2824 = vld [vmem:[%s4 + $0x248] sm:$0xf]
  %v2825 = vld [vmem:[%s4 + $0x24c] sm:$0xff]
  %v2826 = vld [vmem:[%s4 + $0x254] sm:$0xf]
  %v2827 = vld [vmem:[%s4 + $0x258] sm:$0xff]
  %v2828 = vld [vmem:[%s4 + $0x260] sm:$0xf]
  %v2829 = vld [vmem:[%s4 + $0x264] sm:$0xff]
  %v2830 = vld [vmem:[%s4 + $0x26c] sm:$0xf]
  %v2831 = vld [vmem:[%s4 + $0x270] sm:$0xff]
  %v2832 = vld [vmem:[%s4 + $0x278] sm:$0xf]
  %v2833 = vld [vmem:[%s4 + $0x27c] sm:$0xff]
  %v2834 = vld [vmem:[%s4 + $0x284] sm:$0xf]
  %v2835 = vld [vmem:[%s4 + $0x288] sm:$0xff]
  %v2836 = vld [vmem:[%s4 + $0x290] sm:$0xf]
  %v2837 = vld [vmem:[%s4 + $0x294] sm:$0xff]
  %v2838 = vld [vmem:[%s4 + $0x29c] sm:$0xf]
  %v2839 = vld [vmem:[%s4 + $0x2a0] sm:$0xff]
  %v2840 = vld [vmem:[%s4 + $0x2a8] sm:$0xf]
  %v2841 = vld [vmem:[%s4 + $0x2ac] sm:$0xff]
  %v2842 = vld [vmem:[%s4 + $0x2b4] sm:$0xf]
  %v2843 = vld [vmem:[%s4 + $0x2b8] sm:$0xff]
  %v2844 = vld [vmem:[%s4 + $0x2c0] sm:$0xf]
  %v2845 = vld [vmem:[%s4 + $0x2c4] sm:$0xff]
  %v2846 = vld [vmem:[%s4 + $0x2cc] sm:$0xf]
  %v2847 = vld [vmem:[%s4 + $0x2d0] sm:$0xff]
  %v2848 = vld [vmem:[%s4 + $0x2d8] sm:$0xf]
  %v2849 = vld [vmem:[%s4 + $0x2dc] sm:$0xff]
  %v2850 = vld [vmem:[%s4 + $0x2e4] sm:$0xf]
  %v2851 = vld [vmem:[%s4 + $0x2e8] sm:$0xff]
  %v2852 = vld [vmem:[%s4 + $0x2f0] sm:$0xf]
  %v2853 = vld [vmem:[%s4 + $0x2f4] sm:$0xff]
  %v2854 = vld [vmem:[%s4 + $0x2fc] sm:$0xf]
  %v2855 = vld [vmem:[%s4 + $0x300] sm:$0xff]
  %v2856 = vld [vmem:[%s4 + $0x308] sm:$0xf]
  %v2857 = vld [vmem:[%s4 + $0x30c] sm:$0xff]
  %v2858 = vld [vmem:[%s4 + $0x314] sm:$0xf]
  %v2859 = vld [vmem:[%s4 + $0x318] sm:$0xff]
  %v2860 = vld [vmem:[%s4 + $0x320] sm:$0xf]
  %v2861 = vld [vmem:[%s4 + $0x324] sm:$0xff]
  %v2862 = vld [vmem:[%s4 + $0x32c] sm:$0xf]
  %v2863 = vld [vmem:[%s4 + $0x330] sm:$0xff]
  %v2864 = vld [vmem:[%s4 + $0x338] sm:$0xf]
  %v2865 = vld [vmem:[%s4 + $0x33c] sm:$0xff]
  %v2866 = vld [vmem:[%s4 + $0x344] sm:$0xf]
  %v2867 = vld [vmem:[%s4 + $0x348] sm:$0xff]
  %v2868 = vld [vmem:[%s4 + $0x350] sm:$0xf]
  %v2869 = vld [vmem:[%s4 + $0x354] sm:$0xff]
  %v2870 = vld [vmem:[%s4 + $0x35c] sm:$0xf]
  %v2871 = vld [vmem:[%s4 + $0x360] sm:$0xff]
  %v2872 = vld [vmem:[%s4 + $0x368] sm:$0xf]
  %v2873 = vld [vmem:[%s4 + $0x36c] sm:$0xff]
  %v2874 = vld [vmem:[%s4 + $0x374] sm:$0xf]
  %v2875 = vld [vmem:[%s4 + $0x378] sm:$0xff]
  %v2876 = vld [vmem:[%s4 + $0x380] sm:$0xf]
  %v2877 = vld [vmem:[%s4 + $0x384] sm:$0xff]
  %v2878 = vld [vmem:[%s4 + $0x38c] sm:$0xf]
  %v2879 = vld [vmem:[%s4 + $0x390] sm:$0xff]
  %v2880 = vld [vmem:[%s4 + $0x398] sm:$0xf]
  %v2881 = vld [vmem:[%s4 + $0x39c] sm:$0xff]
  %v2882 = vld [vmem:[%s4 + $0x3a4] sm:$0xf]
  %v2883 = vld [vmem:[%s4 + $0x3a8] sm:$0xff]
  %v2884 = vld [vmem:[%s4 + $0x3b0] sm:$0xf]
  %v2885 = vld [vmem:[%s4 + $0x3b4] sm:$0xff]
  %v2886 = vld [vmem:[%s4 + $0x3bc] sm:$0xf]
  %v2887 = vld [vmem:[%s4 + $0x3c0] sm:$0xff]
  %v2888 = vld [vmem:[%s4 + $0x3c8] sm:$0xf]
  %v2889 = vld [vmem:[%s4 + $0x3cc] sm:$0xff]
  %v2890 = vld [vmem:[%s4 + $0x3d4] sm:$0xf]
  %v2891 = vld [vmem:[%s4 + $0x3d8] sm:$0xff]
  %v2892 = vld [vmem:[%s4 + $0x3e0] sm:$0xf]
  %v2893 = vld [vmem:[%s4 + $0x3e4] sm:$0xff]
  %v2894 = vld [vmem:[%s4 + $0x3ec] sm:$0xf]
  %v2895 = vld [vmem:[%s4 + $0x3f0] sm:$0xff]
  %v2896 = vld [vmem:[%s4 + $0x3f8] sm:$0xf]
  %v2897 = vld [vmem:[%s4 + $0x3fc] sm:$0xff]
  %v2898 = vld [vmem:[%s4 + $0x404] sm:$0xf]
  %v2899 = vld [vmem:[%s4 + $0x408] sm:$0xff]
  %v2900 = vld [vmem:[%s4 + $0x410] sm:$0xf]
  %v2901 = vld [vmem:[%s4 + $0x414] sm:$0xff]
  %v2902 = vld [vmem:[%s4 + $0x41c] sm:$0xf]
  %v2903 = vld [vmem:[%s4 + $0x420] sm:$0xff]
  %v2904 = vld [vmem:[%s4 + $0x428] sm:$0xf]
  %v2905 = vld [vmem:[%s4 + $0x42c] sm:$0xff]
  %v2906 = vld [vmem:[%s4 + $0x434] sm:$0xf]
  %v2907 = vld [vmem:[%s4 + $0x438] sm:$0xff]
  %v2908 = vld [vmem:[%s4 + $0x440] sm:$0xf]
  %v2909 = vld [vmem:[%s4 + $0x444] sm:$0xff]
  %v2910 = vld [vmem:[%s4 + $0x44c] sm:$0xf]
  %v2911 = vld [vmem:[%s4 + $0x450] sm:$0xff]
  %v2912 = vld [vmem:[%s4 + $0x458] sm:$0xf]
  %v2913 = vld [vmem:[%s4 + $0x45c] sm:$0xff]
  %v2914 = vld [vmem:[%s4 + $0x464] sm:$0xf]
  %v2915 = vld [vmem:[%s4 + $0x468] sm:$0xff]
  %v2916 = vld [vmem:[%s4 + $0x470] sm:$0xf]
  %v2917 = vld [vmem:[%s4 + $0x474] sm:$0xff]
  %v2918 = vld [vmem:[%s4 + $0x47c] sm:$0xf]
  %v2919 = vld [vmem:[%s4 + $0x480] sm:$0xff]
  %v2920 = vld [vmem:[%s4 + $0x488] sm:$0xf]
  %v2921 = vld [vmem:[%s4 + $0x48c] sm:$0xff]
  %v2922 = vld [vmem:[%s4 + $0x494] sm:$0xf]
  %v2923 = vld [vmem:[%s5] sm:$0x7]
  %v2925 = vlaneseq
  %v2926 = vshrl.u32 %v2925, 7
  %v2927 = vsub.s32 0, %v2926
  %v2928 = vrot.slane %v2923, %v2927
  %v2929 = vlaneseq
  %v2930 = vshrl.u32 %v2929, 7
  %v2931 = vsub.s32 1, %v2930
  %v2932 = vrot.slane %v2923, %v2931
  %v2933 = vlaneseq
  %v2934 = vshrl.u32 %v2933, 7
  %v2935 = vsub.s32 2, %v2934
  %v2936 = vrot.slane %v2923, %v2935
  %v3136 = vunpack.c.l.b16 %v2727
  %v3137 = vunpack.c.h.b16 %v2727
  %v3138 = vunpack.c.l.b16 %v2728
  %v3139 = vunpack.c.l.b16 %v2729
  %v3140 = vunpack.c.h.b16 %v2729
  %v3141 = vunpack.c.l.b16 %v2730
  %v3142 = vunpack.c.l.b16 %v2731
  %v3143 = vunpack.c.h.b16 %v2731
  %v3144 = vunpack.c.l.b16 %v2732
  %v3145 = vunpack.c.l.b16 %v2733
  %v3146 = vunpack.c.h.b16 %v2733
  %v3147 = vunpack.c.l.b16 %v2734
  %v3148 = vunpack.c.l.b16 %v2735
  %v3149 = vunpack.c.h.b16 %v2735
  %v3150 = vunpack.c.l.b16 %v2736
  %v3151 = vunpack.c.l.b16 %v2737
  %v3152 = vunpack.c.h.b16 %v2737
  %v3153 = vunpack.c.l.b16 %v2738
  %v3154 = vunpack.c.l.b16 %v2739
  %v3155 = vunpack.c.h.b16 %v2739
  %v3156 = vunpack.c.l.b16 %v2740
  %v3157 = vunpack.c.l.b16 %v2741
  %v3158 = vunpack.c.h.b16 %v2741
  %v3159 = vunpack.c.l.b16 %v2742
  %v3160 = vunpack.c.l.b16 %v2743
  %v3161 = vunpack.c.h.b16 %v2743
  %v3162 = vunpack.c.l.b16 %v2744
  %v3163 = vunpack.c.l.b16 %v2745
  %v3164 = vunpack.c.h.b16 %v2745
  %v3165 = vunpack.c.l.b16 %v2746
  %v3166 = vunpack.c.l.b16 %v2747
  %v3167 = vunpack.c.h.b16 %v2747
  %v3168 = vunpack.c.l.b16 %v2748
  %v3169 = vunpack.c.l.b16 %v2749
  %v3170 = vunpack.c.h.b16 %v2749
  %v3171 = vunpack.c.l.b16 %v2750
  %v3172 = vunpack.c.l.b16 %v2751
  %v3173 = vunpack.c.h.b16 %v2751
  %v3174 = vunpack.c.l.b16 %v2752
  %v3175 = vunpack.c.l.b16 %v2753
  %v3176 = vunpack.c.h.b16 %v2753
  %v3177 = vunpack.c.l.b16 %v2754
  %v3178 = vunpack.c.l.b16 %v2755
  %v3179 = vunpack.c.h.b16 %v2755
  %v3180 = vunpack.c.l.b16 %v2756
  %v3181 = vunpack.c.l.b16 %v2757
  %v3182 = vunpack.c.h.b16 %v2757
  %v3183 = vunpack.c.l.b16 %v2758
  %v3184 = vunpack.c.l.b16 %v2759
  %v3185 = vunpack.c.h.b16 %v2759
  %v3186 = vunpack.c.l.b16 %v2760
  %v3187 = vunpack.c.l.b16 %v2761
  %v3188 = vunpack.c.h.b16 %v2761
  %v3189 = vunpack.c.l.b16 %v2762
  %v3190 = vunpack.c.l.b16 %v2763
  %v3191 = vunpack.c.h.b16 %v2763
  %v3192 = vunpack.c.l.b16 %v2764
  %v3193 = vunpack.c.l.b16 %v2765
  %v3194 = vunpack.c.h.b16 %v2765
  %v3195 = vunpack.c.l.b16 %v2766
  %v3196 = vunpack.c.l.b16 %v2767
  %v3197 = vunpack.c.h.b16 %v2767
  %v3198 = vunpack.c.l.b16 %v2768
  %v3199 = vunpack.c.l.b16 %v2769
  %v3200 = vunpack.c.h.b16 %v2769
  %v3201 = vunpack.c.l.b16 %v2770
  %v3202 = vunpack.c.l.b16 %v2771
  %v3203 = vunpack.c.h.b16 %v2771
  %v3204 = vunpack.c.l.b16 %v2772
  %v3205 = vunpack.c.l.b16 %v2773
  %v3206 = vunpack.c.h.b16 %v2773
  %v3207 = vunpack.c.l.b16 %v2774
  %v3208 = vunpack.c.l.b16 %v2775
  %v3209 = vunpack.c.h.b16 %v2775
  %v3210 = vunpack.c.l.b16 %v2776
  %v3211 = vunpack.c.l.b16 %v2777
  %v3212 = vunpack.c.h.b16 %v2777
  %v3213 = vunpack.c.l.b16 %v2778
  %v3214 = vunpack.c.l.b16 %v2779
  %v3215 = vunpack.c.h.b16 %v2779
  %v3216 = vunpack.c.l.b16 %v2780
  %v3217 = vunpack.c.l.b16 %v2781
  %v3218 = vunpack.c.h.b16 %v2781
  %v3219 = vunpack.c.l.b16 %v2782
  %v3220 = vunpack.c.l.b16 %v2783
  %v3221 = vunpack.c.h.b16 %v2783
  %v3222 = vunpack.c.l.b16 %v2784
  %v3223 = vunpack.c.l.b16 %v2785
  %v3224 = vunpack.c.h.b16 %v2785
  %v3225 = vunpack.c.l.b16 %v2786
  %v3226 = vunpack.c.l.b16 %v2787
  %v3227 = vunpack.c.h.b16 %v2787
  %v3228 = vunpack.c.l.b16 %v2788
  %v3229 = vunpack.c.l.b16 %v2789
  %v3230 = vunpack.c.h.b16 %v2789
  %v3231 = vunpack.c.l.b16 %v2790
  %v3232 = vunpack.c.l.b16 %v2791
  %v3233 = vunpack.c.h.b16 %v2791
  %v3234 = vunpack.c.l.b16 %v2792
  %v3235 = vunpack.c.l.b16 %v2793
  %v3236 = vunpack.c.h.b16 %v2793
  %v3237 = vunpack.c.l.b16 %v2794
  %v3238 = vunpack.c.l.b16 %v2795
  %v3239 = vunpack.c.h.b16 %v2795
  %v3240 = vunpack.c.l.b16 %v2796
  %v3241 = vunpack.c.l.b16 %v2797
  %v3242 = vunpack.c.h.b16 %v2797
  %v3243 = vunpack.c.l.b16 %v2798
  %v3244 = vunpack.c.l.b16 %v2799
  %v3245 = vunpack.c.h.b16 %v2799
  %v3246 = vunpack.c.l.b16 %v2800
  %v3247 = vunpack.c.l.b16 %v2801
  %v3248 = vunpack.c.h.b16 %v2801
  %v3249 = vunpack.c.l.b16 %v2802
  %v3250 = vunpack.c.l.b16 %v2803
  %v3251 = vunpack.c.h.b16 %v2803
  %v3252 = vunpack.c.l.b16 %v2804
  %v3253 = vunpack.c.l.b16 %v2805
  %v3254 = vunpack.c.h.b16 %v2805
  %v3255 = vunpack.c.l.b16 %v2806
  %v3256 = vunpack.c.l.b16 %v2807
  %v3257 = vunpack.c.h.b16 %v2807
  %v3258 = vunpack.c.l.b16 %v2808
  %v3259 = vunpack.c.l.b16 %v2809
  %v3260 = vunpack.c.h.b16 %v2809
  %v3261 = vunpack.c.l.b16 %v2810
  %v3262 = vunpack.c.l.b16 %v2811
  %v3263 = vunpack.c.h.b16 %v2811
  %v3264 = vunpack.c.l.b16 %v2812
  %v3265 = vunpack.c.l.b16 %v2813
  %v3266 = vunpack.c.h.b16 %v2813
  %v3267 = vunpack.c.l.b16 %v2814
  %v3268 = vunpack.c.l.b16 %v2815
  %v3269 = vunpack.c.h.b16 %v2815
  %v3270 = vunpack.c.l.b16 %v2816
  %v3271 = vunpack.c.l.b16 %v2817
  %v3272 = vunpack.c.h.b16 %v2817
  %v3273 = vunpack.c.l.b16 %v2818
  %v3274 = vunpack.c.l.b16 %v2819
  %v3275 = vunpack.c.h.b16 %v2819
  %v3276 = vunpack.c.l.b16 %v2820
  %v3277 = vunpack.c.l.b16 %v2821
  %v3278 = vunpack.c.h.b16 %v2821
  %v3279 = vunpack.c.l.b16 %v2822
  %v3280 = vunpack.c.l.b16 %v2823
  %v3281 = vunpack.c.h.b16 %v2823
  %v3282 = vunpack.c.l.b16 %v2824
  %v3283 = vunpack.c.l.b16 %v2825
  %v3284 = vunpack.c.h.b16 %v2825
  %v3285 = vunpack.c.l.b16 %v2826
  %v3286 = vunpack.c.l.b16 %v2827
  %v3287 = vunpack.c.h.b16 %v2827
  %v3288 = vunpack.c.l.b16 %v2828
  %v3289 = vunpack.c.l.b16 %v2829
  %v3290 = vunpack.c.h.b16 %v2829
  %v3291 = vunpack.c.l.b16 %v2830
  %v3292 = vunpack.c.l.b16 %v2831
  %v3293 = vunpack.c.h.b16 %v2831
  %v3294 = vunpack.c.l.b16 %v2832
  %v3295 = vunpack.c.l.b16 %v2833
  %v3296 = vunpack.c.h.b16 %v2833
  %v3297 = vunpack.c.l.b16 %v2834
  %v3298 = vunpack.c.l.b16 %v2835
  %v3299 = vunpack.c.h.b16 %v2835
  %v3300 = vunpack.c.l.b16 %v2836
  %v3301 = vunpack.c.l.b16 %v2837
  %v3302 = vunpack.c.h.b16 %v2837
  %v3303 = vunpack.c.l.b16 %v2838
  %v3304 = vunpack.c.l.b16 %v2839
  %v3305 = vunpack.c.h.b16 %v2839
  %v3306 = vunpack.c.l.b16 %v2840
  %v3307 = vunpack.c.l.b16 %v2841
  %v3308 = vunpack.c.h.b16 %v2841
  %v3309 = vunpack.c.l.b16 %v2842
  %v3310 = vunpack.c.l.b16 %v2843
  %v3311 = vunpack.c.h.b16 %v2843
  %v3312 = vunpack.c.l.b16 %v2844
  %v3313 = vunpack.c.l.b16 %v2845
  %v3314 = vunpack.c.h.b16 %v2845
  %v3315 = vunpack.c.l.b16 %v2846
  %v3316 = vunpack.c.l.b16 %v2847
  %v3317 = vunpack.c.h.b16 %v2847
  %v3318 = vunpack.c.l.b16 %v2848
  %v3319 = vunpack.c.l.b16 %v2849
  %v3320 = vunpack.c.h.b16 %v2849
  %v3321 = vunpack.c.l.b16 %v2850
  %v3322 = vunpack.c.l.b16 %v2851
  %v3323 = vunpack.c.h.b16 %v2851
  %v3324 = vunpack.c.l.b16 %v2852
  %v3325 = vunpack.c.l.b16 %v2853
  %v3326 = vunpack.c.h.b16 %v2853
  %v3327 = vunpack.c.l.b16 %v2854
  %v3328 = vunpack.c.l.b16 %v2855
  %v3329 = vunpack.c.h.b16 %v2855
  %v3330 = vunpack.c.l.b16 %v2856
  %v3331 = vunpack.c.l.b16 %v2857
  %v3332 = vunpack.c.h.b16 %v2857
  %v3333 = vunpack.c.l.b16 %v2858
  %v3334 = vunpack.c.l.b16 %v2859
  %v3335 = vunpack.c.h.b16 %v2859
  %v3336 = vunpack.c.l.b16 %v2860
  %v3337 = vunpack.c.l.b16 %v2861
  %v3338 = vunpack.c.h.b16 %v2861
  %v3339 = vunpack.c.l.b16 %v2862
  %v3340 = vunpack.c.l.b16 %v2863
  %v3341 = vunpack.c.h.b16 %v2863
  %v3342 = vunpack.c.l.b16 %v2864
  %v3343 = vunpack.c.l.b16 %v2865
  %v3344 = vunpack.c.h.b16 %v2865
  %v3345 = vunpack.c.l.b16 %v2866
  %v3346 = vunpack.c.l.b16 %v2867
  %v3347 = vunpack.c.h.b16 %v2867
  %v3348 = vunpack.c.l.b16 %v2868
  %v3349 = vunpack.c.l.b16 %v2869
  %v3350 = vunpack.c.h.b16 %v2869
  %v3351 = vunpack.c.l.b16 %v2870
  %v3352 = vunpack.c.l.b16 %v2871
  %v3353 = vunpack.c.h.b16 %v2871
  %v3354 = vunpack.c.l.b16 %v2872
  %v3355 = vunpack.c.l.b16 %v2873
  %v3356 = vunpack.c.h.b16 %v2873
  %v3357 = vunpack.c.l.b16 %v2874
  %v3358 = vunpack.c.l.b16 %v2875
  %v3359 = vunpack.c.h.b16 %v2875
  %v3360 = vunpack.c.l.b16 %v2876
  %v3361 = vunpack.c.l.b16 %v2877
  %v3362 = vunpack.c.h.b16 %v2877
  %v3363 = vunpack.c.l.b16 %v2878
  %v3364 = vunpack.c.l.b16 %v2879
  %v3365 = vunpack.c.h.b16 %v2879
  %v3366 = vunpack.c.l.b16 %v2880
  %v3367 = vunpack.c.l.b16 %v2881
  %v3368 = vunpack.c.h.b16 %v2881
  %v3369 = vunpack.c.l.b16 %v2882
  %v3370 = vunpack.c.l.b16 %v2883
  %v3371 = vunpack.c.h.b16 %v2883
  %v3372 = vunpack.c.l.b16 %v2884
  %v3373 = vunpack.c.l.b16 %v2885
  %v3374 = vunpack.c.h.b16 %v2885
  %v3375 = vunpack.c.l.b16 %v2886
  %v3376 = vunpack.c.l.b16 %v2887
  %v3377 = vunpack.c.h.b16 %v2887
  %v3378 = vunpack.c.l.b16 %v2888
  %v3379 = vunpack.c.l.b16 %v2889
  %v3380 = vunpack.c.h.b16 %v2889
  %v3381 = vunpack.c.l.b16 %v2890
  %v3382 = vunpack.c.l.b16 %v2891
  %v3383 = vunpack.c.h.b16 %v2891
  %v3384 = vunpack.c.l.b16 %v2892
  %v3385 = vunpack.c.l.b16 %v2893
  %v3386 = vunpack.c.h.b16 %v2893
  %v3387 = vunpack.c.l.b16 %v2894
  %v3388 = vunpack.c.l.b16 %v2895
  %v3389 = vunpack.c.h.b16 %v2895
  %v3390 = vunpack.c.l.b16 %v2896
  %v3391 = vunpack.c.l.b16 %v2897
  %v3392 = vunpack.c.h.b16 %v2897
  %v3393 = vunpack.c.l.b16 %v2898
  %v3394 = vunpack.c.l.b16 %v2899
  %v3395 = vunpack.c.h.b16 %v2899
  %v3396 = vunpack.c.l.b16 %v2900
  %v3397 = vunpack.c.l.b16 %v2901
  %v3398 = vunpack.c.h.b16 %v2901
  %v3399 = vunpack.c.l.b16 %v2902
  %v3400 = vunpack.c.l.b16 %v2903
  %v3401 = vunpack.c.h.b16 %v2903
  %v3402 = vunpack.c.l.b16 %v2904
  %v3403 = vunpack.c.l.b16 %v2905
  %v3404 = vunpack.c.h.b16 %v2905
  %v3405 = vunpack.c.l.b16 %v2906
  %v3406 = vunpack.c.l.b16 %v2907
  %v3407 = vunpack.c.h.b16 %v2907
  %v3408 = vunpack.c.l.b16 %v2908
  %v3409 = vunpack.c.l.b16 %v2909
  %v3410 = vunpack.c.h.b16 %v2909
  %v3411 = vunpack.c.l.b16 %v2910
  %v3412 = vunpack.c.l.b16 %v2911
  %v3413 = vunpack.c.h.b16 %v2911
  %v3414 = vunpack.c.l.b16 %v2912
  %v3415 = vunpack.c.l.b16 %v2913
  %v3416 = vunpack.c.h.b16 %v2913
  %v3417 = vunpack.c.l.b16 %v2914
  %v3418 = vunpack.c.l.b16 %v2915
  %v3419 = vunpack.c.h.b16 %v2915
  %v3420 = vunpack.c.l.b16 %v2916
  %v3421 = vunpack.c.l.b16 %v2917
  %v3422 = vunpack.c.h.b16 %v2917
  %v3423 = vunpack.c.l.b16 %v2918
  %v3424 = vunpack.c.l.b16 %v2919
  %v3425 = vunpack.c.h.b16 %v2919
  %v3426 = vunpack.c.l.b16 %v2920
  %v3427 = vunpack.c.l.b16 %v2921
  %v3428 = vunpack.c.h.b16 %v2921
  %v3429 = vunpack.c.l.b16 %v2922
  %v3430 = vpack.c.b16 %v3139, %v3136
  %v3431 = vpack.c.b16 %v3140, %v3137
  %v3432 = vpack.c.b16 %v3141, %v3138
  %v3433 = vpack.c.b16 %v3145, %v3142
  %v3434 = vpack.c.b16 %v3146, %v3143
  %v3435 = vpack.c.b16 %v3147, %v3144
  %v3436 = vpack.c.b16 %v3151, %v3148
  %v3437 = vpack.c.b16 %v3152, %v3149
  %v3438 = vpack.c.b16 %v3153, %v3150
  %v3439 = vpack.c.b16 %v3157, %v3154
  %v3440 = vpack.c.b16 %v3158, %v3155
  %v3441 = vpack.c.b16 %v3159, %v3156
  %v3442 = vpack.c.b16 %v3163, %v3160
  %v3443 = vpack.c.b16 %v3164, %v3161
  %v3444 = vpack.c.b16 %v3165, %v3162
  %v3445 = vpack.c.b16 %v3169, %v3166
  %v3446 = vpack.c.b16 %v3170, %v3167
  %v3447 = vpack.c.b16 %v3171, %v3168
  %v3448 = vpack.c.b16 %v3175, %v3172
  %v3449 = vpack.c.b16 %v3176, %v3173
  %v3450 = vpack.c.b16 %v3177, %v3174
  %v3451 = vpack.c.b16 %v3181, %v3178
  %v3452 = vpack.c.b16 %v3182, %v3179
  %v3453 = vpack.c.b16 %v3183, %v3180
  %v3454 = vpack.c.b16 %v3187, %v3184
  %v3455 = vpack.c.b16 %v3188, %v3185
  %v3456 = vpack.c.b16 %v3189, %v3186
  %v3457 = vpack.c.b16 %v3193, %v3190
  %v3458 = vpack.c.b16 %v3194, %v3191
  %v3459 = vpack.c.b16 %v3195, %v3192
  %v3460 = vpack.c.b16 %v3199, %v3196
  %v3461 = vpack.c.b16 %v3200, %v3197
  %v3462 = vpack.c.b16 %v3201, %v3198
  %v3463 = vpack.c.b16 %v3205, %v3202
  %v3464 = vpack.c.b16 %v3206, %v3203
  %v3465 = vpack.c.b16 %v3207, %v3204
  %v3466 = vpack.c.b16 %v3211, %v3208
  %v3467 = vpack.c.b16 %v3212, %v3209
  %v3468 = vpack.c.b16 %v3213, %v3210
  %v3469 = vpack.c.b16 %v3217, %v3214
  %v3470 = vpack.c.b16 %v3218, %v3215
  %v3471 = vpack.c.b16 %v3219, %v3216
  %v3472 = vpack.c.b16 %v3223, %v3220
  %v3473 = vpack.c.b16 %v3224, %v3221
  %v3474 = vpack.c.b16 %v3225, %v3222
  %v3475 = vpack.c.b16 %v3229, %v3226
  %v3476 = vpack.c.b16 %v3230, %v3227
  %v3477 = vpack.c.b16 %v3231, %v3228
  %v3478 = vpack.c.b16 %v3235, %v3232
  %v3479 = vpack.c.b16 %v3236, %v3233
  %v3480 = vpack.c.b16 %v3237, %v3234
  %v3481 = vpack.c.b16 %v3241, %v3238
  %v3482 = vpack.c.b16 %v3242, %v3239
  %v3483 = vpack.c.b16 %v3243, %v3240
  %v3484 = vpack.c.b16 %v3247, %v3244
  %v3485 = vpack.c.b16 %v3248, %v3245
  %v3486 = vpack.c.b16 %v3249, %v3246
  %v3487 = vpack.c.b16 %v3253, %v3250
  %v3488 = vpack.c.b16 %v3254, %v3251
  %v3489 = vpack.c.b16 %v3255, %v3252
  %v3490 = vpack.c.b16 %v3259, %v3256
  %v3491 = vpack.c.b16 %v3260, %v3257
  %v3492 = vpack.c.b16 %v3261, %v3258
  %v3493 = vpack.c.b16 %v3265, %v3262
  %v3494 = vpack.c.b16 %v3266, %v3263
  %v3495 = vpack.c.b16 %v3267, %v3264
  %v3496 = vpack.c.b16 %v3271, %v3268
  %v3497 = vpack.c.b16 %v3272, %v3269
  %v3498 = vpack.c.b16 %v3273, %v3270
  %v3499 = vpack.c.b16 %v3277, %v3274
  %v3500 = vpack.c.b16 %v3278, %v3275
  %v3501 = vpack.c.b16 %v3279, %v3276
  %v3502 = vpack.c.b16 %v3283, %v3280
  %v3503 = vpack.c.b16 %v3284, %v3281
  %v3504 = vpack.c.b16 %v3285, %v3282
  %v3505 = vpack.c.b16 %v3289, %v3286
  %v3506 = vpack.c.b16 %v3290, %v3287
  %v3507 = vpack.c.b16 %v3291, %v3288
  %v3508 = vpack.c.b16 %v3295, %v3292
  %v3509 = vpack.c.b16 %v3296, %v3293
  %v3510 = vpack.c.b16 %v3297, %v3294
  %v3511 = vpack.c.b16 %v3301, %v3298
  %v3512 = vpack.c.b16 %v3302, %v3299
  %v3513 = vpack.c.b16 %v3303, %v3300
  %v3514 = vpack.c.b16 %v3307, %v3304
  %v3515 = vpack.c.b16 %v3308, %v3305
  %v3516 = vpack.c.b16 %v3309, %v3306
  %v3517 = vpack.c.b16 %v3313, %v3310
  %v3518 = vpack.c.b16 %v3314, %v3311
  %v3519 = vpack.c.b16 %v3315, %v3312
  %v3520 = vpack.c.b16 %v3319, %v3316
  %v3521 = vpack.c.b16 %v3320, %v3317
  %v3522 = vpack.c.b16 %v3321, %v3318
  %v3523 = vpack.c.b16 %v3325, %v3322
  %v3524 = vpack.c.b16 %v3326, %v3323
  %v3525 = vpack.c.b16 %v3327, %v3324
  %v3526 = vpack.c.b16 %v3331, %v3328
  %v3527 = vpack.c.b16 %v3332, %v3329
  %v3528 = vpack.c.b16 %v3333, %v3330
  %v3529 = vpack.c.b16 %v3337, %v3334
  %v3530 = vpack.c.b16 %v3338, %v3335
  %v3531 = vpack.c.b16 %v3339, %v3336
  %v3532 = vpack.c.b16 %v3343, %v3340
  %v3533 = vpack.c.b16 %v3344, %v3341
  %v3534 = vpack.c.b16 %v3345, %v3342
  %v3535 = vpack.c.b16 %v3349, %v3346
  %v3536 = vpack.c.b16 %v3350, %v3347
  %v3537 = vpack.c.b16 %v3351, %v3348
  %v3538 = vpack.c.b16 %v3355, %v3352
  %v3539 = vpack.c.b16 %v3356, %v3353
  %v3540 = vpack.c.b16 %v3357, %v3354
  %v3541 = vpack.c.b16 %v3361, %v3358
  %v3542 = vpack.c.b16 %v3362, %v3359
  %v3543 = vpack.c.b16 %v3363, %v3360
  %v3544 = vpack.c.b16 %v3367, %v3364
  %v3545 = vpack.c.b16 %v3368, %v3365
  %v3546 = vpack.c.b16 %v3369, %v3366
  %v3547 = vpack.c.b16 %v3373, %v3370
  %v3548 = vpack.c.b16 %v3374, %v3371
  %v3549 = vpack.c.b16 %v3375, %v3372
  %v3550 = vpack.c.b16 %v3379, %v3376
  %v3551 = vpack.c.b16 %v3380, %v3377
  %v3552 = vpack.c.b16 %v3381, %v3378
  %v3553 = vpack.c.b16 %v3385, %v3382
  %v3554 = vpack.c.b16 %v3386, %v3383
  %v3555 = vpack.c.b16 %v3387, %v3384
  %v3556 = vpack.c.b16 %v3391, %v3388
  %v3557 = vpack.c.b16 %v3392, %v3389
  %v3558 = vpack.c.b16 %v3393, %v3390
  %v3559 = vpack.c.b16 %v3397, %v3394
  %v3560 = vpack.c.b16 %v3398, %v3395
  %v3561 = vpack.c.b16 %v3399, %v3396
  %v3562 = vpack.c.b16 %v3403, %v3400
  %v3563 = vpack.c.b16 %v3404, %v3401
  %v3564 = vpack.c.b16 %v3405, %v3402
  %v3565 = vpack.c.b16 %v3409, %v3406
  %v3566 = vpack.c.b16 %v3410, %v3407
  %v3567 = vpack.c.b16 %v3411, %v3408
  %v3568 = vpack.c.b16 %v3415, %v3412
  %v3569 = vpack.c.b16 %v3416, %v3413
  %v3570 = vpack.c.b16 %v3417, %v3414
  %v3571 = vpack.c.b16 %v3421, %v3418
  %v3572 = vpack.c.b16 %v3422, %v3419
  %v3573 = vpack.c.b16 %v3423, %v3420
  %v3574 = vpack.c.b16 %v3427, %v3424
  %v3575 = vpack.c.b16 %v3428, %v3425
  %v3576 = vpack.c.b16 %v3429, %v3426
  %vm3724 = vcmask 130048
  %v3726 = vsel %vm3724, %v2726, 0
  %3728 = vmatprep.subr.bf16.mxu0 %v3452
  %3729 = vmatpush1.bf16.msra.mxu0 %v3451
  %3730 = vmatprep.subr.bf16.mxu0 %v3449
  %3731 = vmatpush1.bf16.msra.mxu0 %v3448
  %3732 = vmatprep.subr.bf16.mxu0 %v3446
  %3733 = vmatpush1.bf16.msra.mxu0 %v3445
  %3734 = vmatprep.subr.bf16.mxu0 %v3443
  %3735 = vmatpush1.bf16.msra.mxu0 %v3442
  %3736 = vmatprep.subr.bf16.mxu0 %v3440
  %3737 = vmatpush1.bf16.msra.mxu0 %v3439
  %3738 = vmatprep.subr.bf16.mxu0 %v3437
  %3739 = vmatpush1.bf16.msra.mxu0 %v3436
  %3740 = vmatprep.subr.bf16.mxu0 %v3434
  %3741 = vmatpush1.bf16.msra.mxu0 %v3433
  %3742 = vmatprep.subr.bf16.mxu0 %v3431
  %3743 = vmatpush1.bf16.msra.mxu0 %v3430
  %3744 = vmatprep.subr.bf16.mxu0 %v3476
  %3745 = vmatpush2.bf16.msra.mxu0 %v3475
  %3746 = vmatprep.subr.bf16.mxu0 %v3473
  %3747 = vmatpush2.bf16.msra.mxu0 %v3472
  %3748 = vmatprep.subr.bf16.mxu0 %v3470
  %3749 = vmatpush2.bf16.msra.mxu0 %v3469
  %3750 = vmatprep.subr.bf16.mxu0 %v3467
  %3751 = vmatpush2.bf16.msra.mxu0 %v3466
  %3752 = vmatprep.subr.bf16.mxu0 %v3464
  %3753 = vmatpush2.bf16.msra.mxu0 %v3463
  %3754 = vmatprep.subr.bf16.mxu0 %v3461
  %3755 = vmatpush2.bf16.msra.mxu0 %v3460
  %3756 = vmatprep.subr.bf16.mxu0 %v3458
  %3757 = vmatpush2.bf16.msra.mxu0 %v3457
  %3758 = vmatprep.subr.bf16.mxu0 %v3455
  %3759 = vmatpush2.bf16.msra.mxu0 %v3454
  %3760 = vmatprep.mubr.bf16.mxu0 %v2721
  %3761 = vmatmul.mubr.bf16.gmra.mxu0 %v2720
  %v3762 = vpop.f32.mrf.mxu0
  %v3763 = vadd.f32 %v2928, %v3762
  %v3764 = vpop.f32.mrf.mxu0
  %v3765 = vadd.f32 %v2932, %v3764
  %v3766 = vpop.f32.mrf.mxu0
  %v3767 = vpop.f32.mrf.mxu0
  %3768 = vdwg.mxu0
  %3769 = vmatprep.subr.bf16.mxu0 %v3500
  %3770 = vmatpush1.bf16.msra.mxu0 %v3499
  %3771 = vmatprep.subr.bf16.mxu0 %v3497
  %3772 = vmatpush1.bf16.msra.mxu0 %v3496
  %3773 = vmatprep.subr.bf16.mxu0 %v3494
  %3774 = vmatpush1.bf16.msra.mxu0 %v3493
  %3775 = vmatprep.subr.bf16.mxu0 %v3491
  %3776 = vmatpush1.bf16.msra.mxu0 %v3490
  %3777 = vmatprep.subr.bf16.mxu0 %v3488
  %3778 = vmatpush1.bf16.msra.mxu0 %v3487
  %3779 = vmatprep.subr.bf16.mxu0 %v3485
  %3780 = vmatpush1.bf16.msra.mxu0 %v3484
  %3781 = vmatprep.subr.bf16.mxu0 %v3482
  %3782 = vmatpush1.bf16.msra.mxu0 %v3481
  %3783 = vmatprep.subr.bf16.mxu0 %v3479
  %3784 = vmatpush1.bf16.msra.mxu0 %v3478
  %3785 = vmatprep.subr.bf16.mxu0 %v3524
  %3786 = vmatpush2.bf16.msra.mxu0 %v3523
  %3787 = vmatprep.subr.bf16.mxu0 %v3521
  %3788 = vmatpush2.bf16.msra.mxu0 %v3520
  %3789 = vmatprep.subr.bf16.mxu0 %v3518
  %3790 = vmatpush2.bf16.msra.mxu0 %v3517
  %3791 = vmatprep.subr.bf16.mxu0 %v3515
  %3792 = vmatpush2.bf16.msra.mxu0 %v3514
  %3793 = vmatprep.subr.bf16.mxu0 %v3512
  %3794 = vmatpush2.bf16.msra.mxu0 %v3511
  %3795 = vmatprep.subr.bf16.mxu0 %v3509
  %3796 = vmatpush2.bf16.msra.mxu0 %v3508
  %3797 = vmatprep.subr.bf16.mxu0 %v3506
  %3798 = vmatpush2.bf16.msra.mxu0 %v3505
  %3799 = vmatprep.subr.bf16.mxu0 %v3503
  %3800 = vmatpush2.bf16.msra.mxu0 %v3502
  %3801 = vmatprep.mubr.bf16.mxu0 %v2723
  %3802 = vmatmul.mubr.bf16.gmra.mxu0 %v2722
  %v3803 = vpop.f32.mrf.mxu0
  %v3804 = vadd.f32 %v3763, %v3803
  %v3805 = vpop.f32.mrf.mxu0
  %v3806 = vadd.f32 %v3765, %v3805
  %v3807 = vpop.f32.mrf.mxu0
  %v3808 = vpop.f32.mrf.mxu0
  %3809 = vdwg.mxu0
  %3810 = vmatprep.subr.bf16.mxu0 %v3548
  %3811 = vmatpush1.bf16.msra.mxu0 %v3547
  %3812 = vmatprep.subr.bf16.mxu0 %v3545
  %3813 = vmatpush1.bf16.msra.mxu0 %v3544
  %3814 = vmatprep.subr.bf16.mxu0 %v3542
  %3815 = vmatpush1.bf16.msra.mxu0 %v3541
  %3816 = vmatprep.subr.bf16.mxu0 %v3539
  %3817 = vmatpush1.bf16.msra.mxu0 %v3538
  %3818 = vmatprep.subr.bf16.mxu0 %v3536
  %3819 = vmatpush1.bf16.msra.mxu0 %v3535
  %3820 = vmatprep.subr.bf16.mxu0 %v3533
  %3821 = vmatpush1.bf16.msra.mxu0 %v3532
  %3822 = vmatprep.subr.bf16.mxu0 %v3530
  %3823 = vmatpush1.bf16.msra.mxu0 %v3529
  %3824 = vmatprep.subr.bf16.mxu0 %v3527
  %3825 = vmatpush1.bf16.msra.mxu0 %v3526
  %3826 = vmatprep.subr.bf16.mxu0 %v3572
  %3827 = vmatpush2.bf16.msra.mxu0 %v3571
  %3828 = vmatprep.subr.bf16.mxu0 %v3569
  %3829 = vmatpush2.bf16.msra.mxu0 %v3568
  %3830 = vmatprep.subr.bf16.mxu0 %v3566
  %3831 = vmatpush2.bf16.msra.mxu0 %v3565
  %3832 = vmatprep.subr.bf16.mxu0 %v3563
  %3833 = vmatpush2.bf16.msra.mxu0 %v3562
  %3834 = vmatprep.subr.bf16.mxu0 %v3560
  %3835 = vmatpush2.bf16.msra.mxu0 %v3559
  %3836 = vmatprep.subr.bf16.mxu0 %v3557
  %3837 = vmatpush2.bf16.msra.mxu0 %v3556
  %3838 = vmatprep.subr.bf16.mxu0 %v3554
  %3839 = vmatpush2.bf16.msra.mxu0 %v3553
  %3840 = vmatprep.subr.bf16.mxu0 %v3551
  %3841 = vmatpush2.bf16.msra.mxu0 %v3550
  %3842 = vmatprep.mubr.bf16.mxu0 %v2725
  %3843 = vmatmul.mubr.bf16.gmra.mxu0 %v2724
  %v3844 = vpop.f32.mrf.mxu0
  %v3845 = vadd.f32 %v3804, %v3844
  %v3846 = vpop.f32.mrf.mxu0
  %v3847 = vadd.f32 %v3806, %v3846
  %v3848 = vpop.f32.mrf.mxu0
  %v3849 = vpop.f32.mrf.mxu0
  %3850 = vdwg.mxu0
  %3851 = vmatprep.subr.bf16.mxu0 0
  %3852 = vmatpush1.bf16.msra.mxu0 0
  %3853 = vmatprep.subr.bf16.mxu0 0
  %3854 = vmatpush1.bf16.msra.mxu0 0
  %3855 = vmatprep.subr.bf16.mxu0 0
  %3856 = vmatpush1.bf16.msra.mxu0 0
  %3857 = vmatprep.subr.bf16.mxu0 0
  %3858 = vmatpush1.bf16.msra.mxu0 0
  %3859 = vmatprep.subr.bf16.mxu0 0
  %3860 = vmatpush1.bf16.msra.mxu0 0
  %3861 = vmatprep.subr.bf16.mxu0 0
  %3862 = vmatpush1.bf16.msra.mxu0 0
  %3863 = vmatprep.subr.bf16.mxu0 0
  %3864 = vmatpush1.bf16.msra.mxu0 0
  %3865 = vmatprep.subr.bf16.mxu0 %v3575
  %3866 = vmatpush1.bf16.msra.mxu0 %v3574
  %3867 = vmatprep.subr.bf16.mxu0 0
  %3868 = vmatpush2.bf16.msra.mxu0 0
  %3869 = vmatprep.subr.bf16.mxu0 0
  %3870 = vmatpush2.bf16.msra.mxu0 0
  %3871 = vmatprep.subr.bf16.mxu0 0
  %3872 = vmatpush2.bf16.msra.mxu0 0
  %3873 = vmatprep.subr.bf16.mxu0 0
  %3874 = vmatpush2.bf16.msra.mxu0 0
  %3875 = vmatprep.subr.bf16.mxu0 0
  %3876 = vmatpush2.bf16.msra.mxu0 0
  %3877 = vmatprep.subr.bf16.mxu0 0
  %3878 = vmatpush2.bf16.msra.mxu0 0
  %3879 = vmatprep.subr.bf16.mxu0 0
  %3880 = vmatpush2.bf16.msra.mxu0 0
  %3881 = vmatprep.subr.bf16.mxu0 0
  %3882 = vmatpush2.bf16.msra.mxu0 0
  %3883 = vmatprep.mubr.bf16.mxu0 0
  %3884 = vmatmul.mubr.bf16.gmra.mxu0 %v3726
  %v3885 = vpop.f32.mrf.mxu0
  %v3886 = vadd.f32 %v3845, %v3885
  %v3887 = vpop.f32.mrf.mxu0
  %v3888 = vadd.f32 %v3847, %v3887
  %v3889 = vpop.f32.mrf.mxu0
  %v3890 = vpop.f32.mrf.mxu0
  %3891 = vdwg.mxu0
  %3892 = vmatprep.subr.bf16.mxu0 0
  %3893 = vmatpush1.bf16.msra.mxu0 %v3453
  %3894 = vmatprep.subr.bf16.mxu0 0
  %3895 = vmatpush1.bf16.msra.mxu0 %v3450
  %3896 = vmatprep.subr.bf16.mxu0 0
  %3897 = vmatpush1.bf16.msra.mxu0 %v3447
  %3898 = vmatprep.subr.bf16.mxu0 0
  %3899 = vmatpush1.bf16.msra.mxu0 %v3444
  %3900 = vmatprep.subr.bf16.mxu0 0
  %3901 = vmatpush1.bf16.msra.mxu0 %v3441
  %3902 = vmatprep.subr.bf16.mxu0 0
  %3903 = vmatpush1.bf16.msra.mxu0 %v3438
  %3904 = vmatprep.subr.bf16.mxu0 0
  %3905 = vmatpush1.bf16.msra.mxu0 %v3435
  %3906 = vmatprep.subr.bf16.mxu0 0
  %3907 = vmatpush1.bf16.msra.mxu0 %v3432
  %3908 = vmatprep.subr.bf16.mxu0 0
  %3909 = vmatpush2.bf16.msra.mxu0 %v3477
  %3910 = vmatprep.subr.bf16.mxu0 0
  %3911 = vmatpush2.bf16.msra.mxu0 %v3474
  %3912 = vmatprep.subr.bf16.mxu0 0
  %3913 = vmatpush2.bf16.msra.mxu0 %v3471
  %3914 = vmatprep.subr.bf16.mxu0 0
  %3915 = vmatpush2.bf16.msra.mxu0 %v3468
  %3916 = vmatprep.subr.bf16.mxu0 0
  %3917 = vmatpush2.bf16.msra.mxu0 %v3465
  %3918 = vmatprep.subr.bf16.mxu0 0
  %3919 = vmatpush2.bf16.msra.mxu0 %v3462
  %3920 = vmatprep.subr.bf16.mxu0 0
  %3921 = vmatpush2.bf16.msra.mxu0 %v3459
  %3922 = vmatprep.subr.bf16.mxu0 0
  %3923 = vmatpush2.bf16.msra.mxu0 %v3456
  %3924 = vmatprep.mubr.bf16.mxu0 %v2721
  %3925 = vmatmul.mubr.bf16.gmra.mxu0 %v2720
  %v3926 = vpop.f32.mrf.mxu0
  %v3927 = vadd.f32 %v2936, %v3926
  %v3928 = vpop.f32.mrf.mxu0
  %v3929 = vpop.f32.mrf.mxu0
  %v3930 = vpop.f32.mrf.mxu0
  %3931 = vdwg.mxu0
  %3932 = vmatprep.subr.bf16.mxu0 0
  %3933 = vmatpush1.bf16.msra.mxu0 %v3501
  %3934 = vmatprep.subr.bf16.mxu0 0
  %3935 = vmatpush1.bf16.msra.mxu0 %v3498
  %3936 = vmatprep.subr.bf16.mxu0 0
  %3937 = vmatpush1.bf16.msra.mxu0 %v3495
  %3938 = vmatprep.subr.bf16.mxu0 0
  %3939 = vmatpush1.bf16.msra.mxu0 %v3492
  %3940 = vmatprep.subr.bf16.mxu0 0
  %3941 = vmatpush1.bf16.msra.mxu0 %v3489
  %3942 = vmatprep.subr.bf16.mxu0 0
  %3943 = vmatpush1.bf16.msra.mxu0 %v3486
  %3944 = vmatprep.subr.bf16.mxu0 0
  %3945 = vmatpush1.bf16.msra.mxu0 %v3483
  %3946 = vmatprep.subr.bf16.mxu0 0
  %3947 = vmatpush1.bf16.msra.mxu0 %v3480
  %3948 = vmatprep.subr.bf16.mxu0 0
  %3949 = vmatpush2.bf16.msra.mxu0 %v3525
  %3950 = vmatprep.subr.bf16.mxu0 0
  %3951 = vmatpush2.bf16.msra.mxu0 %v3522
  %3952 = vmatprep.subr.bf16.mxu0 0
  %3953 = vmatpush2.bf16.msra.mxu0 %v3519
  %3954 = vmatprep.subr.bf16.mxu0 0
  %3955 = vmatpush2.bf16.msra.mxu0 %v3516
  %3956 = vmatprep.subr.bf16.mxu0 0
  %3957 = vmatpush2.bf16.msra.mxu0 %v3513
  %3958 = vmatprep.subr.bf16.mxu0 0
  %3959 = vmatpush2.bf16.msra.mxu0 %v3510
  %3960 = vmatprep.subr.bf16.mxu0 0
  %3961 = vmatpush2.bf16.msra.mxu0 %v3507
  %3962 = vmatprep.subr.bf16.mxu0 0
  %3963 = vmatpush2.bf16.msra.mxu0 %v3504
  %3964 = vmatprep.mubr.bf16.mxu0 %v2723
  %3965 = vmatmul.mubr.bf16.gmra.mxu0 %v2722
  %v3966 = vpop.f32.mrf.mxu0
  %v3967 = vadd.f32 %v3927, %v3966
  %v3968 = vpop.f32.mrf.mxu0
  %v3969 = vpop.f32.mrf.mxu0
  %v3970 = vpop.f32.mrf.mxu0
  %3971 = vdwg.mxu0
  %3972 = vmatprep.subr.bf16.mxu0 0
  %3973 = vmatpush1.bf16.msra.mxu0 %v3549
  %3974 = vmatprep.subr.bf16.mxu0 0
  %3975 = vmatpush1.bf16.msra.mxu0 %v3546
  %3976 = vmatprep.subr.bf16.mxu0 0
  %3977 = vmatpush1.bf16.msra.mxu0 %v3543
  %3978 = vmatprep.subr.bf16.mxu0 0
  %3979 = vmatpush1.bf16.msra.mxu0 %v3540
  %3980 = vmatprep.subr.bf16.mxu0 0
  %3981 = vmatpush1.bf16.msra.mxu0 %v3537
  %3982 = vmatprep.subr.bf16.mxu0 0
  %3983 = vmatpush1.bf16.msra.mxu0 %v3534
  %3984 = vmatprep.subr.bf16.mxu0 0
  %3985 = vmatpush1.bf16.msra.mxu0 %v3531
  %3986 = vmatprep.subr.bf16.mxu0 0
  %3987 = vmatpush1.bf16.msra.mxu0 %v3528
  %3988 = vmatprep.subr.bf16.mxu0 0
  %3989 = vmatpush2.bf16.msra.mxu0 %v3573
  %3990 = vmatprep.subr.bf16.mxu0 0
  %3991 = vmatpush2.bf16.msra.mxu0 %v3570
  %3992 = vmatprep.subr.bf16.mxu0 0
  %3993 = vmatpush2.bf16.msra.mxu0 %v3567
  %3994 = vmatprep.subr.bf16.mxu0 0
  %3995 = vmatpush2.bf16.msra.mxu0 %v3564
  %3996 = vmatprep.subr.bf16.mxu0 0
  %3997 = vmatpush2.bf16.msra.mxu0 %v3561
  %3998 = vmatprep.subr.bf16.mxu0 0
  %3999 = vmatpush2.bf16.msra.mxu0 %v3558
  %4000 = vmatprep.subr.bf16.mxu0 0
  %4001 = vmatpush2.bf16.msra.mxu0 %v3555
  %4002 = vmatprep.subr.bf16.mxu0 0
  %4003 = vmatpush2.bf16.msra.mxu0 %v3552
  %4004 = vmatprep.mubr.bf16.mxu0 %v2725
  %4005 = vmatmul.mubr.bf16.gmra.mxu0 %v2724
  %v4006 = vpop.f32.mrf.mxu0
  %v4007 = vadd.f32 %v3967, %v4006
  %v4008 = vpop.f32.mrf.mxu0
  %v4009 = vpop.f32.mrf.mxu0
  %v4010 = vpop.f32.mrf.mxu0
  %4011 = vdwg.mxu0
  %4012 = vmatprep.subr.bf16.mxu0 0
  %4013 = vmatpush1.bf16.msra.mxu0 0
  %4014 = vmatprep.subr.bf16.mxu0 0
  %4015 = vmatpush1.bf16.msra.mxu0 0
  %4016 = vmatprep.subr.bf16.mxu0 0
  %4017 = vmatpush1.bf16.msra.mxu0 0
  %4018 = vmatprep.subr.bf16.mxu0 0
  %4019 = vmatpush1.bf16.msra.mxu0 0
  %4020 = vmatprep.subr.bf16.mxu0 0
  %4021 = vmatpush1.bf16.msra.mxu0 0
  %4022 = vmatprep.subr.bf16.mxu0 0
  %4023 = vmatpush1.bf16.msra.mxu0 0
  %4024 = vmatprep.subr.bf16.mxu0 0
  %4025 = vmatpush1.bf16.msra.mxu0 0
  %4026 = vmatprep.subr.bf16.mxu0 0
  %4027 = vmatpush1.bf16.msra.mxu0 %v3576
  %4028 = vmatprep.subr.bf16.mxu0 0
  %4029 = vmatpush2.bf16.msra.mxu0 0
  %4030 = vmatprep.subr.bf16.mxu0 0
  %4031 = vmatpush2.bf16.msra.mxu0 0
  %4032 = vmatprep.subr.bf16.mxu0 0
  %4033 = vmatpush2.bf16.msra.mxu0 0
  %4034 = vmatprep.subr.bf16.mxu0 0
  %4035 = vmatpush2.bf16.msra.mxu0 0
  %4036 = vmatprep.subr.bf16.mxu0 0
  %4037 = vmatpush2.bf16.msra.mxu0 0
  %4038 = vmatprep.subr.bf16.mxu0 0
  %4039 = vmatpush2.bf16.msra.mxu0 0
  %4040 = vmatprep.subr.bf16.mxu0 0
  %4041 = vmatpush2.bf16.msra.mxu0 0
  %4042 = vmatprep.subr.bf16.mxu0 0
  %4043 = vmatpush2.bf16.msra.mxu0 0
  %4044 = vmatprep.mubr.bf16.mxu0 0
  %4045 = vmatmul.mubr.bf16.gmra.mxu0 %v3726
  %v4046 = vpop.f32.mrf.mxu0
  %v4047 = vadd.f32 %v4007, %v4046
  %v4048 = vpop.f32.mrf.mxu0
  %v4049 = vpop.f32.mrf.mxu0
  %v4050 = vpop.f32.mrf.mxu0
  %4051 = vdwg.mxu0
  %v4052 = vmax.f32 %v3886, 0.0
  %v4053 = vmax.f32 %v3888, 0.0
  %v4054 = vmax.f32 %v4047, 0.0
  %v4055 = vpack.c.bf16 %v4052, %v4052
  %v4056 = vpack.c.bf16 %v4053, %v4053
  %v4057 = vpack.c.bf16 %v4054, %v4054
  %v4058 = vld [vmem:[%s6] sm:$0xf]
  %v4059 = vld [vmem:[%s6 + $0x4] sm:$0xf]
  %v4060 = vld [vmem:[%s6 + $0x8] sm:$0xf]
  %v4061 = vld [vmem:[%s6 + $0xc] sm:$0xf]
  %v4062 = vld [vmem:[%s6 + $0x10] sm:$0xf]
  %v4063 = vld [vmem:[%s6 + $0x14] sm:$0xf]
  %v4064 = vld [vmem:[%s6 + $0x18] sm:$0xf]
  %v4065 = vld [vmem:[%s6 + $0x1c] sm:$0xf]
  %v4066 = vld [vmem:[%s6 + $0x20] sm:$0xf]
  %v4067 = vld [vmem:[%s6 + $0x24] sm:$0xf]
  %v4068 = vld [vmem:[%s6 + $0x28] sm:$0xf]
  %v4069 = vld [vmem:[%s6 + $0x2c] sm:$0xf]
  %v4070 = vld [vmem:[%s6 + $0x30] sm:$0xf]
  %v4071 = vld [vmem:[%s6 + $0x34] sm:$0xf]
  %v4072 = vld [vmem:[%s6 + $0x38] sm:$0xf]
  %v4073 = vld [vmem:[%s6 + $0x3c] sm:$0xf]
  %v4074 = vld [vmem:[%s6 + $0x40] sm:$0xf]
  %v4075 = vld [vmem:[%s6 + $0x44] sm:$0xf]
  %v4076 = vld [vmem:[%s6 + $0x48] sm:$0xf]
  %v4077 = vld [vmem:[%s6 + $0x4c] sm:$0xf]
  %v4078 = vld [vmem:[%s6 + $0x50] sm:$0xf]
  %v4079 = vld [vmem:[%s6 + $0x54] sm:$0xf]
  %v4080 = vld [vmem:[%s6 + $0x58] sm:$0xf]
  %v4081 = vld [vmem:[%s6 + $0x5c] sm:$0xf]
  %v4082 = vld [vmem:[%s6 + $0x60] sm:$0xf]
  %v4083 = vld [vmem:[%s6 + $0x64] sm:$0xf]
  %v4084 = vld [vmem:[%s6 + $0x68] sm:$0xf]
  %v4085 = vld [vmem:[%s6 + $0x6c] sm:$0xf]
  %v4086 = vld [vmem:[%s6 + $0x70] sm:$0xf]
  %v4087 = vld [vmem:[%s6 + $0x74] sm:$0xf]
  %v4088 = vld [vmem:[%s6 + $0x78] sm:$0xf]
  %v4089 = vld [vmem:[%s6 + $0x7c] sm:$0xf]
  %v4090 = vld [vmem:[%s6 + $0x80] sm:$0xf]
  %v4091 = vld [vmem:[%s6 + $0x84] sm:$0xf]
  %v4092 = vld [vmem:[%s6 + $0x88] sm:$0xf]
  %v4093 = vld [vmem:[%s6 + $0x8c] sm:$0xf]
  %v4094 = vld [vmem:[%s7] sm:$0x1]
  %v4096 = vlaneseq
  %v4097 = vshrl.u32 %v4096, 7
  %v4098 = vsub.s32 0, %v4097
  %v4099 = vrot.slane %v4094, %v4098
  %v4137 = vunpack.c.l.b16 %v4058
  %v4138 = vunpack.c.l.b16 %v4059
  %v4139 = vunpack.c.l.b16 %v4060
  %v4140 = vunpack.c.l.b16 %v4061
  %v4141 = vunpack.c.l.b16 %v4062
  %v4142 = vunpack.c.l.b16 %v4063
  %v4143 = vunpack.c.l.b16 %v4064
  %v4144 = vunpack.c.l.b16 %v4065
  %v4145 = vunpack.c.l.b16 %v4066
  %v4146 = vunpack.c.l.b16 %v4067
  %v4147 = vunpack.c.l.b16 %v4068
  %v4148 = vunpack.c.l.b16 %v4069
  %v4149 = vunpack.c.l.b16 %v4070
  %v4150 = vunpack.c.l.b16 %v4071
  %v4151 = vunpack.c.l.b16 %v4072
  %v4152 = vunpack.c.l.b16 %v4073
  %v4153 = vunpack.c.l.b16 %v4074
  %v4154 = vunpack.c.l.b16 %v4075
  %v4155 = vunpack.c.l.b16 %v4076
  %v4156 = vunpack.c.l.b16 %v4077
  %v4157 = vunpack.c.l.b16 %v4078
  %v4158 = vunpack.c.l.b16 %v4079
  %v4159 = vunpack.c.l.b16 %v4080
  %v4160 = vunpack.c.l.b16 %v4081
  %v4161 = vunpack.c.l.b16 %v4082
  %v4162 = vunpack.c.l.b16 %v4083
  %v4163 = vunpack.c.l.b16 %v4084
  %v4164 = vunpack.c.l.b16 %v4085
  %v4165 = vunpack.c.l.b16 %v4086
  %v4166 = vunpack.c.l.b16 %v4087
  %v4167 = vunpack.c.l.b16 %v4088
  %v4168 = vunpack.c.l.b16 %v4089
  %v4169 = vunpack.c.l.b16 %v4090
  %v4170 = vunpack.c.l.b16 %v4091
  %v4171 = vunpack.c.l.b16 %v4092
  %v4172 = vunpack.c.l.b16 %v4093
  %v4173 = vpack.c.b16 %v4138, %v4137
  %v4174 = vpack.c.b16 %v4140, %v4139
  %v4175 = vpack.c.b16 %v4142, %v4141
  %v4176 = vpack.c.b16 %v4144, %v4143
  %v4177 = vpack.c.b16 %v4146, %v4145
  %v4178 = vpack.c.b16 %v4148, %v4147
  %v4179 = vpack.c.b16 %v4150, %v4149
  %v4180 = vpack.c.b16 %v4152, %v4151
  %v4181 = vpack.c.b16 %v4154, %v4153
  %v4182 = vpack.c.b16 %v4156, %v4155
  %v4183 = vpack.c.b16 %v4158, %v4157
  %v4184 = vpack.c.b16 %v4160, %v4159
  %v4185 = vpack.c.b16 %v4162, %v4161
  %v4186 = vpack.c.b16 %v4164, %v4163
  %v4187 = vpack.c.b16 %v4166, %v4165
  %v4188 = vpack.c.b16 %v4168, %v4167
  %v4189 = vpack.c.b16 %v4170, %v4169
  %v4190 = vpack.c.b16 %v4172, %v4171
  %vm4209 = vcmask 261120
  %v4211 = vsel %vm4209, %v4057, 0
  %4213 = vmatprep.subr.bf16.mxu0 0
  %4214 = vmatpush1.bf16.msra.mxu0 %v4180
  %4215 = vmatprep.subr.bf16.mxu0 0
  %4216 = vmatpush1.bf16.msra.mxu0 %v4179
  %4217 = vmatprep.subr.bf16.mxu0 0
  %4218 = vmatpush1.bf16.msra.mxu0 %v4178
  %4219 = vmatprep.subr.bf16.mxu0 0
  %4220 = vmatpush1.bf16.msra.mxu0 %v4177
  %4221 = vmatprep.subr.bf16.mxu0 0
  %4222 = vmatpush1.bf16.msra.mxu0 %v4176
  %4223 = vmatprep.subr.bf16.mxu0 0
  %4224 = vmatpush1.bf16.msra.mxu0 %v4175
  %4225 = vmatprep.subr.bf16.mxu0 0
  %4226 = vmatpush1.bf16.msra.mxu0 %v4174
  %4227 = vmatprep.subr.bf16.mxu0 0
  %4228 = vmatpush1.bf16.msra.mxu0 %v4173
  %4229 = vmatprep.subr.bf16.mxu0 0
  %4230 = vmatpush2.bf16.msra.mxu0 %v4188
  %4231 = vmatprep.subr.bf16.mxu0 0
  %4232 = vmatpush2.bf16.msra.mxu0 %v4187
  %4233 = vmatprep.subr.bf16.mxu0 0
  %4234 = vmatpush2.bf16.msra.mxu0 %v4186
  %4235 = vmatprep.subr.bf16.mxu0 0
  %4236 = vmatpush2.bf16.msra.mxu0 %v4185
  %4237 = vmatprep.subr.bf16.mxu0 0
  %4238 = vmatpush2.bf16.msra.mxu0 %v4184
  %4239 = vmatprep.subr.bf16.mxu0 0
  %4240 = vmatpush2.bf16.msra.mxu0 %v4183
  %4241 = vmatprep.subr.bf16.mxu0 0
  %4242 = vmatpush2.bf16.msra.mxu0 %v4182
  %4243 = vmatprep.subr.bf16.mxu0 0
  %4244 = vmatpush2.bf16.msra.mxu0 %v4181
  %4245 = vmatprep.mubr.bf16.mxu0 %v4056
  %4246 = vmatmul.mubr.bf16.gmra.mxu0 %v4055
  %v4247 = vpop.f32.mrf.mxu0
  %v4248 = vadd.f32 %v4099, %v4247
  %v4249 = vpop.f32.mrf.mxu0
  %v4250 = vpop.f32.mrf.mxu0
  %v4251 = vpop.f32.mrf.mxu0
  %4252 = vdwg.mxu0
  %4253 = vmatprep.subr.bf16.mxu0 0
  %4254 = vmatpush1.bf16.msra.mxu0 0
  %4255 = vmatprep.subr.bf16.mxu0 0
  %4256 = vmatpush1.bf16.msra.mxu0 0
  %4257 = vmatprep.subr.bf16.mxu0 0
  %4258 = vmatpush1.bf16.msra.mxu0 0
  %4259 = vmatprep.subr.bf16.mxu0 0
  %4260 = vmatpush1.bf16.msra.mxu0 0
  %4261 = vmatprep.subr.bf16.mxu0 0
  %4262 = vmatpush1.bf16.msra.mxu0 0
  %4263 = vmatprep.subr.bf16.mxu0 0
  %4264 = vmatpush1.bf16.msra.mxu0 0
  %4265 = vmatprep.subr.bf16.mxu0 0
  %4266 = vmatpush1.bf16.msra.mxu0 %v4190
  %4267 = vmatprep.subr.bf16.mxu0 0
  %4268 = vmatpush1.bf16.msra.mxu0 %v4189
  %4269 = vmatprep.subr.bf16.mxu0 0
  %4270 = vmatpush2.bf16.msra.mxu0 0
  %4271 = vmatprep.subr.bf16.mxu0 0
  %4272 = vmatpush2.bf16.msra.mxu0 0
  %4273 = vmatprep.subr.bf16.mxu0 0
  %4274 = vmatpush2.bf16.msra.mxu0 0
  %4275 = vmatprep.subr.bf16.mxu0 0
  %4276 = vmatpush2.bf16.msra.mxu0 0
  %4277 = vmatprep.subr.bf16.mxu0 0
  %4278 = vmatpush2.bf16.msra.mxu0 0
  %4279 = vmatprep.subr.bf16.mxu0 0
  %4280 = vmatpush2.bf16.msra.mxu0 0
  %4281 = vmatprep.subr.bf16.mxu0 0
  %4282 = vmatpush2.bf16.msra.mxu0 0
  %4283 = vmatprep.subr.bf16.mxu0 0
  %4284 = vmatpush2.bf16.msra.mxu0 0
  %4285 = vmatprep.mubr.bf16.mxu0 0
  %4286 = vmatmul.mubr.bf16.gmra.mxu0 %v4211
  %v4287 = vpop.f32.mrf.mxu0
  %v4288 = vadd.f32 %v4248, %v4287
  %v4289 = vpop.f32.mrf.mxu0
  %v4290 = vpop.f32.mrf.mxu0
  %v4291 = vpop.f32.mrf.mxu0
  %4292 = vdwg.mxu0
  %v4293 = vmax.f32 %v4288, 0.0
  %v4294 = vpack.c.bf16 %v4293, %v4293
  %v4295 = vld [vmem:[%s8] sm:$0xf]
  %v4296 = vld [vmem:[%s8 + $0x4] sm:$0xf]
  %v4297 = vld [vmem:[%s8 + $0x8] sm:$0xf]
  %v4298 = vld [vmem:[%s8 + $0xc] sm:$0xf]
  %v4299 = vld [vmem:[%s9] sm:$0x1]
  %v4301 = vlaneseq
  %v4302 = vshrl.u32 %v4301, 7
  %v4303 = vsub.s32 0, %v4302
  %v4304 = vrot.slane %v4299, %v4303
  %v4310 = vunpack.c.l.b16 %v4295
  %v4311 = vunpack.c.l.b16 %v4296
  %v4312 = vunpack.c.l.b16 %v4297
  %v4313 = vunpack.c.l.b16 %v4298
  %v4314 = vpack.c.b16 %v4311, %v4310
  %v4315 = vpack.c.b16 %v4313, %v4312
  %v4319 = vsel %vm4209, %v4294, 0
  %4321 = vmatprep.subr.bf16.mxu0 0
  %4322 = vmatpush1.bf16.msra.mxu0 0
  %4323 = vmatprep.subr.bf16.mxu0 0
  %4324 = vmatpush1.bf16.msra.mxu0 0
  %4325 = vmatprep.subr.bf16.mxu0 0
  %4326 = vmatpush1.bf16.msra.mxu0 0
  %4327 = vmatprep.subr.bf16.mxu0 0
  %4328 = vmatpush1.bf16.msra.mxu0 0
  %4329 = vmatprep.subr.bf16.mxu0 0
  %4330 = vmatpush1.bf16.msra.mxu0 0
  %4331 = vmatprep.subr.bf16.mxu0 0
  %4332 = vmatpush1.bf16.msra.mxu0 0
  %4333 = vmatprep.subr.bf16.mxu0 0
  %4334 = vmatpush1.bf16.msra.mxu0 %v4315
  %4335 = vmatprep.subr.bf16.mxu0 0
  %4336 = vmatpush1.bf16.msra.mxu0 %v4314
  %4337 = vmatprep.subr.bf16.mxu0 0
  %4338 = vmatpush2.bf16.msra.mxu0 0
  %4339 = vmatprep.subr.bf16.mxu0 0
  %4340 = vmatpush2.bf16.msra.mxu0 0
  %4341 = vmatprep.subr.bf16.mxu0 0
  %4342 = vmatpush2.bf16.msra.mxu0 0
  %4343 = vmatprep.subr.bf16.mxu0 0
  %4344 = vmatpush2.bf16.msra.mxu0 0
  %4345 = vmatprep.subr.bf16.mxu0 0
  %4346 = vmatpush2.bf16.msra.mxu0 0
  %4347 = vmatprep.subr.bf16.mxu0 0
  %4348 = vmatpush2.bf16.msra.mxu0 0
  %4349 = vmatprep.subr.bf16.mxu0 0
  %4350 = vmatpush2.bf16.msra.mxu0 0
  %4351 = vmatprep.subr.bf16.mxu0 0
  %4352 = vmatpush2.bf16.msra.mxu0 0
  %4353 = vmatprep.mubr.bf16.mxu0 0
  %4354 = vmatmul.mubr.bf16.gmra.mxu0 %v4319
  %v4355 = vpop.f32.mrf.mxu0
  %v4356 = vadd.f32 %v4304, %v4355
  %v4357 = vpop.f32.mrf.mxu0
  %v4358 = vpop.f32.mrf.mxu0
  %v4359 = vpop.f32.mrf.mxu0
  %4360 = vdwg.mxu0
  %v4361 = vmax.f32 %v4356, 0.0
  %v4362 = vld [vmem:[%s1] sm:$0xf]
  %v4363 = vpack.c.bf16 %v4362, %v4362
  %v4364 = vld [vmem:[%s10] sm:$0xff]
  %v4365 = vld [vmem:[%s10 + $0x8] sm:$0xf]
  %v4366 = vpack.c.bf16 %v4361, %v4361
  %v4367 = vld [vmem:[%s11] sm:$0xff]
  %v4368 = vld [vmem:[%s11 + $0x8] sm:$0xf]
  %v4369 = vld [vmem:[%s11 + $0xc] sm:$0xff]
  %v4370 = vld [vmem:[%s11 + $0x14] sm:$0xf]
  %v4371 = vld [vmem:[%s11 + $0x18] sm:$0xff]
  %v4372 = vld [vmem:[%s11 + $0x20] sm:$0xf]
  %v4373 = vld [vmem:[%s11 + $0x24] sm:$0xff]
  %v4374 = vld [vmem:[%s11 + $0x2c] sm:$0xf]
  %v4375 = vld [vmem:[%s12] sm:$0x7]
  %v4377 = vlaneseq
  %v4378 = vshrl.u32 %v4377, 7
  %v4379 = vsub.s32 0, %v4378
  %v4380 = vrot.slane %v4375, %v4379
  %v4381 = vlaneseq
  %v4382 = vshrl.u32 %v4381, 7
  %v4383 = vsub.s32 1, %v4382
  %v4384 = vrot.slane %v4375, %v4383
  %v4385 = vlaneseq
  %v4386 = vshrl.u32 %v4385, 7
  %v4387 = vsub.s32 2, %v4386
  %v4388 = vrot.slane %v4375, %v4387
  %v4400 = vunpack.c.l.b16 %v4367
  %v4401 = vunpack.c.h.b16 %v4367
  %v4402 = vunpack.c.l.b16 %v4368
  %v4403 = vunpack.c.l.b16 %v4369
  %v4404 = vunpack.c.h.b16 %v4369
  %v4405 = vunpack.c.l.b16 %v4370
  %v4406 = vunpack.c.l.b16 %v4371
  %v4407 = vunpack.c.h.b16 %v4371
  %v4408 = vunpack.c.l.b16 %v4372
  %v4409 = vunpack.c.l.b16 %v4373
  %v4410 = vunpack.c.h.b16 %v4373
  %v4411 = vunpack.c.l.b16 %v4374
  %v4412 = vpack.c.b16 %v4403, %v4400
  %v4413 = vpack.c.b16 %v4404, %v4401
  %v4414 = vpack.c.b16 %v4405, %v4402
  %v4415 = vpack.c.b16 %v4409, %v4406
  %v4416 = vpack.c.b16 %v4410, %v4407
  %v4417 = vpack.c.b16 %v4411, %v4408
  %v4425 = vsel %vm4209, %v4366, 0
  %4427 = vmatprep.subr.bf16.mxu0 0
  %4428 = vmatpush1.bf16.msra.mxu0 0
  %4429 = vmatprep.subr.bf16.mxu0 0
  %4430 = vmatpush1.bf16.msra.mxu0 0
  %4431 = vmatprep.subr.bf16.mxu0 0
  %4432 = vmatpush1.bf16.msra.mxu0 0
  %4433 = vmatprep.subr.bf16.mxu0 0
  %4434 = vmatpush1.bf16.msra.mxu0 0
  %4435 = vmatprep.subr.bf16.mxu0 0
  %4436 = vmatpush1.bf16.msra.mxu0 0
  %4437 = vmatprep.subr.bf16.mxu0 0
  %4438 = vmatpush1.bf16.msra.mxu0 0
  %4439 = vmatprep.subr.bf16.mxu0 %v4416
  %4440 = vmatpush1.bf16.msra.mxu0 %v4415
  %4441 = vmatprep.subr.bf16.mxu0 %v4413
  %4442 = vmatpush1.bf16.msra.mxu0 %v4412
  %4443 = vmatprep.subr.bf16.mxu0 0
  %4444 = vmatpush2.bf16.msra.mxu0 0
  %4445 = vmatprep.subr.bf16.mxu0 0
  %4446 = vmatpush2.bf16.msra.mxu0 0
  %4447 = vmatprep.subr.bf16.mxu0 0
  %4448 = vmatpush2.bf16.msra.mxu0 0
  %4449 = vmatprep.subr.bf16.mxu0 0
  %4450 = vmatpush2.bf16.msra.mxu0 0
  %4451 = vmatprep.subr.bf16.mxu0 0
  %4452 = vmatpush2.bf16.msra.mxu0 0
  %4453 = vmatprep.subr.bf16.mxu0 0
  %4454 = vmatpush2.bf16.msra.mxu0 0
  %4455 = vmatprep.subr.bf16.mxu0 0
  %4456 = vmatpush2.bf16.msra.mxu0 0
  %4457 = vmatprep.subr.bf16.mxu0 0
  %4458 = vmatpush2.bf16.msra.mxu0 0
  %4459 = vmatprep.mubr.bf16.mxu0 0
  %4460 = vmatmul.mubr.bf16.gmra.mxu0 %v4425
  %v4461 = vpop.f32.mrf.mxu0
  %v4462 = vadd.f32 %v4380, %v4461
  %v4463 = vpop.f32.mrf.mxu0
  %v4464 = vadd.f32 %v4384, %v4463
  %v4465 = vpop.f32.mrf.mxu0
  %v4466 = vpop.f32.mrf.mxu0
  %4467 = vdwg.mxu0
  %4468 = vmatprep.subr.bf16.mxu0 0
  %4469 = vmatpush1.bf16.msra.mxu0 0
  %4470 = vmatprep.subr.bf16.mxu0 0
  %4471 = vmatpush1.bf16.msra.mxu0 0
  %4472 = vmatprep.subr.bf16.mxu0 0
  %4473 = vmatpush1.bf16.msra.mxu0 0
  %4474 = vmatprep.subr.bf16.mxu0 0
  %4475 = vmatpush1.bf16.msra.mxu0 0
  %4476 = vmatprep.subr.bf16.mxu0 0
  %4477 = vmatpush1.bf16.msra.mxu0 0
  %4478 = vmatprep.subr.bf16.mxu0 0
  %4479 = vmatpush1.bf16.msra.mxu0 0
  %4480 = vmatprep.subr.bf16.mxu0 0
  %4481 = vmatpush1.bf16.msra.mxu0 %v4417
  %4482 = vmatprep.subr.bf16.mxu0 0
  %4483 = vmatpush1.bf16.msra.mxu0 %v4414
  %4484 = vmatprep.subr.bf16.mxu0 0
  %4485 = vmatpush2.bf16.msra.mxu0 0
  %4486 = vmatprep.subr.bf16.mxu0 0
  %4487 = vmatpush2.bf16.msra.mxu0 0
  %4488 = vmatprep.subr.bf16.mxu0 0
  %4489 = vmatpush2.bf16.msra.mxu0 0
  %4490 = vmatprep.subr.bf16.mxu0 0
  %4491 = vmatpush2.bf16.msra.mxu0 0
  %4492 = vmatprep.subr.bf16.mxu0 0
  %4493 = vmatpush2.bf16.msra.mxu0 0
  %4494 = vmatprep.subr.bf16.mxu0 0
  %4495 = vmatpush2.bf16.msra.mxu0 0
  %4496 = vmatprep.subr.bf16.mxu0 0
  %4497 = vmatpush2.bf16.msra.mxu0 0
  %4498 = vmatprep.subr.bf16.mxu0 0
  %4499 = vmatpush2.bf16.msra.mxu0 0
  %4500 = vmatprep.mubr.bf16.mxu0 0
  %4501 = vmatmul.mubr.bf16.gmra.mxu0 %v4425
  %v4502 = vpop.f32.mrf.mxu0
  %v4503 = vadd.f32 %v4388, %v4502
  %v4504 = vpop.f32.mrf.mxu0
  %v4505 = vpop.f32.mrf.mxu0
  %v4506 = vpop.f32.mrf.mxu0
  %4507 = vdwg.mxu0
  %v4510 = vunpack.c.l.b16 %v4364
  %v4511 = vunpack.c.h.b16 %v4364
  %v4512 = vunpack.c.l.b16 %v4365
  %v4513 = vpack.c.b16 %v4510, %v4510
  %v4514 = vpack.c.b16 %v4511, %v4511
  %v4515 = vpack.c.b16 %v4512, %v4512
  %vm4516 = vcmask 64512
  %v4518 = vsel %vm4516, %v4363, 0
  %vm4520 = vcmask 1043456
  %v4522 = vsel %vm4520, %v4513, 0
  %v4525 = vsel %vm4520, %v4514, 0
  %v4528 = vsel %vm4520, %v4515, 0
  %4530 = vmatprep.subr.bf16.mxu0 0
  %4531 = vmatpush1.bf16.msra.mxu0 0
  %4532 = vmatprep.subr.bf16.mxu0 0
  %4533 = vmatpush1.bf16.msra.mxu0 0
  %4534 = vmatprep.subr.bf16.mxu0 0
  %4535 = vmatpush1.bf16.msra.mxu0 0
  %4536 = vmatprep.subr.bf16.mxu0 0
  %4537 = vmatpush1.bf16.msra.mxu0 0
  %4538 = vmatprep.subr.bf16.mxu0 0
  %4539 = vmatpush1.bf16.msra.mxu0 0
  %4540 = vmatprep.subr.bf16.mxu0 0
  %4541 = vmatpush1.bf16.msra.mxu0 0
  %4542 = vmatprep.subr.bf16.mxu0 0
  %4543 = vmatpush1.bf16.msra.mxu0 0
  %4544 = vmatprep.subr.bf16.mxu0 %v4525
  %4545 = vmatpush1.bf16.msra.mxu0 %v4522
  %4546 = vmatprep.subr.bf16.mxu0 0
  %4547 = vmatpush2.bf16.msra.mxu0 0
  %4548 = vmatprep.subr.bf16.mxu0 0
  %4549 = vmatpush2.bf16.msra.mxu0 0
  %4550 = vmatprep.subr.bf16.mxu0 0
  %4551 = vmatpush2.bf16.msra.mxu0 0
  %4552 = vmatprep.subr.bf16.mxu0 0
  %4553 = vmatpush2.bf16.msra.mxu0 0
  %4554 = vmatprep.subr.bf16.mxu0 0
  %4555 = vmatpush2.bf16.msra.mxu0 0
  %4556 = vmatprep.subr.bf16.mxu0 0
  %4557 = vmatpush2.bf16.msra.mxu0 0
  %4558 = vmatprep.subr.bf16.mxu0 0
  %4559 = vmatpush2.bf16.msra.mxu0 0
  %4560 = vmatprep.subr.bf16.mxu0 0
  %4561 = vmatpush2.bf16.msra.mxu0 0
  %4562 = vmatprep.mubr.bf16.mxu0 0
  %4563 = vmatmul.mubr.bf16.gmra.mxu0 %v4518
  %v4564 = vpop.f32.mrf.mxu0
  %v4565 = vadd.f32 %v4462, %v4564
  %v4566 = vpop.f32.mrf.mxu0
  %v4567 = vadd.f32 %v4464, %v4566
  %v4568 = vpop.f32.mrf.mxu0
  %v4569 = vpop.f32.mrf.mxu0
  %4570 = vdwg.mxu0
  %4571 = vmatprep.subr.bf16.mxu0 0
  %4572 = vmatpush1.bf16.msra.mxu0 0
  %4573 = vmatprep.subr.bf16.mxu0 0
  %4574 = vmatpush1.bf16.msra.mxu0 0
  %4575 = vmatprep.subr.bf16.mxu0 0
  %4576 = vmatpush1.bf16.msra.mxu0 0
  %4577 = vmatprep.subr.bf16.mxu0 0
  %4578 = vmatpush1.bf16.msra.mxu0 0
  %4579 = vmatprep.subr.bf16.mxu0 0
  %4580 = vmatpush1.bf16.msra.mxu0 0
  %4581 = vmatprep.subr.bf16.mxu0 0
  %4582 = vmatpush1.bf16.msra.mxu0 0
  %4583 = vmatprep.subr.bf16.mxu0 0
  %4584 = vmatpush1.bf16.msra.mxu0 0
  %4585 = vmatprep.subr.bf16.mxu0 0
  %4586 = vmatpush1.bf16.msra.mxu0 %v4528
  %4587 = vmatprep.subr.bf16.mxu0 0
  %4588 = vmatpush2.bf16.msra.mxu0 0
  %4589 = vmatprep.subr.bf16.mxu0 0
  %4590 = vmatpush2.bf16.msra.mxu0 0
  %4591 = vmatprep.subr.bf16.mxu0 0
  %4592 = vmatpush2.bf16.msra.mxu0 0
  %4593 = vmatprep.subr.bf16.mxu0 0
  %4594 = vmatpush2.bf16.msra.mxu0 0
  %4595 = vmatprep.subr.bf16.mxu0 0
  %4596 = vmatpush2.bf16.msra.mxu0 0
  %4597 = vmatprep.subr.bf16.mxu0 0
  %4598 = vmatpush2.bf16.msra.mxu0 0
  %4599 = vmatprep.subr.bf16.mxu0 0
  %4600 = vmatpush2.bf16.msra.mxu0 0
  %4601 = vmatprep.subr.bf16.mxu0 0
  %4602 = vmatpush2.bf16.msra.mxu0 0
  %4603 = vmatprep.mubr.bf16.mxu0 0
  %4604 = vmatmul.mubr.bf16.gmra.mxu0 %v4518
  %v4605 = vpop.f32.mrf.mxu0
  %v4606 = vadd.f32 %v4503, %v4605
  %v4607 = vpop.f32.mrf.mxu0
  %v4608 = vpop.f32.mrf.mxu0
  %v4609 = vpop.f32.mrf.mxu0
  %4610 = vdwg.mxu0
  %v4611 = vmax.f32 %v4565, 0.0
  %v4612 = vmax.f32 %v4567, 0.0
  %v4613 = vmax.f32 %v4606, 0.0
  %v4614 = vpack.c.bf16 %v4611, %v4611
  %v4615 = vpack.c.bf16 %v4612, %v4612
  %v4616 = vpack.c.bf16 %v4613, %v4613
  %v4617 = vld [vmem:[%s13] sm:$0xff]
  %v4618 = vld [vmem:[%s13 + $0x8] sm:$0xf]
  %v4619 = vld [vmem:[%s13 + $0xc] sm:$0xff]
  %v4620 = vld [vmem:[%s13 + $0x14] sm:$0xf]
  %v4621 = vld [vmem:[%s13 + $0x18] sm:$0xff]
  %v4622 = vld [vmem:[%s13 + $0x20] sm:$0xf]
  %v4623 = vld [vmem:[%s13 + $0x24] sm:$0xff]
  %v4624 = vld [vmem:[%s13 + $0x2c] sm:$0xf]
  %v4625 = vld [vmem:[%s13 + $0x30] sm:$0xff]
  %v4626 = vld [vmem:[%s13 + $0x38] sm:$0xf]
  %v4627 = vld [vmem:[%s13 + $0x3c] sm:$0xff]
  %v4628 = vld [vmem:[%s13 + $0x44] sm:$0xf]
  %v4629 = vld [vmem:[%s13 + $0x48] sm:$0xff]
  %v4630 = vld [vmem:[%s13 + $0x50] sm:$0xf]
  %v4631 = vld [vmem:[%s13 + $0x54] sm:$0xff]
  %v4632 = vld [vmem:[%s13 + $0x5c] sm:$0xf]
  %v4633 = vld [vmem:[%s13 + $0x60] sm:$0xff]
  %v4634 = vld [vmem:[%s13 + $0x68] sm:$0xf]
  %v4635 = vld [vmem:[%s13 + $0x6c] sm:$0xff]
  %v4636 = vld [vmem:[%s13 + $0x74] sm:$0xf]
  %v4637 = vld [vmem:[%s13 + $0x78] sm:$0xff]
  %v4638 = vld [vmem:[%s13 + $0x80] sm:$0xf]
  %v4639 = vld [vmem:[%s13 + $0x84] sm:$0xff]
  %v4640 = vld [vmem:[%s13 + $0x8c] sm:$0xf]
  %v4641 = vld [vmem:[%s13 + $0x90] sm:$0xff]
  %v4642 = vld [vmem:[%s13 + $0x98] sm:$0xf]
  %v4643 = vld [vmem:[%s13 + $0x9c] sm:$0xff]
  %v4644 = vld [vmem:[%s13 + $0xa4] sm:$0xf]
  %v4645 = vld [vmem:[%s13 + $0xa8] sm:$0xff]
  %v4646 = vld [vmem:[%s13 + $0xb0] sm:$0xf]
  %v4647 = vld [vmem:[%s13 + $0xb4] sm:$0xff]
  %v4648 = vld [vmem:[%s13 + $0xbc] sm:$0xf]
  %v4649 = vld [vmem:[%s13 + $0xc0] sm:$0xff]
  %v4650 = vld [vmem:[%s13 + $0xc8] sm:$0xf]
  %v4651 = vld [vmem:[%s13 + $0xcc] sm:$0xff]
  %v4652 = vld [vmem:[%s13 + $0xd4] sm:$0xf]
  %v4653 = vld [vmem:[%s13 + $0xd8] sm:$0xff]
  %v4654 = vld [vmem:[%s13 + $0xe0] sm:$0xf]
  %v4655 = vld [vmem:[%s13 + $0xe4] sm:$0xff]
  %v4656 = vld [vmem:[%s13 + $0xec] sm:$0xf]
  %v4657 = vld [vmem:[%s13 + $0xf0] sm:$0xff]
  %v4658 = vld [vmem:[%s13 + $0xf8] sm:$0xf]
  %v4659 = vld [vmem:[%s13 + $0xfc] sm:$0xff]
  %v4660 = vld [vmem:[%s13 + $0x104] sm:$0xf]
  %v4661 = vld [vmem:[%s13 + $0x108] sm:$0xff]
  %v4662 = vld [vmem:[%s13 + $0x110] sm:$0xf]
  %v4663 = vld [vmem:[%s13 + $0x114] sm:$0xff]
  %v4664 = vld [vmem:[%s13 + $0x11c] sm:$0xf]
  %v4665 = vld [vmem:[%s13 + $0x120] sm:$0xff]
  %v4666 = vld [vmem:[%s13 + $0x128] sm:$0xf]
  %v4667 = vld [vmem:[%s13 + $0x12c] sm:$0xff]
  %v4668 = vld [vmem:[%s13 + $0x134] sm:$0xf]
  %v4669 = vld [vmem:[%s13 + $0x138] sm:$0xff]
  %v4670 = vld [vmem:[%s13 + $0x140] sm:$0xf]
  %v4671 = vld [vmem:[%s13 + $0x144] sm:$0xff]
  %v4672 = vld [vmem:[%s13 + $0x14c] sm:$0xf]
  %v4673 = vld [vmem:[%s13 + $0x150] sm:$0xff]
  %v4674 = vld [vmem:[%s13 + $0x158] sm:$0xf]
  %v4675 = vld [vmem:[%s13 + $0x15c] sm:$0xff]
  %v4676 = vld [vmem:[%s13 + $0x164] sm:$0xf]
  %v4677 = vld [vmem:[%s13 + $0x168] sm:$0xff]
  %v4678 = vld [vmem:[%s13 + $0x170] sm:$0xf]
  %v4679 = vld [vmem:[%s13 + $0x174] sm:$0xff]
  %v4680 = vld [vmem:[%s13 + $0x17c] sm:$0xf]
  %v4681 = vld [vmem:[%s13 + $0x180] sm:$0xff]
  %v4682 = vld [vmem:[%s13 + $0x188] sm:$0xf]
  %v4683 = vld [vmem:[%s13 + $0x18c] sm:$0xff]
  %v4684 = vld [vmem:[%s13 + $0x194] sm:$0xf]
  %v4685 = vld [vmem:[%s13 + $0x198] sm:$0xff]
  %v4686 = vld [vmem:[%s13 + $0x1a0] sm:$0xf]
  %v4687 = vld [vmem:[%s13 + $0x1a4] sm:$0xff]
  %v4688 = vld [vmem:[%s13 + $0x1ac] sm:$0xf]
  %v4689 = vld [vmem:[%s13 + $0x1b0] sm:$0xff]
  %v4690 = vld [vmem:[%s13 + $0x1b8] sm:$0xf]
  %v4691 = vld [vmem:[%s13 + $0x1bc] sm:$0xff]
  %v4692 = vld [vmem:[%s13 + $0x1c4] sm:$0xf]
  %v4693 = vld [vmem:[%s13 + $0x1c8] sm:$0xff]
  %v4694 = vld [vmem:[%s13 + $0x1d0] sm:$0xf]
  %v4695 = vld [vmem:[%s13 + $0x1d4] sm:$0xff]
  %v4696 = vld [vmem:[%s13 + $0x1dc] sm:$0xf]
  %v4697 = vld [vmem:[%s14] sm:$0x7]
  %v4699 = vlaneseq
  %v4700 = vshrl.u32 %v4699, 7
  %v4701 = vsub.s32 0, %v4700
  %v4702 = vrot.slane %v4697, %v4701
  %v4703 = vlaneseq
  %v4704 = vshrl.u32 %v4703, 7
  %v4705 = vsub.s32 1, %v4704
  %v4706 = vrot.slane %v4697, %v4705
  %v4707 = vlaneseq
  %v4708 = vshrl.u32 %v4707, 7
  %v4709 = vsub.s32 2, %v4708
  %v4710 = vrot.slane %v4697, %v4709
  %v4794 = vunpack.c.l.b16 %v4617
  %v4795 = vunpack.c.h.b16 %v4617
  %v4796 = vunpack.c.l.b16 %v4618
  %v4797 = vunpack.c.l.b16 %v4619
  %v4798 = vunpack.c.h.b16 %v4619
  %v4799 = vunpack.c.l.b16 %v4620
  %v4800 = vunpack.c.l.b16 %v4621
  %v4801 = vunpack.c.h.b16 %v4621
  %v4802 = vunpack.c.l.b16 %v4622
  %v4803 = vunpack.c.l.b16 %v4623
  %v4804 = vunpack.c.h.b16 %v4623
  %v4805 = vunpack.c.l.b16 %v4624
  %v4806 = vunpack.c.l.b16 %v4625
  %v4807 = vunpack.c.h.b16 %v4625
  %v4808 = vunpack.c.l.b16 %v4626
  %v4809 = vunpack.c.l.b16 %v4627
  %v4810 = vunpack.c.h.b16 %v4627
  %v4811 = vunpack.c.l.b16 %v4628
  %v4812 = vunpack.c.l.b16 %v4629
  %v4813 = vunpack.c.h.b16 %v4629
  %v4814 = vunpack.c.l.b16 %v4630
  %v4815 = vunpack.c.l.b16 %v4631
  %v4816 = vunpack.c.h.b16 %v4631
  %v4817 = vunpack.c.l.b16 %v4632
  %v4818 = vunpack.c.l.b16 %v4633
  %v4819 = vunpack.c.h.b16 %v4633
  %v4820 = vunpack.c.l.b16 %v4634
  %v4821 = vunpack.c.l.b16 %v4635
  %v4822 = vunpack.c.h.b16 %v4635
  %v4823 = vunpack.c.l.b16 %v4636
  %v4824 = vunpack.c.l.b16 %v4637
  %v4825 = vunpack.c.h.b16 %v4637
  %v4826 = vunpack.c.l.b16 %v4638
  %v4827 = vunpack.c.l.b16 %v4639
  %v4828 = vunpack.c.h.b16 %v4639
  %v4829 = vunpack.c.l.b16 %v4640
  %v4830 = vunpack.c.l.b16 %v4641
  %v4831 = vunpack.c.h.b16 %v4641
  %v4832 = vunpack.c.l.b16 %v4642
  %v4833 = vunpack.c.l.b16 %v4643
  %v4834 = vunpack.c.h.b16 %v4643
  %v4835 = vunpack.c.l.b16 %v4644
  %v4836 = vunpack.c.l.b16 %v4645
  %v4837 = vunpack.c.h.b16 %v4645
  %v4838 = vunpack.c.l.b16 %v4646
  %v4839 = vunpack.c.l.b16 %v4647
  %v4840 = vunpack.c.h.b16 %v4647
  %v4841 = vunpack.c.l.b16 %v4648
  %v4842 = vunpack.c.l.b16 %v4649
  %v4843 = vunpack.c.h.b16 %v4649
  %v4844 = vunpack.c.l.b16 %v4650
  %v4845 = vunpack.c.l.b16 %v4651
  %v4846 = vunpack.c.h.b16 %v4651
  %v4847 = vunpack.c.l.b16 %v4652
  %v4848 = vunpack.c.l.b16 %v4653
  %v4849 = vunpack.c.h.b16 %v4653
  %v4850 = vunpack.c.l.b16 %v4654
  %v4851 = vunpack.c.l.b16 %v4655
  %v4852 = vunpack.c.h.b16 %v4655
  %v4853 = vunpack.c.l.b16 %v4656
  %v4854 = vunpack.c.l.b16 %v4657
  %v4855 = vunpack.c.h.b16 %v4657
  %v4856 = vunpack.c.l.b16 %v4658
  %v4857 = vunpack.c.l.b16 %v4659
  %v4858 = vunpack.c.h.b16 %v4659
  %v4859 = vunpack.c.l.b16 %v4660
  %v4860 = vunpack.c.l.b16 %v4661
  %v4861 = vunpack.c.h.b16 %v4661
  %v4862 = vunpack.c.l.b16 %v4662
  %v4863 = vunpack.c.l.b16 %v4663
  %v4864 = vunpack.c.h.b16 %v4663
  %v4865 = vunpack.c.l.b16 %v4664
  %v4866 = vunpack.c.l.b16 %v4665
  %v4867 = vunpack.c.h.b16 %v4665
  %v4868 = vunpack.c.l.b16 %v4666
  %v4869 = vunpack.c.l.b16 %v4667
  %v4870 = vunpack.c.h.b16 %v4667
  %v4871 = vunpack.c.l.b16 %v4668
  %v4872 = vunpack.c.l.b16 %v4669
  %v4873 = vunpack.c.h.b16 %v4669
  %v4874 = vunpack.c.l.b16 %v4670
  %v4875 = vunpack.c.l.b16 %v4671
  %v4876 = vunpack.c.h.b16 %v4671
  %v4877 = vunpack.c.l.b16 %v4672
  %v4878 = vunpack.c.l.b16 %v4673
  %v4879 = vunpack.c.h.b16 %v4673
  %v4880 = vunpack.c.l.b16 %v4674
  %v4881 = vunpack.c.l.b16 %v4675
  %v4882 = vunpack.c.h.b16 %v4675
  %v4883 = vunpack.c.l.b16 %v4676
  %v4884 = vunpack.c.l.b16 %v4677
  %v4885 = vunpack.c.h.b16 %v4677
  %v4886 = vunpack.c.l.b16 %v4678
  %v4887 = vunpack.c.l.b16 %v4679
  %v4888 = vunpack.c.h.b16 %v4679
  %v4889 = vunpack.c.l.b16 %v4680
  %v4890 = vunpack.c.l.b16 %v4681
  %v4891 = vunpack.c.h.b16 %v4681
  %v4892 = vunpack.c.l.b16 %v4682
  %v4893 = vunpack.c.l.b16 %v4683
  %v4894 = vunpack.c.h.b16 %v4683
  %v4895 = vunpack.c.l.b16 %v4684
  %v4896 = vunpack.c.l.b16 %v4685
  %v4897 = vunpack.c.h.b16 %v4685
  %v4898 = vunpack.c.l.b16 %v4686
  %v4899 = vunpack.c.l.b16 %v4687
  %v4900 = vunpack.c.h.b16 %v4687
  %v4901 = vunpack.c.l.b16 %v4688
  %v4902 = vunpack.c.l.b16 %v4689
  %v4903 = vunpack.c.h.b16 %v4689
  %v4904 = vunpack.c.l.b16 %v4690
  %v4905 = vunpack.c.l.b16 %v4691
  %v4906 = vunpack.c.h.b16 %v4691
  %v4907 = vunpack.c.l.b16 %v4692
  %v4908 = vunpack.c.l.b16 %v4693
  %v4909 = vunpack.c.h.b16 %v4693
  %v4910 = vunpack.c.l.b16 %v4694
  %v4911 = vunpack.c.l.b16 %v4695
  %v4912 = vunpack.c.h.b16 %v4695
  %v4913 = vunpack.c.l.b16 %v4696
  %v4914 = vpack.c.b16 %v4797, %v4794
  %v4915 = vpack.c.b16 %v4798, %v4795
  %v4916 = vpack.c.b16 %v4799, %v4796
  %v4917 = vpack.c.b16 %v4803, %v4800
  %v4918 = vpack.c.b16 %v4804, %v4801
  %v4919 = vpack.c.b16 %v4805, %v4802
  %v4920 = vpack.c.b16 %v4809, %v4806
  %v4921 = vpack.c.b16 %v4810, %v4807
  %v4922 = vpack.c.b16 %v4811, %v4808
  %v4923 = vpack.c.b16 %v4815, %v4812
  %v4924 = vpack.c.b16 %v4816, %v4813
  %v4925 = vpack.c.b16 %v4817, %v4814
  %v4926 = vpack.c.b16 %v4821, %v4818
  %v4927 = vpack.c.b16 %v4822, %v4819
  %v4928 = vpack.c.b16 %v4823, %v4820
  %v4929 = vpack.c.b16 %v4827, %v4824
  %v4930 = vpack.c.b16 %v4828, %v4825
  %v4931 = vpack.c.b16 %v4829, %v4826
  %v4932 = vpack.c.b16 %v4833, %v4830
  %v4933 = vpack.c.b16 %v4834, %v4831
  %v4934 = vpack.c.b16 %v4835, %v4832
  %v4935 = vpack.c.b16 %v4839, %v4836
  %v4936 = vpack.c.b16 %v4840, %v4837
  %v4937 = vpack.c.b16 %v4841, %v4838
  %v4938 = vpack.c.b16 %v4845, %v4842
  %v4939 = vpack.c.b16 %v4846, %v4843
  %v4940 = vpack.c.b16 %v4847, %v4844
  %v4941 = vpack.c.b16 %v4851, %v4848
  %v4942 = vpack.c.b16 %v4852, %v4849
  %v4943 = vpack.c.b16 %v4853, %v4850
  %v4944 = vpack.c.b16 %v4857, %v4854
  %v4945 = vpack.c.b16 %v4858, %v4855
  %v4946 = vpack.c.b16 %v4859, %v4856
  %v4947 = vpack.c.b16 %v4863, %v4860
  %v4948 = vpack.c.b16 %v4864, %v4861
  %v4949 = vpack.c.b16 %v4865, %v4862
  %v4950 = vpack.c.b16 %v4869, %v4866
  %v4951 = vpack.c.b16 %v4870, %v4867
  %v4952 = vpack.c.b16 %v4871, %v4868
  %v4953 = vpack.c.b16 %v4875, %v4872
  %v4954 = vpack.c.b16 %v4876, %v4873
  %v4955 = vpack.c.b16 %v4877, %v4874
  %v4956 = vpack.c.b16 %v4881, %v4878
  %v4957 = vpack.c.b16 %v4882, %v4879
  %v4958 = vpack.c.b16 %v4883, %v4880
  %v4959 = vpack.c.b16 %v4887, %v4884
  %v4960 = vpack.c.b16 %v4888, %v4885
  %v4961 = vpack.c.b16 %v4889, %v4886
  %v4962 = vpack.c.b16 %v4893, %v4890
  %v4963 = vpack.c.b16 %v4894, %v4891
  %v4964 = vpack.c.b16 %v4895, %v4892
  %v4965 = vpack.c.b16 %v4899, %v4896
  %v4966 = vpack.c.b16 %v4900, %v4897
  %v4967 = vpack.c.b16 %v4901, %v4898
  %v4968 = vpack.c.b16 %v4905, %v4902
  %v4969 = vpack.c.b16 %v4906, %v4903
  %v4970 = vpack.c.b16 %v4907, %v4904
  %v4971 = vpack.c.b16 %v4911, %v4908
  %v4972 = vpack.c.b16 %v4912, %v4909
  %v4973 = vpack.c.b16 %v4913, %v4910
  %vm5034 = vcmask 523264
  %v5036 = vsel %vm5034, %v4616, 0
  %5038 = vmatprep.subr.bf16.mxu0 %v4936
  %5039 = vmatpush1.bf16.msra.mxu0 %v4935
  %5040 = vmatprep.subr.bf16.mxu0 %v4933
  %5041 = vmatpush1.bf16.msra.mxu0 %v4932
  %5042 = vmatprep.subr.bf16.mxu0 %v4930
  %5043 = vmatpush1.bf16.msra.mxu0 %v4929
  %5044 = vmatprep.subr.bf16.mxu0 %v4927
  %5045 = vmatpush1.bf16.msra.mxu0 %v4926
  %5046 = vmatprep.subr.bf16.mxu0 %v4924
  %5047 = vmatpush1.bf16.msra.mxu0 %v4923
  %5048 = vmatprep.subr.bf16.mxu0 %v4921
  %5049 = vmatpush1.bf16.msra.mxu0 %v4920
  %5050 = vmatprep.subr.bf16.mxu0 %v4918
  %5051 = vmatpush1.bf16.msra.mxu0 %v4917
  %5052 = vmatprep.subr.bf16.mxu0 %v4915
  %5053 = vmatpush1.bf16.msra.mxu0 %v4914
  %5054 = vmatprep.subr.bf16.mxu0 %v4960
  %5055 = vmatpush2.bf16.msra.mxu0 %v4959
  %5056 = vmatprep.subr.bf16.mxu0 %v4957
  %5057 = vmatpush2.bf16.msra.mxu0 %v4956
  %5058 = vmatprep.subr.bf16.mxu0 %v4954
  %5059 = vmatpush2.bf16.msra.mxu0 %v4953
  %5060 = vmatprep.subr.bf16.mxu0 %v4951
  %5061 = vmatpush2.bf16.msra.mxu0 %v4950
  %5062 = vmatprep.subr.bf16.mxu0 %v4948
  %5063 = vmatpush2.bf16.msra.mxu0 %v4947
  %5064 = vmatprep.subr.bf16.mxu0 %v4945
  %5065 = vmatpush2.bf16.msra.mxu0 %v4944
  %5066 = vmatprep.subr.bf16.mxu0 %v4942
  %5067 = vmatpush2.bf16.msra.mxu0 %v4941
  %5068 = vmatprep.subr.bf16.mxu0 %v4939
  %5069 = vmatpush2.bf16.msra.mxu0 %v4938
  %5070 = vmatprep.mubr.bf16.mxu0 %v4615
  %5071 = vmatmul.mubr.bf16.gmra.mxu0 %v4614
  %v5072 = vpop.f32.mrf.mxu0
  %v5073 = vadd.f32 %v4702, %v5072
  %v5074 = vpop.f32.mrf.mxu0
  %v5075 = vadd.f32 %v4706, %v5074
  %v5076 = vpop.f32.mrf.mxu0
  %v5077 = vpop.f32.mrf.mxu0
  %5078 = vdwg.mxu0
  %5079 = vmatprep.subr.bf16.mxu0 0
  %5080 = vmatpush1.bf16.msra.mxu0 0
  %5081 = vmatprep.subr.bf16.mxu0 0
  %5082 = vmatpush1.bf16.msra.mxu0 0
  %5083 = vmatprep.subr.bf16.mxu0 0
  %5084 = vmatpush1.bf16.msra.mxu0 0
  %5085 = vmatprep.subr.bf16.mxu0 0
  %5086 = vmatpush1.bf16.msra.mxu0 0
  %5087 = vmatprep.subr.bf16.mxu0 %v4972
  %5088 = vmatpush1.bf16.msra.mxu0 %v4971
  %5089 = vmatprep.subr.bf16.mxu0 %v4969
  %5090 = vmatpush1.bf16.msra.mxu0 %v4968
  %5091 = vmatprep.subr.bf16.mxu0 %v4966
  %5092 = vmatpush1.bf16.msra.mxu0 %v4965
  %5093 = vmatprep.subr.bf16.mxu0 %v4963
  %5094 = vmatpush1.bf16.msra.mxu0 %v4962
  %5095 = vmatprep.subr.bf16.mxu0 0
  %5096 = vmatpush2.bf16.msra.mxu0 0
  %5097 = vmatprep.subr.bf16.mxu0 0
  %5098 = vmatpush2.bf16.msra.mxu0 0
  %5099 = vmatprep.subr.bf16.mxu0 0
  %5100 = vmatpush2.bf16.msra.mxu0 0
  %5101 = vmatprep.subr.bf16.mxu0 0
  %5102 = vmatpush2.bf16.msra.mxu0 0
  %5103 = vmatprep.subr.bf16.mxu0 0
  %5104 = vmatpush2.bf16.msra.mxu0 0
  %5105 = vmatprep.subr.bf16.mxu0 0
  %5106 = vmatpush2.bf16.msra.mxu0 0
  %5107 = vmatprep.subr.bf16.mxu0 0
  %5108 = vmatpush2.bf16.msra.mxu0 0
  %5109 = vmatprep.subr.bf16.mxu0 0
  %5110 = vmatpush2.bf16.msra.mxu0 0
  %5111 = vmatprep.mubr.bf16.mxu0 0
  %5112 = vmatmul.mubr.bf16.gmra.mxu0 %v5036
  %v5113 = vpop.f32.mrf.mxu0
  %v5114 = vadd.f32 %v5073, %v5113
  %v5115 = vpop.f32.mrf.mxu0
  %v5116 = vadd.f32 %v5075, %v5115
  %v5117 = vpop.f32.mrf.mxu0
  %v5118 = vpop.f32.mrf.mxu0
  %5119 = vdwg.mxu0
  %5120 = vmatprep.subr.bf16.mxu0 0
  %5121 = vmatpush1.bf16.msra.mxu0 %v4937
  %5122 = vmatprep.subr.bf16.mxu0 0
  %5123 = vmatpush1.bf16.msra.mxu0 %v4934
  %5124 = vmatprep.subr.bf16.mxu0 0
  %5125 = vmatpush1.bf16.msra.mxu0 %v4931
  %5126 = vmatprep.subr.bf16.mxu0 0
  %5127 = vmatpush1.bf16.msra.mxu0 %v4928
  %5128 = vmatprep.subr.bf16.mxu0 0
  %5129 = vmatpush1.bf16.msra.mxu0 %v4925
  %5130 = vmatprep.subr.bf16.mxu0 0
  %5131 = vmatpush1.bf16.msra.mxu0 %v4922
  %5132 = vmatprep.subr.bf16.mxu0 0
  %5133 = vmatpush1.bf16.msra.mxu0 %v4919
  %5134 = vmatprep.subr.bf16.mxu0 0
  %5135 = vmatpush1.bf16.msra.mxu0 %v4916
  %5136 = vmatprep.subr.bf16.mxu0 0
  %5137 = vmatpush2.bf16.msra.mxu0 %v4961
  %5138 = vmatprep.subr.bf16.mxu0 0
  %5139 = vmatpush2.bf16.msra.mxu0 %v4958
  %5140 = vmatprep.subr.bf16.mxu0 0
  %5141 = vmatpush2.bf16.msra.mxu0 %v4955
  %5142 = vmatprep.subr.bf16.mxu0 0
  %5143 = vmatpush2.bf16.msra.mxu0 %v4952
  %5144 = vmatprep.subr.bf16.mxu0 0
  %5145 = vmatpush2.bf16.msra.mxu0 %v4949
  %5146 = vmatprep.subr.bf16.mxu0 0
  %5147 = vmatpush2.bf16.msra.mxu0 %v4946
  %5148 = vmatprep.subr.bf16.mxu0 0
  %5149 = vmatpush2.bf16.msra.mxu0 %v4943
  %5150 = vmatprep.subr.bf16.mxu0 0
  %5151 = vmatpush2.bf16.msra.mxu0 %v4940
  %5152 = vmatprep.mubr.bf16.mxu0 %v4615
  %5153 = vmatmul.mubr.bf16.gmra.mxu0 %v4614
  %v5154 = vpop.f32.mrf.mxu0
  %v5155 = vadd.f32 %v4710, %v5154
  %v5156 = vpop.f32.mrf.mxu0
  %v5157 = vpop.f32.mrf.mxu0
  %v5158 = vpop.f32.mrf.mxu0
  %5159 = vdwg.mxu0
  %5160 = vmatprep.subr.bf16.mxu0 0
  %5161 = vmatpush1.bf16.msra.mxu0 0
  %5162 = vmatprep.subr.bf16.mxu0 0
  %5163 = vmatpush1.bf16.msra.mxu0 0
  %5164 = vmatprep.subr.bf16.mxu0 0
  %5165 = vmatpush1.bf16.msra.mxu0 0
  %5166 = vmatprep.subr.bf16.mxu0 0
  %5167 = vmatpush1.bf16.msra.mxu0 0
  %5168 = vmatprep.subr.bf16.mxu0 0
  %5169 = vmatpush1.bf16.msra.mxu0 %v4973
  %5170 = vmatprep.subr.bf16.mxu0 0
  %5171 = vmatpush1.bf16.msra.mxu0 %v4970
  %5172 = vmatprep.subr.bf16.mxu0 0
  %5173 = vmatpush1.bf16.msra.mxu0 %v4967
  %5174 = vmatprep.subr.bf16.mxu0 0
  %5175 = vmatpush1.bf16.msra.mxu0 %v4964
  %5176 = vmatprep.subr.bf16.mxu0 0
  %5177 = vmatpush2.bf16.msra.mxu0 0
  %5178 = vmatprep.subr.bf16.mxu0 0
  %5179 = vmatpush2.bf16.msra.mxu0 0
  %5180 = vmatprep.subr.bf16.mxu0 0
  %5181 = vmatpush2.bf16.msra.mxu0 0
  %5182 = vmatprep.subr.bf16.mxu0 0
  %5183 = vmatpush2.bf16.msra.mxu0 0
  %5184 = vmatprep.subr.bf16.mxu0 0
  %5185 = vmatpush2.bf16.msra.mxu0 0
  %5186 = vmatprep.subr.bf16.mxu0 0
  %5187 = vmatpush2.bf16.msra.mxu0 0
  %5188 = vmatprep.subr.bf16.mxu0 0
  %5189 = vmatpush2.bf16.msra.mxu0 0
  %5190 = vmatprep.subr.bf16.mxu0 0
  %5191 = vmatpush2.bf16.msra.mxu0 0
  %5192 = vmatprep.mubr.bf16.mxu0 0
  %5193 = vmatmul.mubr.bf16.gmra.mxu0 %v5036
  %v5194 = vpop.f32.mrf.mxu0
  %v5195 = vadd.f32 %v5155, %v5194
  %v5196 = vpop.f32.mrf.mxu0
  %v5197 = vpop.f32.mrf.mxu0
  %v5198 = vpop.f32.mrf.mxu0
  %5199 = vdwg.mxu0
  %v5200 = vmax.f32 %v5114, 0.0
  %v5201 = vmax.f32 %v5116, 0.0
  %v5202 = vmax.f32 %v5195, 0.0
  %v5203 = vpack.c.bf16 %v5200, %v5200
  %v5204 = vpack.c.bf16 %v5201, %v5201
  %v5205 = vpack.c.bf16 %v5202, %v5202
  %v5206 = vld [vmem:[%s15] sm:$0xf]
  %v5207 = vld [vmem:[%s15 + $0x4] sm:$0xf]
  %v5208 = vld [vmem:[%s15 + $0x8] sm:$0xf]
  %v5209 = vld [vmem:[%s15 + $0xc] sm:$0xf]
  %v5210 = vld [vmem:[%s15 + $0x10] sm:$0xf]
  %v5211 = vld [vmem:[%s15 + $0x14] sm:$0xf]
  %v5212 = vld [vmem:[%s15 + $0x18] sm:$0xf]
  %v5213 = vld [vmem:[%s15 + $0x1c] sm:$0xf]
  %v5214 = vld [vmem:[%s15 + $0x20] sm:$0xf]
  %v5215 = vld [vmem:[%s15 + $0x24] sm:$0xf]
  %v5216 = vld [vmem:[%s15 + $0x28] sm:$0xf]
  %v5217 = vld [vmem:[%s15 + $0x2c] sm:$0xf]
  %v5218 = vld [vmem:[%s15 + $0x30] sm:$0xf]
  %v5219 = vld [vmem:[%s15 + $0x34] sm:$0xf]
  %v5220 = vld [vmem:[%s15 + $0x38] sm:$0xf]
  %v5221 = vld [vmem:[%s15 + $0x3c] sm:$0xf]
  %v5222 = vld [vmem:[%s15 + $0x40] sm:$0xf]
  %v5223 = vld [vmem:[%s15 + $0x44] sm:$0xf]
  %v5224 = vld [vmem:[%s15 + $0x48] sm:$0xf]
  %v5225 = vld [vmem:[%s15 + $0x4c] sm:$0xf]
  %v5226 = vld [vmem:[%s15 + $0x50] sm:$0xf]
  %v5227 = vld [vmem:[%s15 + $0x54] sm:$0xf]
  %v5228 = vld [vmem:[%s15 + $0x58] sm:$0xf]
  %v5229 = vld [vmem:[%s15 + $0x5c] sm:$0xf]
  %v5230 = vld [vmem:[%s15 + $0x60] sm:$0xf]
  %v5231 = vld [vmem:[%s15 + $0x64] sm:$0xf]
  %v5232 = vld [vmem:[%s15 + $0x68] sm:$0xf]
  %v5233 = vld [vmem:[%s15 + $0x6c] sm:$0xf]
  %v5234 = vld [vmem:[%s15 + $0x70] sm:$0xf]
  %v5235 = vld [vmem:[%s15 + $0x74] sm:$0xf]
  %v5236 = vld [vmem:[%s15 + $0x78] sm:$0xf]
  %v5237 = vld [vmem:[%s15 + $0x7c] sm:$0xf]
  %v5238 = vld [vmem:[%s15 + $0x80] sm:$0xf]
  %v5239 = vld [vmem:[%s15 + $0x84] sm:$0xf]
  %v5240 = vld [vmem:[%s15 + $0x88] sm:$0xf]
  %v5241 = vld [vmem:[%s15 + $0x8c] sm:$0xf]
  %v5242 = vld [vmem:[%s15 + $0x90] sm:$0xf]
  %v5243 = vld [vmem:[%s15 + $0x94] sm:$0xf]
  %v5244 = vld [vmem:[%s15 + $0x98] sm:$0xf]
  %v5245 = vld [vmem:[%s15 + $0x9c] sm:$0xf]
  %v5246 = vld [vmem:[%s16] sm:$0x1]
  %v5248 = vlaneseq
  %v5249 = vshrl.u32 %v5248, 7
  %v5250 = vsub.s32 0, %v5249
  %v5251 = vrot.slane %v5246, %v5250
  %v5293 = vunpack.c.l.b16 %v5206
  %v5294 = vunpack.c.l.b16 %v5207
  %v5295 = vunpack.c.l.b16 %v5208
  %v5296 = vunpack.c.l.b16 %v5209
  %v5297 = vunpack.c.l.b16 %v5210
  %v5298 = vunpack.c.l.b16 %v5211
  %v5299 = vunpack.c.l.b16 %v5212
  %v5300 = vunpack.c.l.b16 %v5213
  %v5301 = vunpack.c.l.b16 %v5214
  %v5302 = vunpack.c.l.b16 %v5215
  %v5303 = vunpack.c.l.b16 %v5216
  %v5304 = vunpack.c.l.b16 %v5217
  %v5305 = vunpack.c.l.b16 %v5218
  %v5306 = vunpack.c.l.b16 %v5219
  %v5307 = vunpack.c.l.b16 %v5220
  %v5308 = vunpack.c.l.b16 %v5221
  %v5309 = vunpack.c.l.b16 %v5222
  %v5310 = vunpack.c.l.b16 %v5223
  %v5311 = vunpack.c.l.b16 %v5224
  %v5312 = vunpack.c.l.b16 %v5225
  %v5313 = vunpack.c.l.b16 %v5226
  %v5314 = vunpack.c.l.b16 %v5227
  %v5315 = vunpack.c.l.b16 %v5228
  %v5316 = vunpack.c.l.b16 %v5229
  %v5317 = vunpack.c.l.b16 %v5230
  %v5318 = vunpack.c.l.b16 %v5231
  %v5319 = vunpack.c.l.b16 %v5232
  %v5320 = vunpack.c.l.b16 %v5233
  %v5321 = vunpack.c.l.b16 %v5234
  %v5322 = vunpack.c.l.b16 %v5235
  %v5323 = vunpack.c.l.b16 %v5236
  %v5324 = vunpack.c.l.b16 %v5237
  %v5325 = vunpack.c.l.b16 %v5238
  %v5326 = vunpack.c.l.b16 %v5239
  %v5327 = vunpack.c.l.b16 %v5240
  %v5328 = vunpack.c.l.b16 %v5241
  %v5329 = vunpack.c.l.b16 %v5242
  %v5330 = vunpack.c.l.b16 %v5243
  %v5331 = vunpack.c.l.b16 %v5244
  %v5332 = vunpack.c.l.b16 %v5245
  %v5333 = vpack.c.b16 %v5294, %v5293
  %v5334 = vpack.c.b16 %v5296, %v5295
  %v5335 = vpack.c.b16 %v5298, %v5297
  %v5336 = vpack.c.b16 %v5300, %v5299
  %v5337 = vpack.c.b16 %v5302, %v5301
  %v5338 = vpack.c.b16 %v5304, %v5303
  %v5339 = vpack.c.b16 %v5306, %v5305
  %v5340 = vpack.c.b16 %v5308, %v5307
  %v5341 = vpack.c.b16 %v5310, %v5309
  %v5342 = vpack.c.b16 %v5312, %v5311
  %v5343 = vpack.c.b16 %v5314, %v5313
  %v5344 = vpack.c.b16 %v5316, %v5315
  %v5345 = vpack.c.b16 %v5318, %v5317
  %v5346 = vpack.c.b16 %v5320, %v5319
  %v5347 = vpack.c.b16 %v5322, %v5321
  %v5348 = vpack.c.b16 %v5324, %v5323
  %v5349 = vpack.c.b16 %v5326, %v5325
  %v5350 = vpack.c.b16 %v5328, %v5327
  %v5351 = vpack.c.b16 %v5330, %v5329
  %v5352 = vpack.c.b16 %v5332, %v5331
  %v5374 = vsel %vm5034, %v5205, 0
  %5376 = vmatprep.subr.bf16.mxu0 0
  %5377 = vmatpush1.bf16.msra.mxu0 %v5340
  %5378 = vmatprep.subr.bf16.mxu0 0
  %5379 = vmatpush1.bf16.msra.mxu0 %v5339
  %5380 = vmatprep.subr.bf16.mxu0 0
  %5381 = vmatpush1.bf16.msra.mxu0 %v5338
  %5382 = vmatprep.subr.bf16.mxu0 0
  %5383 = vmatpush1.bf16.msra.mxu0 %v5337
  %5384 = vmatprep.subr.bf16.mxu0 0
  %5385 = vmatpush1.bf16.msra.mxu0 %v5336
  %5386 = vmatprep.subr.bf16.mxu0 0
  %5387 = vmatpush1.bf16.msra.mxu0 %v5335
  %5388 = vmatprep.subr.bf16.mxu0 0
  %5389 = vmatpush1.bf16.msra.mxu0 %v5334
  %5390 = vmatprep.subr.bf16.mxu0 0
  %5391 = vmatpush1.bf16.msra.mxu0 %v5333
  %5392 = vmatprep.subr.bf16.mxu0 0
  %5393 = vmatpush2.bf16.msra.mxu0 %v5348
  %5394 = vmatprep.subr.bf16.mxu0 0
  %5395 = vmatpush2.bf16.msra.mxu0 %v5347
  %5396 = vmatprep.subr.bf16.mxu0 0
  %5397 = vmatpush2.bf16.msra.mxu0 %v5346
  %5398 = vmatprep.subr.bf16.mxu0 0
  %5399 = vmatpush2.bf16.msra.mxu0 %v5345
  %5400 = vmatprep.subr.bf16.mxu0 0
  %5401 = vmatpush2.bf16.msra.mxu0 %v5344
  %5402 = vmatprep.subr.bf16.mxu0 0
  %5403 = vmatpush2.bf16.msra.mxu0 %v5343
  %5404 = vmatprep.subr.bf16.mxu0 0
  %5405 = vmatpush2.bf16.msra.mxu0 %v5342
  %5406 = vmatprep.subr.bf16.mxu0 0
  %5407 = vmatpush2.bf16.msra.mxu0 %v5341
  %5408 = vmatprep.mubr.bf16.mxu0 %v5204
  %5409 = vmatmul.mubr.bf16.gmra.mxu0 %v5203
  %v5410 = vpop.f32.mrf.mxu0
  %v5411 = vadd.f32 %v5251, %v5410
  %v5412 = vpop.f32.mrf.mxu0
  %v5413 = vpop.f32.mrf.mxu0
  %v5414 = vpop.f32.mrf.mxu0
  %5415 = vdwg.mxu0
  %5416 = vmatprep.subr.bf16.mxu0 0
  %5417 = vmatpush1.bf16.msra.mxu0 0
  %5418 = vmatprep.subr.bf16.mxu0 0
  %5419 = vmatpush1.bf16.msra.mxu0 0
  %5420 = vmatprep.subr.bf16.mxu0 0
  %5421 = vmatpush1.bf16.msra.mxu0 0
  %5422 = vmatprep.subr.bf16.mxu0 0
  %5423 = vmatpush1.bf16.msra.mxu0 0
  %5424 = vmatprep.subr.bf16.mxu0 0
  %5425 = vmatpush1.bf16.msra.mxu0 %v5352
  %5426 = vmatprep.subr.bf16.mxu0 0
  %5427 = vmatpush1.bf16.msra.mxu0 %v5351
  %5428 = vmatprep.subr.bf16.mxu0 0
  %5429 = vmatpush1.bf16.msra.mxu0 %v5350
  %5430 = vmatprep.subr.bf16.mxu0 0
  %5431 = vmatpush1.bf16.msra.mxu0 %v5349
  %5432 = vmatprep.subr.bf16.mxu0 0
  %5433 = vmatpush2.bf16.msra.mxu0 0
  %5434 = vmatprep.subr.bf16.mxu0 0
  %5435 = vmatpush2.bf16.msra.mxu0 0
  %5436 = vmatprep.subr.bf16.mxu0 0
  %5437 = vmatpush2.bf16.msra.mxu0 0
  %5438 = vmatprep.subr.bf16.mxu0 0
  %5439 = vmatpush2.bf16.msra.mxu0 0
  %5440 = vmatprep.subr.bf16.mxu0 0
  %5441 = vmatpush2.bf16.msra.mxu0 0
  %5442 = vmatprep.subr.bf16.mxu0 0
  %5443 = vmatpush2.bf16.msra.mxu0 0
  %5444 = vmatprep.subr.bf16.mxu0 0
  %5445 = vmatpush2.bf16.msra.mxu0 0
  %5446 = vmatprep.subr.bf16.mxu0 0
  %5447 = vmatpush2.bf16.msra.mxu0 0
  %5448 = vmatprep.mubr.bf16.mxu0 0
  %5449 = vmatmul.mubr.bf16.gmra.mxu0 %v5374
  %v5450 = vpop.f32.mrf.mxu0
  %v5451 = vadd.f32 %v5411, %v5450
  %v5452 = vpop.f32.mrf.mxu0
  %v5453 = vpop.f32.mrf.mxu0
  %v5454 = vpop.f32.mrf.mxu0
  %5455 = vdwg.mxu0
  %5457 = vrot.lane.b32.xlu0 %v5451, 8
  %v5458 = vpop.permute.xlu0 %5457
  %v5460 = vadd.f32 %v5451, %v5458
  %vm5461 = vcmask 60416
  %v5462 = vsel %vm5461, %v5451, 0.0
  %5463 = vadd.xlane.f32.xlu0 %v5462
  %v5464 = vpop.xlane.xlu0 %5463
  %v5465 = vmul.f32 %v5464, 0.25
  %v5466 = vsub.f32 %v5460, %v5465
  %5467 = vrot.lane.b32.xlu0 %v5451, 112
  %v5468 = vpop.permute.xlu0 %5467
  %v5470 = vsel %vm5461, %v5468, 0.0
  %5471 = vadd.xlane.f32.xlu0 %v5470
  %v5472 = vpop.xlane.xlu0 %5471
  %v5473 = vmul.f32 %v5472, 0.25
  %v5474 = vsub.f32 %v5460, %v5473
  %vm5475 = vcmask 454016
  %v5476 = vsel %vm5475, %v5451, -inf
  %5477 = vmax.xlane.f32.xlu0 %v5476
  %v5478 = vpop.xlane.xlu0 %5477
  %v5479 = vsub.f32 %v5451, %v5478
  %v5480 = vmul.f32 %v5479, 1.442695
  %v5481 = vpow.pop %v5480
  %5483 = vrot.lane.b32.xlu0 %v5481, 80
  %v5484 = vpop.permute.xlu0 %5483
  %v5486 = vsel %vm5461, %v5484, 0.0
  %5487 = vadd.xlane.f32.xlu0 %v5486
  %v5488 = vpop.xlane.xlu0 %5487
  %v5489 = vrcp.pop %v5488
  %v5490 = vmul.f32 %v5481, %v5489
  %v5491 = vlog2.pop %v5488
  %v5492 = vmul.f32 %v5491, 0.6931472
  %v5493 = vsub.f32 %v5479, %v5492
  %5494 = vst [vmem:[%s17] sm:$0xf] 0.0
  %5496 = vrot.lane.b32.xlu0 %v5466, 120
  %v5497 = vpop.permute.xlu0 %5496
  %5499 = vst.msk [vmem:[%s17] sm:$0xf] %vm5461, %v5497
  %5501 = vrot.lane.b32.xlu0 %v5474, 112
  %v5502 = vpop.permute.xlu0 %5501
  %vm5504 = vcmask 126016
  %5505 = vst.msk [vmem:[%s17] sm:$0xf] %vm5504, %v5502
  %vm5506 = vcmask 191616
  %5507 = vst.msk [vmem:[%s17] sm:$0xf] %vm5506, %v5468
  %vm5508 = vcmask 257216
  %5509 = vst.msk [vmem:[%s17] sm:$0xf] %vm5508, %v5468
  %5511 = vrot.lane.b32.xlu0 %v5490, 112
  %v5512 = vpop.permute.xlu0 %5511
  %vm5514 = vcmask 322816
  %5515 = vst.msk [vmem:[%s17] sm:$0xf] %vm5514, %v5512
  %5517 = vrot.lane.b32.xlu0 %v5493, 120
  %v5518 = vpop.permute.xlu0 %5517
  %vm5520 = vcmask 388416
  %5521 = vst.msk [vmem:[%s17] sm:$0xf] %vm5520, %v5518
  // Predicated region
  $region70: #{forward.1} parent=0 // pred_check
    _
  $region71: #{forward.1} parent=0 // pred_check_branch
    %5523 = sbr.rel (0) target = $region73
  $region72: #{forward.1} parent=0 // pred_region
    _
  $region73: #{forward.1} parent=0 // pred_fallthru
    _
  // Predicated region
  $region74: #{forward.1} parent=0 // pred_check
    _
  $region75: #{forward.1} parent=0 // pred_check_branch
    %5525 = sbr.rel (0) target = $region77
  $region76: #{forward.1} parent=0 // pred_region
    _
  $region77: #{forward.1} parent=0 // pred_fallthru
    _

</llo_original>
